<compile_context>
chip_gen: v7x
topology: tpu7x:2x2x1
jax: 0.10.0
libtpu: 0.0.40
codegen_flags: <defaults>
</compile_context>

<pallas_src>
import functools
import math

import jax
import jax.numpy as jnp
from jax.experimental import pallas as pl
from jax.experimental.pallas import tpu as pltpu


def _round_up(n, m):
    return ((n + m - 1) // m) * m


def _device_kind():
    try:
        return jax.devices()[0].device_kind.lower()
    except Exception:
        return ""


def _default_vmem_limit_bytes():
    # Per-generation scoped-VMEM limit: leave headroom for Mosaic internal
    # scratch on v7x (64 MiB physical per TC); use v5e/v6e's 128 MiB freely.
    kind = _device_kind()
    if "v7" in kind:
        return 56 * 1024 * 1024
    if ("v5" in kind) or ("v6" in kind):
        return 100 * 1024 * 1024
    return 48 * 1024 * 1024


def _default_num_partials():
    # v7x has 2 TensorCores per chip; shard the prototype reduction across them.
    return 2 if "v7" in _device_kind() else 1


# ----------------------------------------------------------------------------
# Kernel A: normalize + cls_head matmul + logit_scale + valid bias + row argmax
# ----------------------------------------------------------------------------
def _scores_kernel(feats_ref, w_ref, bias_ref, scores_ref, preds_ref,
                   normed_ref, *, feat_norm, logit_scale):
    x = feats_ref[...].astype(jnp.float32)                      # (TILE_V, C)

    if feat_norm:
        # torch F.normalize(dim=-1): x / max(||x||, 1e-12) == x*rsqrt(max(ssq,1e-24))
        ssq = jnp.sum(x * x, axis=-1, keepdims=True)
        x = x * jax.lax.rsqrt(jnp.maximum(ssq, jnp.float32(1e-24)))

    x_bf = x.astype(jnp.bfloat16)
    normed_ref[...] = x_bf                                      # bf16 writeback

    # Un-scaled bf16 weight on the MXU; f32 accumulate; scale applied in f32.
    acc = jnp.dot(x_bf, w_ref[...], preferred_element_type=jnp.float32)
    if logit_scale != 1.0:
        acc = acc * jnp.float32(logit_scale)

    # Additive valid-class mask: bias is 0 for valid classes, -1e6 for ignored
    # and padding columns (invalid cols become score-1e6 rather than exactly
    # -1e6; argmax- and softmax-equivalent to the torch masking).
    scores = acc + bias_ref[...]
    scores_ref[...] = scores.astype(scores_ref.dtype)           # bf16 store

    # Row-wise argmax on the f32 scores, first occurrence on ties (torch .max(1)[1]).
    col = jax.lax.broadcasted_iota(jnp.int32, scores.shape, 1)
    rmax = jnp.max(scores, axis=-1, keepdims=True)
    idx = jnp.min(jnp.where(scores == rmax, col, jnp.int32(2 ** 30)),
                  axis=-1, keepdims=True)                       # (TILE_V, 1)
    # Lane-dense store (avoids masked vst.msk / strided DMA of a (TILE_V,1) stream).
    preds_ref[...] = idx.reshape(1, scores.shape[0])            # (1, TILE_V)


def text_seg_head_scores(adapter_feats, weight_t, score_bias, *,
                         feat_norm=True, logit_scale=1.0, tile_v=1024,
                         vmem_limit_bytes=None):
    """Returns (scores (V_pad,Kpad) bf16, preds (V_pad,) i32, normed (V_pad,C) bf16)."""
    V, C = adapter_feats.shape
    kpad = weight_t.shape[1]
    v_pad = _round_up(V, tile_v)
    if v_pad != V:
        adapter_feats = jnp.pad(adapter_feats, ((0, v_pad - V), (0, 0)))

    grid = (v_pad // tile_v,)
    kernel = functools.partial(_scores_kernel, feat_norm=feat_norm,
                               logit_scale=float(logit_scale))

    scores, preds, normed = pl.pallas_call(
        kernel,
        grid=grid,
        in_specs=[
            pl.BlockSpec((tile_v, C), lambda i: (i, 0)),        # feats tile
            pl.BlockSpec((C, kpad), lambda i: (0, 0)),          # weight (resident)
            pl.BlockSpec((1, kpad), lambda i: (0, 0)),          # valid bias (resident)
        ],
        out_specs=(
            pl.BlockSpec((tile_v, kpad), lambda i: (i, 0)),     # scores (bf16)
            pl.BlockSpec((1, tile_v), lambda i: (0, i)),        # preds (lane-dense)
            pl.BlockSpec((tile_v, C), lambda i: (i, 0)),        # normalized feats (bf16)
        ),
        out_shape=(
            jax.ShapeDtypeStruct((v_pad, kpad), jnp.bfloat16),
            jax.ShapeDtypeStruct((1, v_pad), jnp.int32),
            jax.ShapeDtypeStruct((v_pad, C), jnp.bfloat16),
        ),
        compiler_params=pltpu.CompilerParams(
            dimension_semantics=("parallel",),                  # v7x: split V over 2 TCs
            vmem_limit_bytes=(vmem_limit_bytes or _default_vmem_limit_bytes()),
        ),
    )(adapter_feats, weight_t, score_bias)

    return scores, preds.reshape(v_pad), normed


# ----------------------------------------------------------------------------
# Kernel B: per-class prototype sums + counts at VOXEL granularity
#           (multiplicity-weighted one-hot matmul, per-TC partial accumulators)
# ----------------------------------------------------------------------------
def _prototype_kernel(feats_ref, preds_ref, mult_ref, sums_ref, counts_ref):
    @pl.when(pl.program_id(1) == 0)
    def _init():
        sums_ref[...] = jnp.zeros_like(sums_ref)
        counts_ref[...] = jnp.zeros_like(counts_ref)

    feats = feats_ref[...]                                      # (TILE, C) bf16
    preds = preds_ref[...]                                      # (1, TILE) int32
    mult = mult_ref[...]                                        # (1, TILE) f32
    kpad = sums_ref.shape[1]
    tile = preds.shape[1]

    # Multiplicity-weighted one-hot in (Kpad, TILE) orientation -> standard MXU matmul.
    class_col = jax.lax.broadcasted_iota(jnp.int32, (kpad, tile), 0)
    hit = class_col == preds                                    # padded preds (-1) never hit
    w = jnp.where(hit, mult, jnp.float32(0.0))                  # (Kpad, TILE) f32

    # mult is exact in bf16 up to 256 points/voxel; beyond that <=0.2% rel error.
    sums_ref[...] += jnp.dot(w.astype(jnp.bfloat16), feats,
                             preferred_element_type=jnp.float32)[None]       # (1,Kpad,C)
    # f32 counts: exact up to 2^24 points per class.
    counts_ref[...] += jnp.sum(w, axis=1, keepdims=True)[None]                # (1,Kpad,1)


def class_prototype_sums(voxel_feats, voxel_preds, voxel_mult, *,
                         num_class_padded, tile_v=1024, num_partials=None,
                         vmem_limit_bytes=None):
    """Returns (sums (Kpad, C) f32, counts (Kpad,) f32)."""
    V, C = voxel_feats.shape
    if num_partials is None:
        num_partials = _default_num_partials()
    v_pad = _round_up(max(V, 1), tile_v * num_partials)
    if v_pad != V:
        voxel_feats = jnp.pad(voxel_feats, ((0, v_pad - V), (0, 0)))
        voxel_preds = jnp.pad(voxel_preds, (0, v_pad - V), constant_values=-1)
        voxel_mult = jnp.pad(voxel_mult, (0, v_pad - V))

    feats_bf = voxel_feats.astype(jnp.bfloat16)
    preds2d = voxel_preds.astype(jnp.int32).reshape(1, v_pad)
    mult2d = voxel_mult.astype(jnp.float32).reshape(1, v_pad)

    tiles_per_partial = v_pad // (tile_v * num_partials)

    def row_map(c, i):
        return (c * tiles_per_partial + i, 0)

    def lane_map(c, i):
        return (0, c * tiles_per_partial + i)

    def acc_map(c, i):
        return (c, 0, 0)

    sums, counts = pl.pallas_call(
        _prototype_kernel,
        grid=(num_partials, tiles_per_partial),
        in_specs=[
            pl.BlockSpec((tile_v, C), row_map),                 # voxel feats (bf16)
            pl.BlockSpec((1, tile_v), lane_map),                # voxel preds
            pl.BlockSpec((1, tile_v), lane_map),                # voxel multiplicity
        ],
        out_specs=(
            pl.BlockSpec((1, num_class_padded, C), acc_map),    # per-partial accumulator
            pl.BlockSpec((1, num_class_padded, 1), acc_map),    # per-partial accumulator
        ),
        out_shape=(
            jax.ShapeDtypeStruct((num_partials, num_class_padded, C), jnp.float32),
            jax.ShapeDtypeStruct((num_partials, num_class_padded, 1), jnp.float32),
        ),
        compiler_params=pltpu.CompilerParams(
            dimension_semantics=("parallel", "arbitrary"),      # partials over TCs, tiles reduce
            vmem_limit_bytes=(vmem_limit_bytes or _default_vmem_limit_bytes()),
        ),
    )(feats_bf, preds2d, mult2d)

    return sums.sum(axis=0), counts.sum(axis=0)[:, 0]


# ----------------------------------------------------------------------------
# Parameter packing (one-time, amortized across calls)
# ----------------------------------------------------------------------------
def make_text_seg_head_params(text_embed, valid_class_idx, logit_scale, *,
                              feat_norm, ignore_label):
    K, C = text_embed.shape
    kpad = max(128, _round_up(K, 128))
    # Un-scaled bf16 weight, padded to a full MXU lane width; logit_scale is
    # applied to the f32 accumulator inside the kernel (keeps bf16 mantissa).
    w = jnp.pad(text_embed.astype(jnp.float32).T,
                ((0, 0), (0, kpad - K))).astype(jnp.bfloat16)            # (C, Kpad)
    # Additive valid-class bias: 0 on valid classes, -1e6 on ignored + padding.
    bias = jnp.full((1, kpad), -1000000.0, jnp.float32)
    bias = bias.at[0, jnp.asarray(valid_class_idx, dtype=jnp.int32)].set(0.0)
    return dict(weight_t=w, score_bias=bias, logit_scale=float(logit_scale),
                num_class=K, num_class_padded=kpad,
                feat_norm=feat_norm, ignore_label=ignore_label)


# ----------------------------------------------------------------------------
# Module-level wrapper (eval path of TextSegHead.forward)
# ----------------------------------------------------------------------------
def text_seg_head_forward(batch_dict, params, *, tile_v=1024, tile_proto=1024):
    feats = batch_dict["adapter_feats"]                  # (V, C) f32 or bf16
    v2p_map = batch_dict["v2p_map"]                      # (P,)
    K = params["num_class"]

    scores_v, preds_v, normed_v = text_seg_head_scores(
        feats, params["weight_t"], params["score_bias"],
        feat_norm=params["feat_norm"], logit_scale=params["logit_scale"],
        tile_v=tile_v)
    v_pad = normed_v.shape[0]

    # v2p row gather (plain-JAX glue; all_feats is a required module output).
    # Only the K real score columns are gathered (drops Kpad padding first).
    seg_scores = jnp.take(scores_v[:, :K], v2p_map, axis=0).astype(jnp.float32)
    seg_preds = jnp.take(preds_v, v2p_map, axis=0)               # (P,)  i32
    all_feats = jnp.take(normed_v, v2p_map, axis=0)              # (P, C) bf16

    # Per-voxel point multiplicity (scatter-add glue).  Prototype sums then run
    # at voxel granularity; padded voxels have mult=0 and never contribute.
    mult = jnp.zeros((v_pad,), jnp.float32).at[v2p_map].add(1.0)

    # Class prototypes are built from preds BEFORE the adapter_feats_mask ->
    # ignore_label substitution (matches the PyTorch ordering).
    sums, counts = class_prototype_sums(
        normed_v, preds_v, mult,
        num_class_padded=params["num_class_padded"], tile_v=tile_proto)
    sums = sums[:K]
    counts = counts[:K]

    if "adapter_feats_mask" in batch_dict:
        m = batch_dict["adapter_feats_mask"].astype(bool)
        seg_preds = jnp.where(m, seg_preds, jnp.int32(params["ignore_label"]))

    batch_dict["seg_scores"] = seg_scores
    batch_dict["seg_preds"] = seg_preds
    forward_ret = {
        "all_feats": all_feats,
        "seg_scores": seg_scores,
        "seg_preds": seg_preds,
        "prototype_sums": sums,
        "prototype_counts": counts,
        "binary_preds": None,
    }
    return batch_dict, forward_ret


if __name__ == "__main__":
    # Small deterministic setup consistent with the module's __init__.
    V, C, K, P = 200, 128, 16, 600     # voxels, text_channel, num_class, points
    TILE_V, TILE_P = 256, 256          # small tiles for the demo (use 1024+ for real sizes)
    ignore_label = -100

    key = jax.random.PRNGKey(0)
    k_feat, k_txt, k_map, k_mask = jax.random.split(key, 4)

    adapter_feats = jax.random.normal(k_feat, (V, C), dtype=jnp.float32)
    text_embed = jax.random.normal(k_txt, (K, C), dtype=jnp.float32)      # cls_head.weight
    v2p_map = jax.random.randint(k_map, (P,), 0, V, dtype=jnp.int32)
    adapter_feats_mask = (jax.random.uniform(k_mask, (P,)) > 0.1).astype(jnp.int32)

    # valid_class_idx = all classes minus ignore_class_idx = [K-1]
    valid_class_idx = [i for i in range(K) if i != K - 1]
    logit_scale = math.exp(math.log(1.0 / 0.07))                          # exp(nn.Parameter)

    params = make_text_seg_head_params(
        text_embed, valid_class_idx, logit_scale,
        feat_norm=True, ignore_label=ignore_label)

    batch_dict = {
        "adapter_feats": adapter_feats,
        "v2p_map": v2p_map,
        "adapter_feats_mask": adapter_feats_mask,
    }

    batch_dict, ret = text_seg_head_forward(batch_dict, params,
                                            tile_v=TILE_V, tile_proto=TILE_P)
    jax.block_until_ready((batch_dict["seg_scores"], batch_dict["seg_preds"],
                           ret["prototype_sums"], ret["prototype_counts"]))

    # Build class_prototype dict only for classes that appear (torch .unique()).
    counts = jax.device_get(ret["prototype_counts"])            # (K,)
    sums = jax.device_get(ret["prototype_sums"])                # (K, C)
    class_prototype = {int(c): sums[c] / counts[c]
                       for c in range(K) if counts[c] > 0}

    sp = jax.device_get(batch_dict["seg_preds"])
    assert batch_dict["seg_scores"].shape == (P, K)
    assert batch_dict["seg_scores"].dtype == jnp.float32
    assert batch_dict["seg_preds"].shape == (P,)
    assert ret["all_feats"].shape == (P, C)
    assert bool((((sp >= 0) & (sp < K)) | (sp == ignore_label)).all())
    assert len(class_prototype) > 0
    assert next(iter(class_prototype.values())).shape == (C,)
    # total prototype count mass equals number of points
    assert abs(float(counts.sum()) - P) < 1e-3

    print("KERNEL_OK")
</pallas_src>

<mosaic_0001>
module attributes {stable_mosaic.version = 11 : i64} {
  func.func @_scores_kernel(%arg0: i32, %arg1: memref<256x128xf32, #tpu.memory_space<vmem>>, %arg2: memref<128x128xbf16, #tpu.memory_space<vmem>>, %arg3: memref<1x128xf32, #tpu.memory_space<vmem>>, %arg4: memref<256x128xbf16, #tpu.memory_space<vmem>>, %arg5: memref<1x256xi32, #tpu.memory_space<vmem>>, %arg6: memref<256x128xbf16, #tpu.memory_space<vmem>>) attributes {dimension_semantics = [#tpu.dimension_semantics<parallel>], iteration_bounds = array<i64: 1>, scalar_prefetch = 0 : i64, scratch_operands = 0 : i64, tpu.core_type = #tpu.core_type<tc>, window_params = [{transform_indices = @transform_0, window_bounds = array<i64: 256, 128>}, {pipeline_mode = #tpu.pipeline_mode<synchronous>, transform_indices = @transform_1, window_bounds = array<i64: 128, 128>}, {pipeline_mode = #tpu.pipeline_mode<synchronous>, transform_indices = @transform_2, window_bounds = array<i64: 1, 128>}, {transform_indices = @transform_3, window_bounds = array<i64: 256, 128>}, {transform_indices = @transform_4, window_bounds = array<i64: 1, 256>}, {transform_indices = @transform_5, window_bounds = array<i64: 256, 128>}]} {
    %c0 = arith.constant 0 : index
    %c0_0 = arith.constant 0 : index
    %0 = vector.load %arg1[%c0, %c0_0] : memref<256x128xf32, #tpu.memory_space<vmem>>, vector<256x128xf32>
    %1 = arith.mulf %0, %0 : vector<256x128xf32>
    %cst = arith.constant dense<0.000000e+00> : vector<256xf32>
    %2 = vector.multi_reduction <add>, %1, %cst [1] : vector<256x128xf32> to vector<256xf32>
    %3 = vector.shape_cast %2 : vector<256xf32> to vector<256x1xf32>
    %cst_1 = arith.constant 1.000000e-24 : f32
    %4 = vector.broadcast %cst_1 : f32 to vector<256x1xf32>
    %5 = arith.maximumf %3, %4 : vector<256x1xf32>
    %6 = math.rsqrt %5 : vector<256x1xf32>
    %7 = vector.broadcast %6 : vector<256x1xf32> to vector<256x128xf32>
    %8 = arith.mulf %0, %7 : vector<256x128xf32>
    %9 = arith.truncf %8 : vector<256x128xf32> to vector<256x128xbf16>
    %c0_2 = arith.constant 0 : index
    %c0_3 = arith.constant 0 : index
    %10 = vector.load %arg6[%c0_2, %c0_3] : memref<256x128xbf16, #tpu.memory_space<vmem>>, vector<256x128xbf16>
    tpu.vector_store %arg6[%c0_2, %c0_3], %9 {strides = array<i32>} : memref<256x128xbf16, #tpu.memory_space<vmem>>, vector<256x128xbf16>,
    %c0_4 = arith.constant 0 : index
    %c0_5 = arith.constant 0 : index
    %11 = vector.load %arg2[%c0_4, %c0_5] : memref<128x128xbf16, #tpu.memory_space<vmem>>, vector<128x128xbf16>
    %cst_6 = arith.constant dense<0.000000e+00> : vector<256x128xf32>
    %12 = tpu.matmul %9, %11, %cst_6 {dimension_numbers = #tpu.dot_dimension_numbers<[1], [0], [0], [1], [0, 0, 1, 1], [], []>} : vector<256x128xbf16>, vector<128x128xbf16>, vector<256x128xf32> -> vector<256x128xf32>
    %cst_7 = arith.constant 14.2857141 : f32
    %13 = vector.broadcast %cst_7 : f32 to vector<256x128xf32>
    %14 = arith.mulf %12, %13 : vector<256x128xf32>
    %c0_8 = arith.constant 0 : index
    %c0_9 = arith.constant 0 : index
    %15 = vector.load %arg3[%c0_8, %c0_9] : memref<1x128xf32, #tpu.memory_space<vmem>>, vector<1x128xf32>
    %16 = vector.broadcast %15 : vector<1x128xf32> to vector<256x128xf32>
    %17 = arith.addf %14, %16 : vector<256x128xf32>
    %18 = arith.truncf %17 : vector<256x128xf32> to vector<256x128xbf16>
    %c0_10 = arith.constant 0 : index
    %c0_11 = arith.constant 0 : index
    %19 = vector.load %arg4[%c0_10, %c0_11] : memref<256x128xbf16, #tpu.memory_space<vmem>>, vector<256x128xbf16>
    tpu.vector_store %arg4[%c0_10, %c0_11], %18 {strides = array<i32>} : memref<256x128xbf16, #tpu.memory_space<vmem>>, vector<256x128xbf16>,
    %20 = tpu.iota {dimensions = array<i32: 1>} : vector<256x128xi32>
    %cst_12 = arith.constant dense<0xFF800000> : vector<256xf32>
    %21 = vector.multi_reduction <maximumf>, %17, %cst_12 [1] : vector<256x128xf32> to vector<256xf32>
    %22 = vector.shape_cast %21 : vector<256xf32> to vector<256x1xf32>
    %23 = vector.broadcast %22 : vector<256x1xf32> to vector<256x128xf32>
    %24 = arith.cmpf oeq, %17, %23 : vector<256x128xf32>
    %c1073741824_i32 = arith.constant 1073741824 : i32
    %25 = vector.broadcast %c1073741824_i32 : i32 to vector<256x128xi32>
    %26 = arith.select %24, %20, %25 : vector<256x128xi1>, vector<256x128xi32>
    %cst_13 = arith.constant dense<2147483647> : vector<256xi32>
    %27 = vector.multi_reduction <minsi>, %26, %cst_13 [1] : vector<256x128xi32> to vector<256xi32>
    %28 = vector.shape_cast %27 : vector<256xi32> to vector<256x1xi32>
    %29 = vector.shape_cast %28 : vector<256x1xi32> to vector<1x256xi32>
    %c0_14 = arith.constant 0 : index
    %c0_15 = arith.constant 0 : index
    %30 = vector.load %arg5[%c0_14, %c0_15] : memref<1x256xi32, #tpu.memory_space<vmem>>, vector<1x256xi32>
    tpu.vector_store %arg5[%c0_14, %c0_15], %29 {strides = array<i32>} : memref<1x256xi32, #tpu.memory_space<vmem>>, vector<1x256xi32>,
    return
  }
  func.func @transform_0(%arg0: i32) -> (i32, i32) {
    %c0_i32 = arith.constant 0 : i32
    %c0_i32_0 = arith.constant 0 : i32
    return %arg0, %c0_i32 : i32, i32
  }
  func.func @transform_1(%arg0: i32) -> (i32, i32) {
    %c0_i32 = arith.constant 0 : i32
    %c0_i32_0 = arith.constant 0 : i32
    %c0_i32_1 = arith.constant 0 : i32
    return %c0_i32, %c0_i32_0 : i32, i32
  }
  func.func @transform_2(%arg0: i32) -> (i32, i32) {
    %c0_i32 = arith.constant 0 : i32
    %c0_i32_0 = arith.constant 0 : i32
    %c0_i32_1 = arith.constant 0 : i32
    return %c0_i32, %c0_i32_0 : i32, i32
  }
  func.func @transform_3(%arg0: i32) -> (i32, i32) {
    %c0_i32 = arith.constant 0 : i32
    %c0_i32_0 = arith.constant 0 : i32
    return %arg0, %c0_i32 : i32, i32
  }
  func.func @transform_4(%arg0: i32) -> (i32, i32) {
    %c0_i32 = arith.constant 0 : i32
    %c0_i32_0 = arith.constant 0 : i32
    return %c0_i32, %arg0 : i32, i32
  }
  func.func @transform_5(%arg0: i32) -> (i32, i32) {
    %c0_i32 = arith.constant 0 : i32
    %c0_i32_0 = arith.constant 0 : i32
    return %arg0, %c0_i32 : i32, i32
  }
}

</mosaic_0001>

<llo_original>
// kernel: tpu_custom_call.1
$region0: #{tpu_custom_call.1}
  #allocation0 [shape = 'u32[]', space=smem, size = 0x4, offset = 0x4, fixed_abs, tag = 'smem constant byte address 0x4 - core index']
  #allocation1 [shape = 'u32[144,128]{1,0:T(1,128)}', space=vmem, size = 0x12000, scoped, tag = 'internal scratch']
  %s0 = inlined_call_operand.hbm [shape: f32[256,128], index: 0, kind: input, shape index: {}]
  %s1 = inlined_call_operand.hbm [shape: bf16[128,128], index: 1, kind: input, shape index: {}]
  %s2 = inlined_call_operand.vmem [shape: f32[1,128], index: 2, kind: input, shape index: {}]
  %s3 = inlined_call_operand.hbm [shape: bf16[256,128], index: 3, kind: output, shape index: {0}]
  %s4 = inlined_call_operand.hbm [shape: s32[1,256], index: 4, kind: output, shape index: {1}]
  %s5 = inlined_call_operand.hbm [shape: bf16[256,128], index: 5, kind: output, shape index: {2}]
  %6 = xla_tuple %s3, %s4, %s5
  %s7 = sld [smem:[#allocation0]]
  $region46: #{tpu_custom_call.1} parent=0
    _
  %s9 = ssub.s32 1, %s7
  %s10 = scalar_select 0, %s9, %s7
  $region1: #{tpu_custom_call.1} parent=0
    #allocation2 [shape = 'u8[131072]{0}', space=vmem, size = 0x20000, scoped, tag = 'input window, operand 0, single buffered']
    #allocation3 [shape = 's32[1]{0}', space=sflag, size = 0x4, scoped, tag = 'scoped memory for tpu_custom_call.1']
    #allocation4 [shape = 's32[1]{0}', space=sflag, size = 0x4, scoped, tag = 'scoped memory for tpu_custom_call.1']
    #allocation5 [shape = 'u8[32768]{0}', space=vmem, size = 0x8000, scoped, tag = 'input window, operand 1, single buffered']
    #allocation6 [shape = 's32[1]{0}', space=sflag, size = 0x4, scoped, tag = 'scoped memory for tpu_custom_call.1']
    #allocation7 [shape = 'u8[65536]{0}', space=vmem, size = 0x10000, scoped, tag = 'output window, operand 0, single buffered']
    #allocation8 [shape = 'u8[1024]{0}', space=vmem, size = 0x400, scoped, tag = 'output window, operand 1, single buffered']
    #allocation9 [shape = 's32[1]{0}', space=sflag, size = 0x4, scoped, tag = 'scoped memory for tpu_custom_call.1']
    #allocation10 [shape = 'u8[65536]{0}', space=vmem, size = 0x10000, scoped, tag = 'output window, operand 2, single buffered']
    %11 = vsyncpa [#allocation3], 0
    %12 = vsyncpa [#allocation6], 0
    %13 = vsyncpa [#allocation4], 0
    %14 = vsyncpa [#allocation9], 0
    // Predicated region
    $region2: #{tpu_custom_call.1} parent=1 // pred_check
      _
    $region3: #{tpu_custom_call.1} parent=1 // pred_check_branch
      %16 = sbr.rel (0) target = $region5
    $region4: #{tpu_custom_call.1} parent=1 // pred_region
      %s18 = ssub.s32 4096, 4096
      %19 = vsyncadd [#allocation3], %s18
      %s20 = sshll.u32 [#allocation2], 4
      %s21 = int_to_ptr.vmem [resolvable:$true] %s20
      %26 = dma.hbm_to_vmem [thread:$0]  %s0, 4096, %s21, [#allocation3], 128, 128, 8
    $region5: #{tpu_custom_call.1} parent=1 // pred_fallthru
      _
    // Predicated region
    $region6: #{tpu_custom_call.1} parent=1 // pred_check
      _
    $region7: #{tpu_custom_call.1} parent=1 // pred_check_branch
      %28 = sbr.rel (0) target = $region9
    $region8: #{tpu_custom_call.1} parent=1 // pred_region
      %s30 = ssub.s32 1024, 1024
      %31 = vsyncadd [#allocation6], %s30
      %s32 = sshll.u32 [#allocation5], 4
      %s33 = int_to_ptr.vmem [resolvable:$true] %s32
      %38 = dma.hbm_to_vmem [thread:$0]  %s1, 1024, %s33, [#allocation6], 64, 64, 4
    $region9: #{tpu_custom_call.1} parent=1 // pred_fallthru
      _
    // Predicated region
    $region10: #{tpu_custom_call.1} parent=1 // pred_check
      _
    $region11: #{tpu_custom_call.1} parent=1 // pred_check_branch
      %40 = sbr.rel (0) target = $region13
    $region12: #{tpu_custom_call.1} parent=1 // pred_region
      _
    $region13: #{tpu_custom_call.1} parent=1 // pred_fallthru
      _
    // Predicated region
    $region14: #{tpu_custom_call.1} parent=1 // pred_check
      _
    $region15: #{tpu_custom_call.1} parent=1 // pred_check_branch
      %42 = sbr.rel (0) target = $region17
    $region16: #{tpu_custom_call.1} parent=1 // pred_region
      %43 = dma.done [#allocation3], 4096
    $region17: #{tpu_custom_call.1} parent=1 // pred_fallthru
      _
    // Predicated region
    $region18: #{tpu_custom_call.1} parent=1 // pred_check
      _
    $region19: #{tpu_custom_call.1} parent=1 // pred_check_branch
      %45 = sbr.rel (0) target = $region21
    $region20: #{tpu_custom_call.1} parent=1 // pred_region
      %46 = dma.done [#allocation6], 1024
    $region21: #{tpu_custom_call.1} parent=1 // pred_fallthru
      _
    %v48 = vld [vmem:[#allocation2] sm:$0xff]
    %v49 = vld [vmem:[#allocation2 + $0x8] sm:$0xff]
    %v50 = vld [vmem:[#allocation2 + $0x10] sm:$0xff]
    %v51 = vld [vmem:[#allocation2 + $0x18] sm:$0xff]
    %v52 = vld [vmem:[#allocation2 + $0x20] sm:$0xff]
    %v53 = vld [vmem:[#allocation2 + $0x28] sm:$0xff]
    %v54 = vld [vmem:[#allocation2 + $0x30] sm:$0xff]
    %v55 = vld [vmem:[#allocation2 + $0x38] sm:$0xff]
    %v56 = vld [vmem:[#allocation2 + $0x40] sm:$0xff]
    %v57 = vld [vmem:[#allocation2 + $0x48] sm:$0xff]
    %v58 = vld [vmem:[#allocation2 + $0x50] sm:$0xff]
    %v59 = vld [vmem:[#allocation2 + $0x58] sm:$0xff]
    %v60 = vld [vmem:[#allocation2 + $0x60] sm:$0xff]
    %v61 = vld [vmem:[#allocation2 + $0x68] sm:$0xff]
    %v62 = vld [vmem:[#allocation2 + $0x70] sm:$0xff]
    %v63 = vld [vmem:[#allocation2 + $0x78] sm:$0xff]
    %v64 = vld [vmem:[#allocation2 + $0x80] sm:$0xff]
    %v65 = vld [vmem:[#allocation2 + $0x88] sm:$0xff]
    %v66 = vld [vmem:[#allocation2 + $0x90] sm:$0xff]
    %v67 = vld [vmem:[#allocation2 + $0x98] sm:$0xff]
    %v68 = vld [vmem:[#allocation2 + $0xa0] sm:$0xff]
    %v69 = vld [vmem:[#allocation2 + $0xa8] sm:$0xff]
    %v70 = vld [vmem:[#allocation2 + $0xb0] sm:$0xff]
    %v71 = vld [vmem:[#allocation2 + $0xb8] sm:$0xff]
    %v72 = vld [vmem:[#allocation2 + $0xc0] sm:$0xff]
    %v73 = vld [vmem:[#allocation2 + $0xc8] sm:$0xff]
    %v74 = vld [vmem:[#allocation2 + $0xd0] sm:$0xff]
    %v75 = vld [vmem:[#allocation2 + $0xd8] sm:$0xff]
    %v76 = vld [vmem:[#allocation2 + $0xe0] sm:$0xff]
    %v77 = vld [vmem:[#allocation2 + $0xe8] sm:$0xff]
    %v78 = vld [vmem:[#allocation2 + $0xf0] sm:$0xff]
    %v79 = vld [vmem:[#allocation2 + $0xf8] sm:$0xff]
    %v80 = vmul.f32 %v48, %v48
    %v81 = vmul.f32 %v49, %v49
    %v82 = vmul.f32 %v50, %v50
    %v83 = vmul.f32 %v51, %v51
    %v84 = vmul.f32 %v52, %v52
    %v85 = vmul.f32 %v53, %v53
    %v86 = vmul.f32 %v54, %v54
    %v87 = vmul.f32 %v55, %v55
    %v88 = vmul.f32 %v56, %v56
    %v89 = vmul.f32 %v57, %v57
    %v90 = vmul.f32 %v58, %v58
    %v91 = vmul.f32 %v59, %v59
    %v92 = vmul.f32 %v60, %v60
    %v93 = vmul.f32 %v61, %v61
    %v94 = vmul.f32 %v62, %v62
    %v95 = vmul.f32 %v63, %v63
    %v96 = vmul.f32 %v64, %v64
    %v97 = vmul.f32 %v65, %v65
    %v98 = vmul.f32 %v66, %v66
    %v99 = vmul.f32 %v67, %v67
    %v100 = vmul.f32 %v68, %v68
    %v101 = vmul.f32 %v69, %v69
    %v102 = vmul.f32 %v70, %v70
    %v103 = vmul.f32 %v71, %v71
    %v104 = vmul.f32 %v72, %v72
    %v105 = vmul.f32 %v73, %v73
    %v106 = vmul.f32 %v74, %v74
    %v107 = vmul.f32 %v75, %v75
    %v108 = vmul.f32 %v76, %v76
    %v109 = vmul.f32 %v77, %v77
    %v110 = vmul.f32 %v78, %v78
    %v111 = vmul.f32 %v79, %v79
    %112 = vadd.xlane.f32.xlu0 %v80
    %v113 = vpop.xlane.xlu0 %112
    %114 = vadd.xlane.f32.xlu0 %v81
    %v115 = vpop.xlane.xlu0 %114
    %116 = vadd.xlane.f32.xlu0 %v82
    %v117 = vpop.xlane.xlu0 %116
    %118 = vadd.xlane.f32.xlu0 %v83
    %v119 = vpop.xlane.xlu0 %118
    %120 = vadd.xlane.f32.xlu0 %v84
    %v121 = vpop.xlane.xlu0 %120
    %122 = vadd.xlane.f32.xlu0 %v85
    %v123 = vpop.xlane.xlu0 %122
    %124 = vadd.xlane.f32.xlu0 %v86
    %v125 = vpop.xlane.xlu0 %124
    %126 = vadd.xlane.f32.xlu0 %v87
    %v127 = vpop.xlane.xlu0 %126
    %128 = vadd.xlane.f32.xlu0 %v88
    %v129 = vpop.xlane.xlu0 %128
    %130 = vadd.xlane.f32.xlu0 %v89
    %v131 = vpop.xlane.xlu0 %130
    %132 = vadd.xlane.f32.xlu0 %v90
    %v133 = vpop.xlane.xlu0 %132
    %134 = vadd.xlane.f32.xlu0 %v91
    %v135 = vpop.xlane.xlu0 %134
    %136 = vadd.xlane.f32.xlu0 %v92
    %v137 = vpop.xlane.xlu0 %136
    %138 = vadd.xlane.f32.xlu0 %v93
    %v139 = vpop.xlane.xlu0 %138
    %140 = vadd.xlane.f32.xlu0 %v94
    %v141 = vpop.xlane.xlu0 %140
    %142 = vadd.xlane.f32.xlu0 %v95
    %v143 = vpop.xlane.xlu0 %142
    %144 = vadd.xlane.f32.xlu0 %v96
    %v145 = vpop.xlane.xlu0 %144
    %146 = vadd.xlane.f32.xlu0 %v97
    %v147 = vpop.xlane.xlu0 %146
    %148 = vadd.xlane.f32.xlu0 %v98
    %v149 = vpop.xlane.xlu0 %148
    %150 = vadd.xlane.f32.xlu0 %v99
    %v151 = vpop.xlane.xlu0 %150
    %152 = vadd.xlane.f32.xlu0 %v100
    %v153 = vpop.xlane.xlu0 %152
    %154 = vadd.xlane.f32.xlu0 %v101
    %v155 = vpop.xlane.xlu0 %154
    %156 = vadd.xlane.f32.xlu0 %v102
    %v157 = vpop.xlane.xlu0 %156
    %158 = vadd.xlane.f32.xlu0 %v103
    %v159 = vpop.xlane.xlu0 %158
    %160 = vadd.xlane.f32.xlu0 %v104
    %v161 = vpop.xlane.xlu0 %160
    %162 = vadd.xlane.f32.xlu0 %v105
    %v163 = vpop.xlane.xlu0 %162
    %164 = vadd.xlane.f32.xlu0 %v106
    %v165 = vpop.xlane.xlu0 %164
    %166 = vadd.xlane.f32.xlu0 %v107
    %v167 = vpop.xlane.xlu0 %166
    %168 = vadd.xlane.f32.xlu0 %v108
    %v169 = vpop.xlane.xlu0 %168
    %170 = vadd.xlane.f32.xlu0 %v109
    %v171 = vpop.xlane.xlu0 %170
    %172 = vadd.xlane.f32.xlu0 %v110
    %v173 = vpop.xlane.xlu0 %172
    %174 = vadd.xlane.f32.xlu0 %v111
    %v175 = vpop.xlane.xlu0 %174
    %v176 = vmax.f32 %v113, 1e-24
    %v177 = vmax.f32 %v115, 1e-24
    %v178 = vmax.f32 %v117, 1e-24
    %v179 = vmax.f32 %v119, 1e-24
    %v180 = vmax.f32 %v121, 1e-24
    %v181 = vmax.f32 %v123, 1e-24
    %v182 = vmax.f32 %v125, 1e-24
    %v183 = vmax.f32 %v127, 1e-24
    %v184 = vmax.f32 %v129, 1e-24
    %v185 = vmax.f32 %v131, 1e-24
    %v186 = vmax.f32 %v133, 1e-24
    %v187 = vmax.f32 %v135, 1e-24
    %v188 = vmax.f32 %v137, 1e-24
    %v189 = vmax.f32 %v139, 1e-24
    %v190 = vmax.f32 %v141, 1e-24
    %v191 = vmax.f32 %v143, 1e-24
    %v192 = vmax.f32 %v145, 1e-24
    %v193 = vmax.f32 %v147, 1e-24
    %v194 = vmax.f32 %v149, 1e-24
    %v195 = vmax.f32 %v151, 1e-24
    %v196 = vmax.f32 %v153, 1e-24
    %v197 = vmax.f32 %v155, 1e-24
    %v198 = vmax.f32 %v157, 1e-24
    %v199 = vmax.f32 %v159, 1e-24
    %v200 = vmax.f32 %v161, 1e-24
    %v201 = vmax.f32 %v163, 1e-24
    %v202 = vmax.f32 %v165, 1e-24
    %v203 = vmax.f32 %v167, 1e-24
    %v204 = vmax.f32 %v169, 1e-24
    %v205 = vmax.f32 %v171, 1e-24
    %v206 = vmax.f32 %v173, 1e-24
    %v207 = vmax.f32 %v175, 1e-24
    %v208 = vrsqrt.pop %v176
    %v209 = vrsqrt.pop %v177
    %v210 = vrsqrt.pop %v178
    %v211 = vrsqrt.pop %v179
    %v212 = vrsqrt.pop %v180
    %v213 = vrsqrt.pop %v181
    %v214 = vrsqrt.pop %v182
    %v215 = vrsqrt.pop %v183
    %v216 = vrsqrt.pop %v184
    %v217 = vrsqrt.pop %v185
    %v218 = vrsqrt.pop %v186
    %v219 = vrsqrt.pop %v187
    %v220 = vrsqrt.pop %v188
    %v221 = vrsqrt.pop %v189
    %v222 = vrsqrt.pop %v190
    %v223 = vrsqrt.pop %v191
    %v224 = vrsqrt.pop %v192
    %v225 = vrsqrt.pop %v193
    %v226 = vrsqrt.pop %v194
    %v227 = vrsqrt.pop %v195
    %v228 = vrsqrt.pop %v196
    %v229 = vrsqrt.pop %v197
    %v230 = vrsqrt.pop %v198
    %v231 = vrsqrt.pop %v199
    %v232 = vrsqrt.pop %v200
    %v233 = vrsqrt.pop %v201
    %v234 = vrsqrt.pop %v202
    %v235 = vrsqrt.pop %v203
    %v236 = vrsqrt.pop %v204
    %v237 = vrsqrt.pop %v205
    %v238 = vrsqrt.pop %v206
    %v239 = vrsqrt.pop %v207
    %v240 = vmul.f32 %v48, %v208
    %v241 = vmul.f32 %v49, %v209
    %v242 = vmul.f32 %v50, %v210
    %v243 = vmul.f32 %v51, %v211
    %v244 = vmul.f32 %v52, %v212
    %v245 = vmul.f32 %v53, %v213
    %v246 = vmul.f32 %v54, %v214
    %v247 = vmul.f32 %v55, %v215
    %v248 = vmul.f32 %v56, %v216
    %v249 = vmul.f32 %v57, %v217
    %v250 = vmul.f32 %v58, %v218
    %v251 = vmul.f32 %v59, %v219
    %v252 = vmul.f32 %v60, %v220
    %v253 = vmul.f32 %v61, %v221
    %v254 = vmul.f32 %v62, %v222
    %v255 = vmul.f32 %v63, %v223
    %v256 = vmul.f32 %v64, %v224
    %v257 = vmul.f32 %v65, %v225
    %v258 = vmul.f32 %v66, %v226
    %v259 = vmul.f32 %v67, %v227
    %v260 = vmul.f32 %v68, %v228
    %v261 = vmul.f32 %v69, %v229
    %v262 = vmul.f32 %v70, %v230
    %v263 = vmul.f32 %v71, %v231
    %v264 = vmul.f32 %v72, %v232
    %v265 = vmul.f32 %v73, %v233
    %v266 = vmul.f32 %v74, %v234
    %v267 = vmul.f32 %v75, %v235
    %v268 = vmul.f32 %v76, %v236
    %v269 = vmul.f32 %v77, %v237
    %v270 = vmul.f32 %v78, %v238
    %v271 = vmul.f32 %v79, %v239
    %v272 = vpack.c.bf16 %v241, %v240
    %v273 = vpack.c.bf16 %v243, %v242
    %v274 = vpack.c.bf16 %v245, %v244
    %v275 = vpack.c.bf16 %v247, %v246
    %v276 = vpack.c.bf16 %v249, %v248
    %v277 = vpack.c.bf16 %v251, %v250
    %v278 = vpack.c.bf16 %v253, %v252
    %v279 = vpack.c.bf16 %v255, %v254
    %v280 = vpack.c.bf16 %v257, %v256
    %v281 = vpack.c.bf16 %v259, %v258
    %v282 = vpack.c.bf16 %v261, %v260
    %v283 = vpack.c.bf16 %v263, %v262
    %v284 = vpack.c.bf16 %v265, %v264
    %v285 = vpack.c.bf16 %v267, %v266
    %v286 = vpack.c.bf16 %v269, %v268
    %v287 = vpack.c.bf16 %v271, %v270
    %v304 = vunpack.c.l.b16 %v272
    %v305 = vunpack.c.h.b16 %v272
    %v306 = vunpack.c.l.b16 %v273
    %v307 = vunpack.c.h.b16 %v273
    %v308 = vunpack.c.l.b16 %v274
    %v309 = vunpack.c.h.b16 %v274
    %v310 = vunpack.c.l.b16 %v275
    %v311 = vunpack.c.h.b16 %v275
    %v312 = vunpack.c.l.b16 %v276
    %v313 = vunpack.c.h.b16 %v276
    %v314 = vunpack.c.l.b16 %v277
    %v315 = vunpack.c.h.b16 %v277
    %v316 = vunpack.c.l.b16 %v278
    %v317 = vunpack.c.h.b16 %v278
    %v318 = vunpack.c.l.b16 %v279
    %v319 = vunpack.c.h.b16 %v279
    %v320 = vunpack.c.l.b16 %v280
    %v321 = vunpack.c.h.b16 %v280
    %v322 = vunpack.c.l.b16 %v281
    %v323 = vunpack.c.h.b16 %v281
    %v324 = vunpack.c.l.b16 %v282
    %v325 = vunpack.c.h.b16 %v282
    %v326 = vunpack.c.l.b16 %v283
    %v327 = vunpack.c.h.b16 %v283
    %v328 = vunpack.c.l.b16 %v284
    %v329 = vunpack.c.h.b16 %v284
    %v330 = vunpack.c.l.b16 %v285
    %v331 = vunpack.c.h.b16 %v285
    %v332 = vunpack.c.l.b16 %v286
    %v333 = vunpack.c.h.b16 %v286
    %v334 = vunpack.c.l.b16 %v287
    %v335 = vunpack.c.h.b16 %v287
    %v336 = vpack.c.b16 %v304, %v304
    %v337 = vpack.c.b16 %v305, %v305
    %v338 = vpack.c.b16 %v306, %v306
    %v339 = vpack.c.b16 %v307, %v307
    %v340 = vpack.c.b16 %v308, %v308
    %v341 = vpack.c.b16 %v309, %v309
    %v342 = vpack.c.b16 %v310, %v310
    %v343 = vpack.c.b16 %v311, %v311
    %v344 = vpack.c.b16 %v312, %v312
    %v345 = vpack.c.b16 %v313, %v313
    %v346 = vpack.c.b16 %v314, %v314
    %v347 = vpack.c.b16 %v315, %v315
    %v348 = vpack.c.b16 %v316, %v316
    %v349 = vpack.c.b16 %v317, %v317
    %v350 = vpack.c.b16 %v318, %v318
    %v351 = vpack.c.b16 %v319, %v319
    %v352 = vpack.c.b16 %v320, %v320
    %v353 = vpack.c.b16 %v321, %v321
    %v354 = vpack.c.b16 %v322, %v322
    %v355 = vpack.c.b16 %v323, %v323
    %v356 = vpack.c.b16 %v324, %v324
    %v357 = vpack.c.b16 %v325, %v325
    %v358 = vpack.c.b16 %v326, %v326
    %v359 = vpack.c.b16 %v327, %v327
    %v360 = vpack.c.b16 %v328, %v328
    %v361 = vpack.c.b16 %v329, %v329
    %v362 = vpack.c.b16 %v330, %v330
    %v363 = vpack.c.b16 %v331, %v331
    %v364 = vpack.c.b16 %v332, %v332
    %v365 = vpack.c.b16 %v333, %v333
    %v366 = vpack.c.b16 %v334, %v334
    %v367 = vpack.c.b16 %v335, %v335
    %400 = vst [vmem:[#allocation10] sm:$0xf] %v336
    %401 = vst [vmem:[#allocation10 + $0x4] sm:$0xf] %v337
    %402 = vst [vmem:[#allocation10 + $0x8] sm:$0xf] %v338
    %403 = vst [vmem:[#allocation10 + $0xc] sm:$0xf] %v339
    %404 = vst [vmem:[#allocation10 + $0x10] sm:$0xf] %v340
    %405 = vst [vmem:[#allocation10 + $0x14] sm:$0xf] %v341
    %406 = vst [vmem:[#allocation10 + $0x18] sm:$0xf] %v342
    %407 = vst [vmem:[#allocation10 + $0x1c] sm:$0xf] %v343
    %408 = vst [vmem:[#allocation10 + $0x20] sm:$0xf] %v344
    %409 = vst [vmem:[#allocation10 + $0x24] sm:$0xf] %v345
    %410 = vst [vmem:[#allocation10 + $0x28] sm:$0xf] %v346
    %411 = vst [vmem:[#allocation10 + $0x2c] sm:$0xf] %v347
    %412 = vst [vmem:[#allocation10 + $0x30] sm:$0xf] %v348
    %413 = vst [vmem:[#allocation10 + $0x34] sm:$0xf] %v349
    %414 = vst [vmem:[#allocation10 + $0x38] sm:$0xf] %v350
    %415 = vst [vmem:[#allocation10 + $0x3c] sm:$0xf] %v351
    %416 = vst [vmem:[#allocation10 + $0x40] sm:$0xf] %v352
    %417 = vst [vmem:[#allocation10 + $0x44] sm:$0xf] %v353
    %418 = vst [vmem:[#allocation10 + $0x48] sm:$0xf] %v354
    %419 = vst [vmem:[#allocation10 + $0x4c] sm:$0xf] %v355
    %420 = vst [vmem:[#allocation10 + $0x50] sm:$0xf] %v356
    %421 = vst [vmem:[#allocation10 + $0x54] sm:$0xf] %v357
    %422 = vst [vmem:[#allocation10 + $0x58] sm:$0xf] %v358
    %423 = vst [vmem:[#allocation10 + $0x5c] sm:$0xf] %v359
    %424 = vst [vmem:[#allocation10 + $0x60] sm:$0xf] %v360
    %425 = vst [vmem:[#allocation10 + $0x64] sm:$0xf] %v361
    %426 = vst [vmem:[#allocation10 + $0x68] sm:$0xf] %v362
    %427 = vst [vmem:[#allocation10 + $0x6c] sm:$0xf] %v363
    %428 = vst [vmem:[#allocation10 + $0x70] sm:$0xf] %v364
    %429 = vst [vmem:[#allocation10 + $0x74] sm:$0xf] %v365
    %430 = vst [vmem:[#allocation10 + $0x78] sm:$0xf] %v366
    %431 = vst [vmem:[#allocation10 + $0x7c] sm:$0xf] %v367
    %v432 = vld [vmem:[#allocation5] sm:$0xf]
    %v433 = vld [vmem:[#allocation5 + $0x4] sm:$0xf]
    %v434 = vld [vmem:[#allocation5 + $0x8] sm:$0xf]
    %v435 = vld [vmem:[#allocation5 + $0xc] sm:$0xf]
    %v436 = vld [vmem:[#allocation5 + $0x10] sm:$0xf]
    %v437 = vld [vmem:[#allocation5 + $0x14] sm:$0xf]
    %v438 = vld [vmem:[#allocation5 + $0x18] sm:$0xf]
    %v439 = vld [vmem:[#allocation5 + $0x1c] sm:$0xf]
    %v440 = vld [vmem:[#allocation5 + $0x20] sm:$0xf]
    %v441 = vld [vmem:[#allocation5 + $0x24] sm:$0xf]
    %v442 = vld [vmem:[#allocation5 + $0x28] sm:$0xf]
    %v443 = vld [vmem:[#allocation5 + $0x2c] sm:$0xf]
    %v444 = vld [vmem:[#allocation5 + $0x30] sm:$0xf]
    %v445 = vld [vmem:[#allocation5 + $0x34] sm:$0xf]
    %v446 = vld [vmem:[#allocation5 + $0x38] sm:$0xf]
    %v447 = vld [vmem:[#allocation5 + $0x3c] sm:$0xf]
    %v464 = vunpack.c.l.b16 %v432
    %v465 = vunpack.c.l.b16 %v433
    %v466 = vunpack.c.l.b16 %v434
    %v467 = vunpack.c.l.b16 %v435
    %v468 = vunpack.c.l.b16 %v436
    %v469 = vunpack.c.l.b16 %v437
    %v470 = vunpack.c.l.b16 %v438
    %v471 = vunpack.c.l.b16 %v439
    %v472 = vunpack.c.l.b16 %v440
    %v473 = vunpack.c.l.b16 %v441
    %v474 = vunpack.c.l.b16 %v442
    %v475 = vunpack.c.l.b16 %v443
    %v476 = vunpack.c.l.b16 %v444
    %v477 = vunpack.c.l.b16 %v445
    %v478 = vunpack.c.l.b16 %v446
    %v479 = vunpack.c.l.b16 %v447
    %v480 = vpack.c.b16 %v465, %v464
    %v481 = vpack.c.b16 %v467, %v466
    %v482 = vpack.c.b16 %v469, %v468
    %v483 = vpack.c.b16 %v471, %v470
    %v484 = vpack.c.b16 %v473, %v472
    %v485 = vpack.c.b16 %v475, %v474
    %v486 = vpack.c.b16 %v477, %v476
    %v487 = vpack.c.b16 %v479, %v478
    %496 = vmatprep.subr.bf16.mxu0 0
    %497 = vmatpush1.bf16.msra.mxu0 %v480
    %498 = vmatprep.subr.bf16.mxu0 0
    %499 = vmatpush1.bf16.msra.mxu0 %v481
    %500 = vmatprep.subr.bf16.mxu0 0
    %501 = vmatpush1.bf16.msra.mxu0 %v482
    %502 = vmatprep.subr.bf16.mxu0 0
    %503 = vmatpush1.bf16.msra.mxu0 %v483
    %504 = vmatprep.subr.bf16.mxu0 0
    %505 = vmatpush1.bf16.msra.mxu0 %v484
    %506 = vmatprep.subr.bf16.mxu0 0
    %507 = vmatpush1.bf16.msra.mxu0 %v485
    %508 = vmatprep.subr.bf16.mxu0 0
    %509 = vmatpush1.bf16.msra.mxu0 %v486
    %510 = vmatprep.subr.bf16.mxu0 0
    %511 = vmatpush1.bf16.msra.mxu0 %v487
    %512 = vmatprep.subr.bf16.mxu0 0
    %513 = vmatpush1.bf16.msra.mxu0 0
    %514 = vmatprep.subr.bf16.mxu0 0
    %515 = vmatpush1.bf16.msra.mxu0 0
    %516 = vmatprep.subr.bf16.mxu0 0
    %517 = vmatpush1.bf16.msra.mxu0 0
    %518 = vmatprep.subr.bf16.mxu0 0
    %519 = vmatpush1.bf16.msra.mxu0 0
    %520 = vmatprep.subr.bf16.mxu0 0
    %521 = vmatpush1.bf16.msra.mxu0 0
    %522 = vmatprep.subr.bf16.mxu0 0
    %523 = vmatpush1.bf16.msra.mxu0 0
    %524 = vmatprep.subr.bf16.mxu0 0
    %525 = vmatpush1.bf16.msra.mxu0 0
    %526 = vmatprep.subr.bf16.mxu0 0
    %527 = vmatpush1.bf16.msra.mxu0 0
    %528 = vmatprep.mubr.bf16.mxu0 0
    %529 = vmatmul.mubr.bf16.gmra.mrb[0].mxu0 %v272
    %v530 = vpop.f32.mrb[0].mxu0
    %v531 = vadd.f32 0.0, %v530
    %v532 = vpop.f32.mrb[0].mxu0
    %v533 = vpop.f32.mrb[0].mxu0
    %v534 = vadd.f32 0.0, %v533
    %v535 = vpop.f32.mrb[0].mxu0
    %536 = vmatprep.mubr.bf16.mxu0 0
    %537 = vmatmul.mubr.bf16.gmra.mrb[0].mxu0 %v273
    %v538 = vpop.f32.mrb[0].mxu0
    %v539 = vadd.f32 0.0, %v538
    %v540 = vpop.f32.mrb[0].mxu0
    %v541 = vpop.f32.mrb[0].mxu0
    %v542 = vadd.f32 0.0, %v541
    %v543 = vpop.f32.mrb[0].mxu0
    %544 = vmatprep.mubr.bf16.mxu0 0
    %545 = vmatmul.mubr.bf16.gmra.mrb[0].mxu0 %v274
    %v546 = vpop.f32.mrb[0].mxu0
    %v547 = vadd.f32 0.0, %v546
    %v548 = vpop.f32.mrb[0].mxu0
    %v549 = vpop.f32.mrb[0].mxu0
    %v550 = vadd.f32 0.0, %v549
    %v551 = vpop.f32.mrb[0].mxu0
    %552 = vmatprep.mubr.bf16.mxu0 0
    %553 = vmatmul.mubr.bf16.gmra.mrb[0].mxu0 %v275
    %v554 = vpop.f32.mrb[0].mxu0
    %v555 = vadd.f32 0.0, %v554
    %v556 = vpop.f32.mrb[0].mxu0
    %v557 = vpop.f32.mrb[0].mxu0
    %v558 = vadd.f32 0.0, %v557
    %v559 = vpop.f32.mrb[0].mxu0
    %560 = vmatprep.mubr.bf16.mxu0 0
    %561 = vmatmul.mubr.bf16.gmra.mrb[0].mxu0 %v276
    %v562 = vpop.f32.mrb[0].mxu0
    %v563 = vadd.f32 0.0, %v562
    %v564 = vpop.f32.mrb[0].mxu0
    %v565 = vpop.f32.mrb[0].mxu0
    %v566 = vadd.f32 0.0, %v565
    %v567 = vpop.f32.mrb[0].mxu0
    %568 = vmatprep.mubr.bf16.mxu0 0
    %569 = vmatmul.mubr.bf16.gmra.mrb[0].mxu0 %v277
    %v570 = vpop.f32.mrb[0].mxu0
    %v571 = vadd.f32 0.0, %v570
    %v572 = vpop.f32.mrb[0].mxu0
    %v573 = vpop.f32.mrb[0].mxu0
    %v574 = vadd.f32 0.0, %v573
    %v575 = vpop.f32.mrb[0].mxu0
    %576 = vmatprep.mubr.bf16.mxu0 0
    %577 = vmatmul.mubr.bf16.gmra.mrb[0].mxu0 %v278
    %v578 = vpop.f32.mrb[0].mxu0
    %v579 = vadd.f32 0.0, %v578
    %v580 = vpop.f32.mrb[0].mxu0
    %v581 = vpop.f32.mrb[0].mxu0
    %v582 = vadd.f32 0.0, %v581
    %v583 = vpop.f32.mrb[0].mxu0
    %584 = vmatprep.mubr.bf16.mxu0 0
    %585 = vmatmul.mubr.bf16.gmra.mrb[0].mxu0 %v279
    %v586 = vpop.f32.mrb[0].mxu0
    %v587 = vadd.f32 0.0, %v586
    %v588 = vpop.f32.mrb[0].mxu0
    %v589 = vpop.f32.mrb[0].mxu0
    %v590 = vadd.f32 0.0, %v589
    %v591 = vpop.f32.mrb[0].mxu0
    %592 = vmatprep.mubr.bf16.mxu0 0
    %593 = vmatmul.mubr.bf16.gmra.mrb[0].mxu0 %v280
    %v594 = vpop.f32.mrb[0].mxu0
    %v595 = vadd.f32 0.0, %v594
    %v596 = vpop.f32.mrb[0].mxu0
    %v597 = vpop.f32.mrb[0].mxu0
    %v598 = vadd.f32 0.0, %v597
    %v599 = vpop.f32.mrb[0].mxu0
    %600 = vmatprep.mubr.bf16.mxu0 0
    %601 = vmatmul.mubr.bf16.gmra.mrb[0].mxu0 %v281
    %v602 = vpop.f32.mrb[0].mxu0
    %v603 = vadd.f32 0.0, %v602
    %v604 = vpop.f32.mrb[0].mxu0
    %v605 = vpop.f32.mrb[0].mxu0
    %v606 = vadd.f32 0.0, %v605
    %v607 = vpop.f32.mrb[0].mxu0
    %608 = vmatprep.mubr.bf16.mxu0 0
    %609 = vmatmul.mubr.bf16.gmra.mrb[0].mxu0 %v282
    %v610 = vpop.f32.mrb[0].mxu0
    %v611 = vadd.f32 0.0, %v610
    %v612 = vpop.f32.mrb[0].mxu0
    %v613 = vpop.f32.mrb[0].mxu0
    %v614 = vadd.f32 0.0, %v613
    %v615 = vpop.f32.mrb[0].mxu0
    %616 = vmatprep.mubr.bf16.mxu0 0
    %617 = vmatmul.mubr.bf16.gmra.mrb[0].mxu0 %v283
    %v618 = vpop.f32.mrb[0].mxu0
    %v619 = vadd.f32 0.0, %v618
    %v620 = vpop.f32.mrb[0].mxu0
    %v621 = vpop.f32.mrb[0].mxu0
    %v622 = vadd.f32 0.0, %v621
    %v623 = vpop.f32.mrb[0].mxu0
    %624 = vmatprep.mubr.bf16.mxu0 0
    %625 = vmatmul.mubr.bf16.gmra.mrb[0].mxu0 %v284
    %v626 = vpop.f32.mrb[0].mxu0
    %v627 = vadd.f32 0.0, %v626
    %v628 = vpop.f32.mrb[0].mxu0
    %v629 = vpop.f32.mrb[0].mxu0
    %v630 = vadd.f32 0.0, %v629
    %v631 = vpop.f32.mrb[0].mxu0
    %632 = vmatprep.mubr.bf16.mxu0 0
    %633 = vmatmul.mubr.bf16.gmra.mrb[0].mxu0 %v285
    %v634 = vpop.f32.mrb[0].mxu0
    %v635 = vadd.f32 0.0, %v634
    %v636 = vpop.f32.mrb[0].mxu0
    %v637 = vpop.f32.mrb[0].mxu0
    %v638 = vadd.f32 0.0, %v637
    %v639 = vpop.f32.mrb[0].mxu0
    %640 = vmatprep.mubr.bf16.mxu0 0
    %641 = vmatmul.mubr.bf16.gmra.mrb[0].mxu0 %v286
    %v642 = vpop.f32.mrb[0].mxu0
    %v643 = vadd.f32 0.0, %v642
    %v644 = vpop.f32.mrb[0].mxu0
    %v645 = vpop.f32.mrb[0].mxu0
    %v646 = vadd.f32 0.0, %v645
    %v647 = vpop.f32.mrb[0].mxu0
    %648 = vmatprep.mubr.bf16.mxu0 0
    %649 = vmatmul.mubr.bf16.gmra.mrb[0].mxu0 %v287
    %v650 = vpop.f32.mrb[0].mxu0
    %v651 = vadd.f32 0.0, %v650
    %v652 = vpop.f32.mrb[0].mxu0
    %v653 = vpop.f32.mrb[0].mxu0
    %v654 = vadd.f32 0.0, %v653
    %v655 = vpop.f32.mrb[0].mxu0
    %656 = vdwg.mxu0
    %v657 = vmul.f32 %v531, 14.285714
    %v658 = vmul.f32 %v534, 14.285714
    %v659 = vmul.f32 %v539, 14.285714
    %v660 = vmul.f32 %v542, 14.285714
    %v661 = vmul.f32 %v547, 14.285714
    %v662 = vmul.f32 %v550, 14.285714
    %v663 = vmul.f32 %v555, 14.285714
    %v664 = vmul.f32 %v558, 14.285714
    %v665 = vmul.f32 %v563, 14.285714
    %v666 = vmul.f32 %v566, 14.285714
    %v667 = vmul.f32 %v571, 14.285714
    %v668 = vmul.f32 %v574, 14.285714
    %v669 = vmul.f32 %v579, 14.285714
    %v670 = vmul.f32 %v582, 14.285714
    %v671 = vmul.f32 %v587, 14.285714
    %v672 = vmul.f32 %v590, 14.285714
    %v673 = vmul.f32 %v595, 14.285714
    %v674 = vmul.f32 %v598, 14.285714
    %v675 = vmul.f32 %v603, 14.285714
    %v676 = vmul.f32 %v606, 14.285714
    %v677 = vmul.f32 %v611, 14.285714
    %v678 = vmul.f32 %v614, 14.285714
    %v679 = vmul.f32 %v619, 14.285714
    %v680 = vmul.f32 %v622, 14.285714
    %v681 = vmul.f32 %v627, 14.285714
    %v682 = vmul.f32 %v630, 14.285714
    %v683 = vmul.f32 %v635, 14.285714
    %v684 = vmul.f32 %v638, 14.285714
    %v685 = vmul.f32 %v643, 14.285714
    %v686 = vmul.f32 %v646, 14.285714
    %v687 = vmul.f32 %v651, 14.285714
    %v688 = vmul.f32 %v654, 14.285714
    %v689 = vld [vmem:[%s2] sm:$0x1]
    %v691 = vlaneseq
    %v692 = vshrl.u32 %v691, 7
    %v693 = vsub.s32 0, %v692
    %v694 = vrot.slane %v689, %v693
    %v696 = vadd.f32 %v657, %v694
    %v697 = vadd.f32 %v658, %v694
    %v698 = vadd.f32 %v659, %v694
    %v699 = vadd.f32 %v660, %v694
    %v700 = vadd.f32 %v661, %v694
    %v701 = vadd.f32 %v662, %v694
    %v702 = vadd.f32 %v663, %v694
    %v703 = vadd.f32 %v664, %v694
    %v704 = vadd.f32 %v665, %v694
    %v705 = vadd.f32 %v666, %v694
    %v706 = vadd.f32 %v667, %v694
    %v707 = vadd.f32 %v668, %v694
    %v708 = vadd.f32 %v669, %v694
    %v709 = vadd.f32 %v670, %v694
    %v710 = vadd.f32 %v671, %v694
    %v711 = vadd.f32 %v672, %v694
    %v712 = vadd.f32 %v673, %v694
    %v713 = vadd.f32 %v674, %v694
    %v714 = vadd.f32 %v675, %v694
    %v715 = vadd.f32 %v676, %v694
    %v716 = vadd.f32 %v677, %v694
    %v717 = vadd.f32 %v678, %v694
    %v718 = vadd.f32 %v679, %v694
    %v719 = vadd.f32 %v680, %v694
    %v720 = vadd.f32 %v681, %v694
    %v721 = vadd.f32 %v682, %v694
    %v722 = vadd.f32 %v683, %v694
    %v723 = vadd.f32 %v684, %v694
    %v724 = vadd.f32 %v685, %v694
    %v725 = vadd.f32 %v686, %v694
    %v726 = vadd.f32 %v687, %v694
    %v727 = vadd.f32 %v688, %v694
    %v728 = vpack.c.bf16 %v697, %v696
    %v729 = vpack.c.bf16 %v699, %v698
    %v730 = vpack.c.bf16 %v701, %v700
    %v731 = vpack.c.bf16 %v703, %v702
    %v732 = vpack.c.bf16 %v705, %v704
    %v733 = vpack.c.bf16 %v707, %v706
    %v734 = vpack.c.bf16 %v709, %v708
    %v735 = vpack.c.bf16 %v711, %v710
    %v736 = vpack.c.bf16 %v713, %v712
    %v737 = vpack.c.bf16 %v715, %v714
    %v738 = vpack.c.bf16 %v717, %v716
    %v739 = vpack.c.bf16 %v719, %v718
    %v740 = vpack.c.bf16 %v721, %v720
    %v741 = vpack.c.bf16 %v723, %v722
    %v742 = vpack.c.bf16 %v725, %v724
    %v743 = vpack.c.bf16 %v727, %v726
    %v760 = vunpack.c.l.b16 %v728
    %v761 = vunpack.c.h.b16 %v728
    %v762 = vunpack.c.l.b16 %v729
    %v763 = vunpack.c.h.b16 %v729
    %v764 = vunpack.c.l.b16 %v730
    %v765 = vunpack.c.h.b16 %v730
    %v766 = vunpack.c.l.b16 %v731
    %v767 = vunpack.c.h.b16 %v731
    %v768 = vunpack.c.l.b16 %v732
    %v769 = vunpack.c.h.b16 %v732
    %v770 = vunpack.c.l.b16 %v733
    %v771 = vunpack.c.h.b16 %v733
    %v772 = vunpack.c.l.b16 %v734
    %v773 = vunpack.c.h.b16 %v734
    %v774 = vunpack.c.l.b16 %v735
    %v775 = vunpack.c.h.b16 %v735
    %v776 = vunpack.c.l.b16 %v736
    %v777 = vunpack.c.h.b16 %v736
    %v778 = vunpack.c.l.b16 %v737
    %v779 = vunpack.c.h.b16 %v737
    %v780 = vunpack.c.l.b16 %v738
    %v781 = vunpack.c.h.b16 %v738
    %v782 = vunpack.c.l.b16 %v739
    %v783 = vunpack.c.h.b16 %v739
    %v784 = vunpack.c.l.b16 %v740
    %v785 = vunpack.c.h.b16 %v740
    %v786 = vunpack.c.l.b16 %v741
    %v787 = vunpack.c.h.b16 %v741
    %v788 = vunpack.c.l.b16 %v742
    %v789 = vunpack.c.h.b16 %v742
    %v790 = vunpack.c.l.b16 %v743
    %v791 = vunpack.c.h.b16 %v743
    %v792 = vpack.c.b16 %v760, %v760
    %v793 = vpack.c.b16 %v761, %v761
    %v794 = vpack.c.b16 %v762, %v762
    %v795 = vpack.c.b16 %v763, %v763
    %v796 = vpack.c.b16 %v764, %v764
    %v797 = vpack.c.b16 %v765, %v765
    %v798 = vpack.c.b16 %v766, %v766
    %v799 = vpack.c.b16 %v767, %v767
    %v800 = vpack.c.b16 %v768, %v768
    %v801 = vpack.c.b16 %v769, %v769
    %v802 = vpack.c.b16 %v770, %v770
    %v803 = vpack.c.b16 %v771, %v771
    %v804 = vpack.c.b16 %v772, %v772
    %v805 = vpack.c.b16 %v773, %v773
    %v806 = vpack.c.b16 %v774, %v774
    %v807 = vpack.c.b16 %v775, %v775
    %v808 = vpack.c.b16 %v776, %v776
    %v809 = vpack.c.b16 %v777, %v777
    %v810 = vpack.c.b16 %v778, %v778
    %v811 = vpack.c.b16 %v779, %v779
    %v812 = vpack.c.b16 %v780, %v780
    %v813 = vpack.c.b16 %v781, %v781
    %v814 = vpack.c.b16 %v782, %v782
    %v815 = vpack.c.b16 %v783, %v783
    %v816 = vpack.c.b16 %v784, %v784
    %v817 = vpack.c.b16 %v785, %v785
    %v818 = vpack.c.b16 %v786, %v786
    %v819 = vpack.c.b16 %v787, %v787
    %v820 = vpack.c.b16 %v788, %v788
    %v821 = vpack.c.b16 %v789, %v789
    %v822 = vpack.c.b16 %v790, %v790
    %v823 = vpack.c.b16 %v791, %v791
    %856 = vst [vmem:[#allocation7] sm:$0xf] %v792
    %857 = vst [vmem:[#allocation7 + $0x4] sm:$0xf] %v793
    %858 = vst [vmem:[#allocation7 + $0x8] sm:$0xf] %v794
    %859 = vst [vmem:[#allocation7 + $0xc] sm:$0xf] %v795
    %860 = vst [vmem:[#allocation7 + $0x10] sm:$0xf] %v796
    %861 = vst [vmem:[#allocation7 + $0x14] sm:$0xf] %v797
    %862 = vst [vmem:[#allocation7 + $0x18] sm:$0xf] %v798
    %863 = vst [vmem:[#allocation7 + $0x1c] sm:$0xf] %v799
    %864 = vst [vmem:[#allocation7 + $0x20] sm:$0xf] %v800
    %865 = vst [vmem:[#allocation7 + $0x24] sm:$0xf] %v801
    %866 = vst [vmem:[#allocation7 + $0x28] sm:$0xf] %v802
    %867 = vst [vmem:[#allocation7 + $0x2c] sm:$0xf] %v803
    %868 = vst [vmem:[#allocation7 + $0x30] sm:$0xf] %v804
    %869 = vst [vmem:[#allocation7 + $0x34] sm:$0xf] %v805
    %870 = vst [vmem:[#allocation7 + $0x38] sm:$0xf] %v806
    %871 = vst [vmem:[#allocation7 + $0x3c] sm:$0xf] %v807
    %872 = vst [vmem:[#allocation7 + $0x40] sm:$0xf] %v808
    %873 = vst [vmem:[#allocation7 + $0x44] sm:$0xf] %v809
    %874 = vst [vmem:[#allocation7 + $0x48] sm:$0xf] %v810
    %875 = vst [vmem:[#allocation7 + $0x4c] sm:$0xf] %v811
    %876 = vst [vmem:[#allocation7 + $0x50] sm:$0xf] %v812
    %877 = vst [vmem:[#allocation7 + $0x54] sm:$0xf] %v813
    %878 = vst [vmem:[#allocation7 + $0x58] sm:$0xf] %v814
    %879 = vst [vmem:[#allocation7 + $0x5c] sm:$0xf] %v815
    %880 = vst [vmem:[#allocation7 + $0x60] sm:$0xf] %v816
    %881 = vst [vmem:[#allocation7 + $0x64] sm:$0xf] %v817
    %882 = vst [vmem:[#allocation7 + $0x68] sm:$0xf] %v818
    %883 = vst [vmem:[#allocation7 + $0x6c] sm:$0xf] %v819
    %884 = vst [vmem:[#allocation7 + $0x70] sm:$0xf] %v820
    %885 = vst [vmem:[#allocation7 + $0x74] sm:$0xf] %v821
    %886 = vst [vmem:[#allocation7 + $0x78] sm:$0xf] %v822
    %887 = vst [vmem:[#allocation7 + $0x7c] sm:$0xf] %v823
    %v888 = vlaneseq
    %v889 = vand.u32 %v888, 127
    %890 = vmax.xlane.f32.xlu0 %v696
    %v891 = vpop.xlane.xlu0 %890
    %892 = vmax.xlane.f32.xlu0 %v697
    %v893 = vpop.xlane.xlu0 %892
    %894 = vmax.xlane.f32.xlu0 %v698
    %v895 = vpop.xlane.xlu0 %894
    %896 = vmax.xlane.f32.xlu0 %v699
    %v897 = vpop.xlane.xlu0 %896
    %898 = vmax.xlane.f32.xlu0 %v700
    %v899 = vpop.xlane.xlu0 %898
    %900 = vmax.xlane.f32.xlu0 %v701
    %v901 = vpop.xlane.xlu0 %900
    %902 = vmax.xlane.f32.xlu0 %v702
    %v903 = vpop.xlane.xlu0 %902
    %904 = vmax.xlane.f32.xlu0 %v703
    %v905 = vpop.xlane.xlu0 %904
    %906 = vmax.xlane.f32.xlu0 %v704
    %v907 = vpop.xlane.xlu0 %906
    %908 = vmax.xlane.f32.xlu0 %v705
    %v909 = vpop.xlane.xlu0 %908
    %910 = vmax.xlane.f32.xlu0 %v706
    %v911 = vpop.xlane.xlu0 %910
    %912 = vmax.xlane.f32.xlu0 %v707
    %v913 = vpop.xlane.xlu0 %912
    %914 = vmax.xlane.f32.xlu0 %v708
    %v915 = vpop.xlane.xlu0 %914
    %916 = vmax.xlane.f32.xlu0 %v709
    %v917 = vpop.xlane.xlu0 %916
    %918 = vmax.xlane.f32.xlu0 %v710
    %v919 = vpop.xlane.xlu0 %918
    %920 = vmax.xlane.f32.xlu0 %v711
    %v921 = vpop.xlane.xlu0 %920
    %922 = vmax.xlane.f32.xlu0 %v712
    %v923 = vpop.xlane.xlu0 %922
    %924 = vmax.xlane.f32.xlu0 %v713
    %v925 = vpop.xlane.xlu0 %924
    %926 = vmax.xlane.f32.xlu0 %v714
    %v927 = vpop.xlane.xlu0 %926
    %928 = vmax.xlane.f32.xlu0 %v715
    %v929 = vpop.xlane.xlu0 %928
    %930 = vmax.xlane.f32.xlu0 %v716
    %v931 = vpop.xlane.xlu0 %930
    %932 = vmax.xlane.f32.xlu0 %v717
    %v933 = vpop.xlane.xlu0 %932
    %934 = vmax.xlane.f32.xlu0 %v718
    %v935 = vpop.xlane.xlu0 %934
    %936 = vmax.xlane.f32.xlu0 %v719
    %v937 = vpop.xlane.xlu0 %936
    %938 = vmax.xlane.f32.xlu0 %v720
    %v939 = vpop.xlane.xlu0 %938
    %940 = vmax.xlane.f32.xlu0 %v721
    %v941 = vpop.xlane.xlu0 %940
    %942 = vmax.xlane.f32.xlu0 %v722
    %v943 = vpop.xlane.xlu0 %942
    %944 = vmax.xlane.f32.xlu0 %v723
    %v945 = vpop.xlane.xlu0 %944
    %946 = vmax.xlane.f32.xlu0 %v724
    %v947 = vpop.xlane.xlu0 %946
    %948 = vmax.xlane.f32.xlu0 %v725
    %v949 = vpop.xlane.xlu0 %948
    %950 = vmax.xlane.f32.xlu0 %v726
    %v951 = vpop.xlane.xlu0 %950
    %952 = vmax.xlane.f32.xlu0 %v727
    %v953 = vpop.xlane.xlu0 %952
    %vm954 = vcmp.eq.f32.partialorder %v696, %v891
    %vm955 = vcmp.eq.f32.partialorder %v697, %v893
    %vm956 = vcmp.eq.f32.partialorder %v698, %v895
    %vm957 = vcmp.eq.f32.partialorder %v699, %v897
    %vm958 = vcmp.eq.f32.partialorder %v700, %v899
    %vm959 = vcmp.eq.f32.partialorder %v701, %v901
    %vm960 = vcmp.eq.f32.partialorder %v702, %v903
    %vm961 = vcmp.eq.f32.partialorder %v703, %v905
    %vm962 = vcmp.eq.f32.partialorder %v704, %v907
    %vm963 = vcmp.eq.f32.partialorder %v705, %v909
    %vm964 = vcmp.eq.f32.partialorder %v706, %v911
    %vm965 = vcmp.eq.f32.partialorder %v707, %v913
    %vm966 = vcmp.eq.f32.partialorder %v708, %v915
    %vm967 = vcmp.eq.f32.partialorder %v709, %v917
    %vm968 = vcmp.eq.f32.partialorder %v710, %v919
    %vm969 = vcmp.eq.f32.partialorder %v711, %v921
    %vm970 = vcmp.eq.f32.partialorder %v712, %v923
    %vm971 = vcmp.eq.f32.partialorder %v713, %v925
    %vm972 = vcmp.eq.f32.partialorder %v714, %v927
    %vm973 = vcmp.eq.f32.partialorder %v715, %v929
    %vm974 = vcmp.eq.f32.partialorder %v716, %v931
    %vm975 = vcmp.eq.f32.partialorder %v717, %v933
    %vm976 = vcmp.eq.f32.partialorder %v718, %v935
    %vm977 = vcmp.eq.f32.partialorder %v719, %v937
    %vm978 = vcmp.eq.f32.partialorder %v720, %v939
    %vm979 = vcmp.eq.f32.partialorder %v721, %v941
    %vm980 = vcmp.eq.f32.partialorder %v722, %v943
    %vm981 = vcmp.eq.f32.partialorder %v723, %v945
    %vm982 = vcmp.eq.f32.partialorder %v724, %v947
    %vm983 = vcmp.eq.f32.partialorder %v725, %v949
    %vm984 = vcmp.eq.f32.partialorder %v726, %v951
    %vm985 = vcmp.eq.f32.partialorder %v727, %v953
    %v986 = vsel %vm954, %v889, 1073741824
    %v987 = vsel %vm955, %v889, 1073741824
    %v988 = vsel %vm956, %v889, 1073741824
    %v989 = vsel %vm957, %v889, 1073741824
    %v990 = vsel %vm958, %v889, 1073741824
    %v991 = vsel %vm959, %v889, 1073741824
    %v992 = vsel %vm960, %v889, 1073741824
    %v993 = vsel %vm961, %v889, 1073741824
    %v994 = vsel %vm962, %v889, 1073741824
    %v995 = vsel %vm963, %v889, 1073741824
    %v996 = vsel %vm964, %v889, 1073741824
    %v997 = vsel %vm965, %v889, 1073741824
    %v998 = vsel %vm966, %v889, 1073741824
    %v999 = vsel %vm967, %v889, 1073741824
    %v1000 = vsel %vm968, %v889, 1073741824
    %v1001 = vsel %vm969, %v889, 1073741824
    %v1002 = vsel %vm970, %v889, 1073741824
    %v1003 = vsel %vm971, %v889, 1073741824
    %v1004 = vsel %vm972, %v889, 1073741824
    %v1005 = vsel %vm973, %v889, 1073741824
    %v1006 = vsel %vm974, %v889, 1073741824
    %v1007 = vsel %vm975, %v889, 1073741824
    %v1008 = vsel %vm976, %v889, 1073741824
    %v1009 = vsel %vm977, %v889, 1073741824
    %v1010 = vsel %vm978, %v889, 1073741824
    %v1011 = vsel %vm979, %v889, 1073741824
    %v1012 = vsel %vm980, %v889, 1073741824
    %v1013 = vsel %vm981, %v889, 1073741824
    %v1014 = vsel %vm982, %v889, 1073741824
    %v1015 = vsel %vm983, %v889, 1073741824
    %v1016 = vsel %vm984, %v889, 1073741824
    %v1017 = vsel %vm985, %v889, 1073741824
    %v1018 = vand.u32 %v986, 65535
    %v1019 = vshra.s32 %v986, 16
    %v1020 = vcvt.s32.f32 %v1018
    %v1021 = vcvt.s32.f32 %v1019
    %1022 = vmin.xlane.f32.xlu0 %v1021
    %v1023 = vpop.xlane.xlu0 %1022
    %vm1024 = vcmp.eq.f32.partialorder %v1021, %v1023
    %v1025 = vsel %vm1024, %v1020, inf
    %1026 = vmin.xlane.f32.xlu0 %v1025
    %v1027 = vpop.xlane.xlu0 %1026
    %v1028 = vcvt.f32.s32 %v1027
    %v1029 = vcvt.f32.s32 %v1023
    %v1030 = vshll.u32 %v1029, 16
    %v1031 = vadd.s32 %v1030, %v1028
    %v1032 = vand.u32 %v987, 65535
    %v1033 = vshra.s32 %v987, 16
    %v1034 = vcvt.s32.f32 %v1032
    %v1035 = vcvt.s32.f32 %v1033
    %1036 = vmin.xlane.f32.xlu0 %v1035
    %v1037 = vpop.xlane.xlu0 %1036
    %vm1038 = vcmp.eq.f32.partialorder %v1035, %v1037
    %v1039 = vsel %vm1038, %v1034, inf
    %1040 = vmin.xlane.f32.xlu0 %v1039
    %v1041 = vpop.xlane.xlu0 %1040
    %v1042 = vcvt.f32.s32 %v1041
    %v1043 = vcvt.f32.s32 %v1037
    %v1044 = vshll.u32 %v1043, 16
    %v1045 = vadd.s32 %v1044, %v1042
    %v1046 = vand.u32 %v988, 65535
    %v1047 = vshra.s32 %v988, 16
    %v1048 = vcvt.s32.f32 %v1046
    %v1049 = vcvt.s32.f32 %v1047
    %1050 = vmin.xlane.f32.xlu0 %v1049
    %v1051 = vpop.xlane.xlu0 %1050
    %vm1052 = vcmp.eq.f32.partialorder %v1049, %v1051
    %v1053 = vsel %vm1052, %v1048, inf
    %1054 = vmin.xlane.f32.xlu0 %v1053
    %v1055 = vpop.xlane.xlu0 %1054
    %v1056 = vcvt.f32.s32 %v1055
    %v1057 = vcvt.f32.s32 %v1051
    %v1058 = vshll.u32 %v1057, 16
    %v1059 = vadd.s32 %v1058, %v1056
    %v1060 = vand.u32 %v989, 65535
    %v1061 = vshra.s32 %v989, 16
    %v1062 = vcvt.s32.f32 %v1060
    %v1063 = vcvt.s32.f32 %v1061
    %1064 = vmin.xlane.f32.xlu0 %v1063
    %v1065 = vpop.xlane.xlu0 %1064
    %vm1066 = vcmp.eq.f32.partialorder %v1063, %v1065
    %v1067 = vsel %vm1066, %v1062, inf
    %1068 = vmin.xlane.f32.xlu0 %v1067
    %v1069 = vpop.xlane.xlu0 %1068
    %v1070 = vcvt.f32.s32 %v1069
    %v1071 = vcvt.f32.s32 %v1065
    %v1072 = vshll.u32 %v1071, 16
    %v1073 = vadd.s32 %v1072, %v1070
    %v1074 = vand.u32 %v990, 65535
    %v1075 = vshra.s32 %v990, 16
    %v1076 = vcvt.s32.f32 %v1074
    %v1077 = vcvt.s32.f32 %v1075
    %1078 = vmin.xlane.f32.xlu0 %v1077
    %v1079 = vpop.xlane.xlu0 %1078
    %vm1080 = vcmp.eq.f32.partialorder %v1077, %v1079
    %v1081 = vsel %vm1080, %v1076, inf
    %1082 = vmin.xlane.f32.xlu0 %v1081
    %v1083 = vpop.xlane.xlu0 %1082
    %v1084 = vcvt.f32.s32 %v1083
    %v1085 = vcvt.f32.s32 %v1079
    %v1086 = vshll.u32 %v1085, 16
    %v1087 = vadd.s32 %v1086, %v1084
    %v1088 = vand.u32 %v991, 65535
    %v1089 = vshra.s32 %v991, 16
    %v1090 = vcvt.s32.f32 %v1088
    %v1091 = vcvt.s32.f32 %v1089
    %1092 = vmin.xlane.f32.xlu0 %v1091
    %v1093 = vpop.xlane.xlu0 %1092
    %vm1094 = vcmp.eq.f32.partialorder %v1091, %v1093
    %v1095 = vsel %vm1094, %v1090, inf
    %1096 = vmin.xlane.f32.xlu0 %v1095
    %v1097 = vpop.xlane.xlu0 %1096
    %v1098 = vcvt.f32.s32 %v1097
    %v1099 = vcvt.f32.s32 %v1093
    %v1100 = vshll.u32 %v1099, 16
    %v1101 = vadd.s32 %v1100, %v1098
    %v1102 = vand.u32 %v992, 65535
    %v1103 = vshra.s32 %v992, 16
    %v1104 = vcvt.s32.f32 %v1102
    %v1105 = vcvt.s32.f32 %v1103
    %1106 = vmin.xlane.f32.xlu0 %v1105
    %v1107 = vpop.xlane.xlu0 %1106
    %vm1108 = vcmp.eq.f32.partialorder %v1105, %v1107
    %v1109 = vsel %vm1108, %v1104, inf
    %1110 = vmin.xlane.f32.xlu0 %v1109
    %v1111 = vpop.xlane.xlu0 %1110
    %v1112 = vcvt.f32.s32 %v1111
    %v1113 = vcvt.f32.s32 %v1107
    %v1114 = vshll.u32 %v1113, 16
    %v1115 = vadd.s32 %v1114, %v1112
    %v1116 = vand.u32 %v993, 65535
    %v1117 = vshra.s32 %v993, 16
    %v1118 = vcvt.s32.f32 %v1116
    %v1119 = vcvt.s32.f32 %v1117
    %1120 = vmin.xlane.f32.xlu0 %v1119
    %v1121 = vpop.xlane.xlu0 %1120
    %vm1122 = vcmp.eq.f32.partialorder %v1119, %v1121
    %v1123 = vsel %vm1122, %v1118, inf
    %1124 = vmin.xlane.f32.xlu0 %v1123
    %v1125 = vpop.xlane.xlu0 %1124
    %v1126 = vcvt.f32.s32 %v1125
    %v1127 = vcvt.f32.s32 %v1121
    %v1128 = vshll.u32 %v1127, 16
    %v1129 = vadd.s32 %v1128, %v1126
    %v1130 = vand.u32 %v994, 65535
    %v1131 = vshra.s32 %v994, 16
    %v1132 = vcvt.s32.f32 %v1130
    %v1133 = vcvt.s32.f32 %v1131
    %1134 = vmin.xlane.f32.xlu0 %v1133
    %v1135 = vpop.xlane.xlu0 %1134
    %vm1136 = vcmp.eq.f32.partialorder %v1133, %v1135
    %v1137 = vsel %vm1136, %v1132, inf
    %1138 = vmin.xlane.f32.xlu0 %v1137
    %v1139 = vpop.xlane.xlu0 %1138
    %v1140 = vcvt.f32.s32 %v1139
    %v1141 = vcvt.f32.s32 %v1135
    %v1142 = vshll.u32 %v1141, 16
    %v1143 = vadd.s32 %v1142, %v1140
    %v1144 = vand.u32 %v995, 65535
    %v1145 = vshra.s32 %v995, 16
    %v1146 = vcvt.s32.f32 %v1144
    %v1147 = vcvt.s32.f32 %v1145
    %1148 = vmin.xlane.f32.xlu0 %v1147
    %v1149 = vpop.xlane.xlu0 %1148
    %vm1150 = vcmp.eq.f32.partialorder %v1147, %v1149
    %v1151 = vsel %vm1150, %v1146, inf
    %1152 = vmin.xlane.f32.xlu0 %v1151
    %v1153 = vpop.xlane.xlu0 %1152
    %v1154 = vcvt.f32.s32 %v1153
    %v1155 = vcvt.f32.s32 %v1149
    %v1156 = vshll.u32 %v1155, 16
    %v1157 = vadd.s32 %v1156, %v1154
    %v1158 = vand.u32 %v996, 65535
    %v1159 = vshra.s32 %v996, 16
    %v1160 = vcvt.s32.f32 %v1158
    %v1161 = vcvt.s32.f32 %v1159
    %1162 = vmin.xlane.f32.xlu0 %v1161
    %v1163 = vpop.xlane.xlu0 %1162
    %vm1164 = vcmp.eq.f32.partialorder %v1161, %v1163
    %v1165 = vsel %vm1164, %v1160, inf
    %1166 = vmin.xlane.f32.xlu0 %v1165
    %v1167 = vpop.xlane.xlu0 %1166
    %v1168 = vcvt.f32.s32 %v1167
    %v1169 = vcvt.f32.s32 %v1163
    %v1170 = vshll.u32 %v1169, 16
    %v1171 = vadd.s32 %v1170, %v1168
    %v1172 = vand.u32 %v997, 65535
    %v1173 = vshra.s32 %v997, 16
    %v1174 = vcvt.s32.f32 %v1172
    %v1175 = vcvt.s32.f32 %v1173
    %1176 = vmin.xlane.f32.xlu0 %v1175
    %v1177 = vpop.xlane.xlu0 %1176
    %vm1178 = vcmp.eq.f32.partialorder %v1175, %v1177
    %v1179 = vsel %vm1178, %v1174, inf
    %1180 = vmin.xlane.f32.xlu0 %v1179
    %v1181 = vpop.xlane.xlu0 %1180
    %v1182 = vcvt.f32.s32 %v1181
    %v1183 = vcvt.f32.s32 %v1177
    %v1184 = vshll.u32 %v1183, 16
    %v1185 = vadd.s32 %v1184, %v1182
    %v1186 = vand.u32 %v998, 65535
    %v1187 = vshra.s32 %v998, 16
    %v1188 = vcvt.s32.f32 %v1186
    %v1189 = vcvt.s32.f32 %v1187
    %1190 = vmin.xlane.f32.xlu0 %v1189
    %v1191 = vpop.xlane.xlu0 %1190
    %vm1192 = vcmp.eq.f32.partialorder %v1189, %v1191
    %v1193 = vsel %vm1192, %v1188, inf
    %1194 = vmin.xlane.f32.xlu0 %v1193
    %v1195 = vpop.xlane.xlu0 %1194
    %v1196 = vcvt.f32.s32 %v1195
    %v1197 = vcvt.f32.s32 %v1191
    %v1198 = vshll.u32 %v1197, 16
    %v1199 = vadd.s32 %v1198, %v1196
    %v1200 = vand.u32 %v999, 65535
    %v1201 = vshra.s32 %v999, 16
    %v1202 = vcvt.s32.f32 %v1200
    %v1203 = vcvt.s32.f32 %v1201
    %1204 = vmin.xlane.f32.xlu0 %v1203
    %v1205 = vpop.xlane.xlu0 %1204
    %vm1206 = vcmp.eq.f32.partialorder %v1203, %v1205
    %v1207 = vsel %vm1206, %v1202, inf
    %1208 = vmin.xlane.f32.xlu0 %v1207
    %v1209 = vpop.xlane.xlu0 %1208
    %v1210 = vcvt.f32.s32 %v1209
    %v1211 = vcvt.f32.s32 %v1205
    %v1212 = vshll.u32 %v1211, 16
    %v1213 = vadd.s32 %v1212, %v1210
    %v1214 = vand.u32 %v1000, 65535
    %v1215 = vshra.s32 %v1000, 16
    %v1216 = vcvt.s32.f32 %v1214
    %v1217 = vcvt.s32.f32 %v1215
    %1218 = vmin.xlane.f32.xlu0 %v1217
    %v1219 = vpop.xlane.xlu0 %1218
    %vm1220 = vcmp.eq.f32.partialorder %v1217, %v1219
    %v1221 = vsel %vm1220, %v1216, inf
    %1222 = vmin.xlane.f32.xlu0 %v1221
    %v1223 = vpop.xlane.xlu0 %1222
    %v1224 = vcvt.f32.s32 %v1223
    %v1225 = vcvt.f32.s32 %v1219
    %v1226 = vshll.u32 %v1225, 16
    %v1227 = vadd.s32 %v1226, %v1224
    %v1228 = vand.u32 %v1001, 65535
    %v1229 = vshra.s32 %v1001, 16
    %v1230 = vcvt.s32.f32 %v1228
    %v1231 = vcvt.s32.f32 %v1229
    %1232 = vmin.xlane.f32.xlu0 %v1231
    %v1233 = vpop.xlane.xlu0 %1232
    %vm1234 = vcmp.eq.f32.partialorder %v1231, %v1233
    %v1235 = vsel %vm1234, %v1230, inf
    %1236 = vmin.xlane.f32.xlu0 %v1235
    %v1237 = vpop.xlane.xlu0 %1236
    %v1238 = vcvt.f32.s32 %v1237
    %v1239 = vcvt.f32.s32 %v1233
    %v1240 = vshll.u32 %v1239, 16
    %v1241 = vadd.s32 %v1240, %v1238
    %v1242 = vand.u32 %v1002, 65535
    %v1243 = vshra.s32 %v1002, 16
    %v1244 = vcvt.s32.f32 %v1242
    %v1245 = vcvt.s32.f32 %v1243
    %1246 = vmin.xlane.f32.xlu0 %v1245
    %v1247 = vpop.xlane.xlu0 %1246
    %vm1248 = vcmp.eq.f32.partialorder %v1245, %v1247
    %v1249 = vsel %vm1248, %v1244, inf
    %1250 = vmin.xlane.f32.xlu0 %v1249
    %v1251 = vpop.xlane.xlu0 %1250
    %v1252 = vcvt.f32.s32 %v1251
    %v1253 = vcvt.f32.s32 %v1247
    %v1254 = vshll.u32 %v1253, 16
    %v1255 = vadd.s32 %v1254, %v1252
    %v1256 = vand.u32 %v1003, 65535
    %v1257 = vshra.s32 %v1003, 16
    %v1258 = vcvt.s32.f32 %v1256
    %v1259 = vcvt.s32.f32 %v1257
    %1260 = vmin.xlane.f32.xlu0 %v1259
    %v1261 = vpop.xlane.xlu0 %1260
    %vm1262 = vcmp.eq.f32.partialorder %v1259, %v1261
    %v1263 = vsel %vm1262, %v1258, inf
    %1264 = vmin.xlane.f32.xlu0 %v1263
    %v1265 = vpop.xlane.xlu0 %1264
    %v1266 = vcvt.f32.s32 %v1265
    %v1267 = vcvt.f32.s32 %v1261
    %v1268 = vshll.u32 %v1267, 16
    %v1269 = vadd.s32 %v1268, %v1266
    %v1270 = vand.u32 %v1004, 65535
    %v1271 = vshra.s32 %v1004, 16
    %v1272 = vcvt.s32.f32 %v1270
    %v1273 = vcvt.s32.f32 %v1271
    %1274 = vmin.xlane.f32.xlu0 %v1273
    %v1275 = vpop.xlane.xlu0 %1274
    %vm1276 = vcmp.eq.f32.partialorder %v1273, %v1275
    %v1277 = vsel %vm1276, %v1272, inf
    %1278 = vmin.xlane.f32.xlu0 %v1277
    %v1279 = vpop.xlane.xlu0 %1278
    %v1280 = vcvt.f32.s32 %v1279
    %v1281 = vcvt.f32.s32 %v1275
    %v1282 = vshll.u32 %v1281, 16
    %v1283 = vadd.s32 %v1282, %v1280
    %v1284 = vand.u32 %v1005, 65535
    %v1285 = vshra.s32 %v1005, 16
    %v1286 = vcvt.s32.f32 %v1284
    %v1287 = vcvt.s32.f32 %v1285
    %1288 = vmin.xlane.f32.xlu0 %v1287
    %v1289 = vpop.xlane.xlu0 %1288
    %vm1290 = vcmp.eq.f32.partialorder %v1287, %v1289
    %v1291 = vsel %vm1290, %v1286, inf
    %1292 = vmin.xlane.f32.xlu0 %v1291
    %v1293 = vpop.xlane.xlu0 %1292
    %v1294 = vcvt.f32.s32 %v1293
    %v1295 = vcvt.f32.s32 %v1289
    %v1296 = vshll.u32 %v1295, 16
    %v1297 = vadd.s32 %v1296, %v1294
    %v1298 = vand.u32 %v1006, 65535
    %v1299 = vshra.s32 %v1006, 16
    %v1300 = vcvt.s32.f32 %v1298
    %v1301 = vcvt.s32.f32 %v1299
    %1302 = vmin.xlane.f32.xlu0 %v1301
    %v1303 = vpop.xlane.xlu0 %1302
    %vm1304 = vcmp.eq.f32.partialorder %v1301, %v1303
    %v1305 = vsel %vm1304, %v1300, inf
    %1306 = vmin.xlane.f32.xlu0 %v1305
    %v1307 = vpop.xlane.xlu0 %1306
    %v1308 = vcvt.f32.s32 %v1307
    %v1309 = vcvt.f32.s32 %v1303
    %v1310 = vshll.u32 %v1309, 16
    %v1311 = vadd.s32 %v1310, %v1308
    %v1312 = vand.u32 %v1007, 65535
    %v1313 = vshra.s32 %v1007, 16
    %v1314 = vcvt.s32.f32 %v1312
    %v1315 = vcvt.s32.f32 %v1313
    %1316 = vmin.xlane.f32.xlu0 %v1315
    %v1317 = vpop.xlane.xlu0 %1316
    %vm1318 = vcmp.eq.f32.partialorder %v1315, %v1317
    %v1319 = vsel %vm1318, %v1314, inf
    %1320 = vmin.xlane.f32.xlu0 %v1319
    %v1321 = vpop.xlane.xlu0 %1320
    %v1322 = vcvt.f32.s32 %v1321
    %v1323 = vcvt.f32.s32 %v1317
    %v1324 = vshll.u32 %v1323, 16
    %v1325 = vadd.s32 %v1324, %v1322
    %v1326 = vand.u32 %v1008, 65535
    %v1327 = vshra.s32 %v1008, 16
    %v1328 = vcvt.s32.f32 %v1326
    %v1329 = vcvt.s32.f32 %v1327
    %1330 = vmin.xlane.f32.xlu0 %v1329
    %v1331 = vpop.xlane.xlu0 %1330
    %vm1332 = vcmp.eq.f32.partialorder %v1329, %v1331
    %v1333 = vsel %vm1332, %v1328, inf
    %1334 = vmin.xlane.f32.xlu0 %v1333
    %v1335 = vpop.xlane.xlu0 %1334
    %v1336 = vcvt.f32.s32 %v1335
    %v1337 = vcvt.f32.s32 %v1331
    %v1338 = vshll.u32 %v1337, 16
    %v1339 = vadd.s32 %v1338, %v1336
    %v1340 = vand.u32 %v1009, 65535
    %v1341 = vshra.s32 %v1009, 16
    %v1342 = vcvt.s32.f32 %v1340
    %v1343 = vcvt.s32.f32 %v1341
    %1344 = vmin.xlane.f32.xlu0 %v1343
    %v1345 = vpop.xlane.xlu0 %1344
    %vm1346 = vcmp.eq.f32.partialorder %v1343, %v1345
    %v1347 = vsel %vm1346, %v1342, inf
    %1348 = vmin.xlane.f32.xlu0 %v1347
    %v1349 = vpop.xlane.xlu0 %1348
    %v1350 = vcvt.f32.s32 %v1349
    %v1351 = vcvt.f32.s32 %v1345
    %v1352 = vshll.u32 %v1351, 16
    %v1353 = vadd.s32 %v1352, %v1350
    %v1354 = vand.u32 %v1010, 65535
    %v1355 = vshra.s32 %v1010, 16
    %v1356 = vcvt.s32.f32 %v1354
    %v1357 = vcvt.s32.f32 %v1355
    %1358 = vmin.xlane.f32.xlu0 %v1357
    %v1359 = vpop.xlane.xlu0 %1358
    %vm1360 = vcmp.eq.f32.partialorder %v1357, %v1359
    %v1361 = vsel %vm1360, %v1356, inf
    %1362 = vmin.xlane.f32.xlu0 %v1361
    %v1363 = vpop.xlane.xlu0 %1362
    %v1364 = vcvt.f32.s32 %v1363
    %v1365 = vcvt.f32.s32 %v1359
    %v1366 = vshll.u32 %v1365, 16
    %v1367 = vadd.s32 %v1366, %v1364
    %v1368 = vand.u32 %v1011, 65535
    %v1369 = vshra.s32 %v1011, 16
    %v1370 = vcvt.s32.f32 %v1368
    %v1371 = vcvt.s32.f32 %v1369
    %1372 = vmin.xlane.f32.xlu0 %v1371
    %v1373 = vpop.xlane.xlu0 %1372
    %vm1374 = vcmp.eq.f32.partialorder %v1371, %v1373
    %v1375 = vsel %vm1374, %v1370, inf
    %1376 = vmin.xlane.f32.xlu0 %v1375
    %v1377 = vpop.xlane.xlu0 %1376
    %v1378 = vcvt.f32.s32 %v1377
    %v1379 = vcvt.f32.s32 %v1373
    %v1380 = vshll.u32 %v1379, 16
    %v1381 = vadd.s32 %v1380, %v1378
    %v1382 = vand.u32 %v1012, 65535
    %v1383 = vshra.s32 %v1012, 16
    %v1384 = vcvt.s32.f32 %v1382
    %v1385 = vcvt.s32.f32 %v1383
    %1386 = vmin.xlane.f32.xlu0 %v1385
    %v1387 = vpop.xlane.xlu0 %1386
    %vm1388 = vcmp.eq.f32.partialorder %v1385, %v1387
    %v1389 = vsel %vm1388, %v1384, inf
    %1390 = vmin.xlane.f32.xlu0 %v1389
    %v1391 = vpop.xlane.xlu0 %1390
    %v1392 = vcvt.f32.s32 %v1391
    %v1393 = vcvt.f32.s32 %v1387
    %v1394 = vshll.u32 %v1393, 16
    %v1395 = vadd.s32 %v1394, %v1392
    %v1396 = vand.u32 %v1013, 65535
    %v1397 = vshra.s32 %v1013, 16
    %v1398 = vcvt.s32.f32 %v1396
    %v1399 = vcvt.s32.f32 %v1397
    %1400 = vmin.xlane.f32.xlu0 %v1399
    %v1401 = vpop.xlane.xlu0 %1400
    %vm1402 = vcmp.eq.f32.partialorder %v1399, %v1401
    %v1403 = vsel %vm1402, %v1398, inf
    %1404 = vmin.xlane.f32.xlu0 %v1403
    %v1405 = vpop.xlane.xlu0 %1404
    %v1406 = vcvt.f32.s32 %v1405
    %v1407 = vcvt.f32.s32 %v1401
    %v1408 = vshll.u32 %v1407, 16
    %v1409 = vadd.s32 %v1408, %v1406
    %v1410 = vand.u32 %v1014, 65535
    %v1411 = vshra.s32 %v1014, 16
    %v1412 = vcvt.s32.f32 %v1410
    %v1413 = vcvt.s32.f32 %v1411
    %1414 = vmin.xlane.f32.xlu0 %v1413
    %v1415 = vpop.xlane.xlu0 %1414
    %vm1416 = vcmp.eq.f32.partialorder %v1413, %v1415
    %v1417 = vsel %vm1416, %v1412, inf
    %1418 = vmin.xlane.f32.xlu0 %v1417
    %v1419 = vpop.xlane.xlu0 %1418
    %v1420 = vcvt.f32.s32 %v1419
    %v1421 = vcvt.f32.s32 %v1415
    %v1422 = vshll.u32 %v1421, 16
    %v1423 = vadd.s32 %v1422, %v1420
    %v1424 = vand.u32 %v1015, 65535
    %v1425 = vshra.s32 %v1015, 16
    %v1426 = vcvt.s32.f32 %v1424
    %v1427 = vcvt.s32.f32 %v1425
    %1428 = vmin.xlane.f32.xlu0 %v1427
    %v1429 = vpop.xlane.xlu0 %1428
    %vm1430 = vcmp.eq.f32.partialorder %v1427, %v1429
    %v1431 = vsel %vm1430, %v1426, inf
    %1432 = vmin.xlane.f32.xlu0 %v1431
    %v1433 = vpop.xlane.xlu0 %1432
    %v1434 = vcvt.f32.s32 %v1433
    %v1435 = vcvt.f32.s32 %v1429
    %v1436 = vshll.u32 %v1435, 16
    %v1437 = vadd.s32 %v1436, %v1434
    %v1438 = vand.u32 %v1016, 65535
    %v1439 = vshra.s32 %v1016, 16
    %v1440 = vcvt.s32.f32 %v1438
    %v1441 = vcvt.s32.f32 %v1439
    %1442 = vmin.xlane.f32.xlu0 %v1441
    %v1443 = vpop.xlane.xlu0 %1442
    %vm1444 = vcmp.eq.f32.partialorder %v1441, %v1443
    %v1445 = vsel %vm1444, %v1440, inf
    %1446 = vmin.xlane.f32.xlu0 %v1445
    %v1447 = vpop.xlane.xlu0 %1446
    %v1448 = vcvt.f32.s32 %v1447
    %v1449 = vcvt.f32.s32 %v1443
    %v1450 = vshll.u32 %v1449, 16
    %v1451 = vadd.s32 %v1450, %v1448
    %v1452 = vand.u32 %v1017, 65535
    %v1453 = vshra.s32 %v1017, 16
    %v1454 = vcvt.s32.f32 %v1452
    %v1455 = vcvt.s32.f32 %v1453
    %1456 = vmin.xlane.f32.xlu0 %v1455
    %v1457 = vpop.xlane.xlu0 %1456
    %vm1458 = vcmp.eq.f32.partialorder %v1455, %v1457
    %v1459 = vsel %vm1458, %v1454, inf
    %1460 = vmin.xlane.f32.xlu0 %v1459
    %v1461 = vpop.xlane.xlu0 %1460
    %v1462 = vcvt.f32.s32 %v1461
    %v1463 = vcvt.f32.s32 %v1457
    %v1464 = vshll.u32 %v1463, 16
    %v1465 = vadd.s32 %v1464, %v1462
    %v1466 = vlaneseq
    %v1467 = vshrl.u32 %v1466, 7
    %v1468 = vsub.s32 0, %v1467
    %v1469 = vrot.slane %v1031, %v1468
    %v1470 = vlaneseq
    %v1471 = vshrl.u32 %v1470, 7
    %v1472 = vsub.s32 1, %v1471
    %v1473 = vrot.slane %v1031, %v1472
    %v1474 = vlaneseq
    %v1475 = vshrl.u32 %v1474, 7
    %v1476 = vsub.s32 2, %v1475
    %v1477 = vrot.slane %v1031, %v1476
    %v1478 = vlaneseq
    %v1479 = vshrl.u32 %v1478, 7
    %v1480 = vsub.s32 3, %v1479
    %v1481 = vrot.slane %v1031, %v1480
    %v1482 = vlaneseq
    %v1483 = vshrl.u32 %v1482, 7
    %v1484 = vsub.s32 4, %v1483
    %v1485 = vrot.slane %v1031, %v1484
    %v1486 = vlaneseq
    %v1487 = vshrl.u32 %v1486, 7
    %v1488 = vsub.s32 5, %v1487
    %v1489 = vrot.slane %v1031, %v1488
    %v1490 = vlaneseq
    %v1491 = vshrl.u32 %v1490, 7
    %v1492 = vsub.s32 6, %v1491
    %v1493 = vrot.slane %v1031, %v1492
    %v1494 = vlaneseq
    %v1495 = vshrl.u32 %v1494, 7
    %v1496 = vsub.s32 7, %v1495
    %v1497 = vrot.slane %v1031, %v1496
    %v1498 = vlaneseq
    %v1499 = vshrl.u32 %v1498, 7
    %v1500 = vsub.s32 0, %v1499
    %v1501 = vrot.slane %v1045, %v1500
    %v1502 = vlaneseq
    %v1503 = vshrl.u32 %v1502, 7
    %v1504 = vsub.s32 1, %v1503
    %v1505 = vrot.slane %v1045, %v1504
    %v1506 = vlaneseq
    %v1507 = vshrl.u32 %v1506, 7
    %v1508 = vsub.s32 2, %v1507
    %v1509 = vrot.slane %v1045, %v1508
    %v1510 = vlaneseq
    %v1511 = vshrl.u32 %v1510, 7
    %v1512 = vsub.s32 3, %v1511
    %v1513 = vrot.slane %v1045, %v1512
    %v1514 = vlaneseq
    %v1515 = vshrl.u32 %v1514, 7
    %v1516 = vsub.s32 4, %v1515
    %v1517 = vrot.slane %v1045, %v1516
    %v1518 = vlaneseq
    %v1519 = vshrl.u32 %v1518, 7
    %v1520 = vsub.s32 5, %v1519
    %v1521 = vrot.slane %v1045, %v1520
    %v1522 = vlaneseq
    %v1523 = vshrl.u32 %v1522, 7
    %v1524 = vsub.s32 6, %v1523
    %v1525 = vrot.slane %v1045, %v1524
    %v1526 = vlaneseq
    %v1527 = vshrl.u32 %v1526, 7
    %v1528 = vsub.s32 7, %v1527
    %v1529 = vrot.slane %v1045, %v1528
    %v1530 = vlaneseq
    %v1531 = vshrl.u32 %v1530, 7
    %v1532 = vsub.s32 0, %v1531
    %v1533 = vrot.slane %v1059, %v1532
    %v1534 = vlaneseq
    %v1535 = vshrl.u32 %v1534, 7
    %v1536 = vsub.s32 1, %v1535
    %v1537 = vrot.slane %v1059, %v1536
    %v1538 = vlaneseq
    %v1539 = vshrl.u32 %v1538, 7
    %v1540 = vsub.s32 2, %v1539
    %v1541 = vrot.slane %v1059, %v1540
    %v1542 = vlaneseq
    %v1543 = vshrl.u32 %v1542, 7
    %v1544 = vsub.s32 3, %v1543
    %v1545 = vrot.slane %v1059, %v1544
    %v1546 = vlaneseq
    %v1547 = vshrl.u32 %v1546, 7
    %v1548 = vsub.s32 4, %v1547
    %v1549 = vrot.slane %v1059, %v1548
    %v1550 = vlaneseq
    %v1551 = vshrl.u32 %v1550, 7
    %v1552 = vsub.s32 5, %v1551
    %v1553 = vrot.slane %v1059, %v1552
    %v1554 = vlaneseq
    %v1555 = vshrl.u32 %v1554, 7
    %v1556 = vsub.s32 6, %v1555
    %v1557 = vrot.slane %v1059, %v1556
    %v1558 = vlaneseq
    %v1559 = vshrl.u32 %v1558, 7
    %v1560 = vsub.s32 7, %v1559
    %v1561 = vrot.slane %v1059, %v1560
    %v1562 = vlaneseq
    %v1563 = vshrl.u32 %v1562, 7
    %v1564 = vsub.s32 0, %v1563
    %v1565 = vrot.slane %v1073, %v1564
    %v1566 = vlaneseq
    %v1567 = vshrl.u32 %v1566, 7
    %v1568 = vsub.s32 1, %v1567
    %v1569 = vrot.slane %v1073, %v1568
    %v1570 = vlaneseq
    %v1571 = vshrl.u32 %v1570, 7
    %v1572 = vsub.s32 2, %v1571
    %v1573 = vrot.slane %v1073, %v1572
    %v1574 = vlaneseq
    %v1575 = vshrl.u32 %v1574, 7
    %v1576 = vsub.s32 3, %v1575
    %v1577 = vrot.slane %v1073, %v1576
    %v1578 = vlaneseq
    %v1579 = vshrl.u32 %v1578, 7
    %v1580 = vsub.s32 4, %v1579
    %v1581 = vrot.slane %v1073, %v1580
    %v1582 = vlaneseq
    %v1583 = vshrl.u32 %v1582, 7
    %v1584 = vsub.s32 5, %v1583
    %v1585 = vrot.slane %v1073, %v1584
    %v1586 = vlaneseq
    %v1587 = vshrl.u32 %v1586, 7
    %v1588 = vsub.s32 6, %v1587
    %v1589 = vrot.slane %v1073, %v1588
    %v1590 = vlaneseq
    %v1591 = vshrl.u32 %v1590, 7
    %v1592 = vsub.s32 7, %v1591
    %v1593 = vrot.slane %v1073, %v1592
    %v1594 = vlaneseq
    %v1595 = vshrl.u32 %v1594, 7
    %v1596 = vsub.s32 0, %v1595
    %v1597 = vrot.slane %v1087, %v1596
    %v1598 = vlaneseq
    %v1599 = vshrl.u32 %v1598, 7
    %v1600 = vsub.s32 1, %v1599
    %v1601 = vrot.slane %v1087, %v1600
    %v1602 = vlaneseq
    %v1603 = vshrl.u32 %v1602, 7
    %v1604 = vsub.s32 2, %v1603
    %v1605 = vrot.slane %v1087, %v1604
    %v1606 = vlaneseq
    %v1607 = vshrl.u32 %v1606, 7
    %v1608 = vsub.s32 3, %v1607
    %v1609 = vrot.slane %v1087, %v1608
    %v1610 = vlaneseq
    %v1611 = vshrl.u32 %v1610, 7
    %v1612 = vsub.s32 4, %v1611
    %v1613 = vrot.slane %v1087, %v1612
    %v1614 = vlaneseq
    %v1615 = vshrl.u32 %v1614, 7
    %v1616 = vsub.s32 5, %v1615
    %v1617 = vrot.slane %v1087, %v1616
    %v1618 = vlaneseq
    %v1619 = vshrl.u32 %v1618, 7
    %v1620 = vsub.s32 6, %v1619
    %v1621 = vrot.slane %v1087, %v1620
    %v1622 = vlaneseq
    %v1623 = vshrl.u32 %v1622, 7
    %v1624 = vsub.s32 7, %v1623
    %v1625 = vrot.slane %v1087, %v1624
    %v1626 = vlaneseq
    %v1627 = vshrl.u32 %v1626, 7
    %v1628 = vsub.s32 0, %v1627
    %v1629 = vrot.slane %v1101, %v1628
    %v1630 = vlaneseq
    %v1631 = vshrl.u32 %v1630, 7
    %v1632 = vsub.s32 1, %v1631
    %v1633 = vrot.slane %v1101, %v1632
    %v1634 = vlaneseq
    %v1635 = vshrl.u32 %v1634, 7
    %v1636 = vsub.s32 2, %v1635
    %v1637 = vrot.slane %v1101, %v1636
    %v1638 = vlaneseq
    %v1639 = vshrl.u32 %v1638, 7
    %v1640 = vsub.s32 3, %v1639
    %v1641 = vrot.slane %v1101, %v1640
    %v1642 = vlaneseq
    %v1643 = vshrl.u32 %v1642, 7
    %v1644 = vsub.s32 4, %v1643
    %v1645 = vrot.slane %v1101, %v1644
    %v1646 = vlaneseq
    %v1647 = vshrl.u32 %v1646, 7
    %v1648 = vsub.s32 5, %v1647
    %v1649 = vrot.slane %v1101, %v1648
    %v1650 = vlaneseq
    %v1651 = vshrl.u32 %v1650, 7
    %v1652 = vsub.s32 6, %v1651
    %v1653 = vrot.slane %v1101, %v1652
    %v1654 = vlaneseq
    %v1655 = vshrl.u32 %v1654, 7
    %v1656 = vsub.s32 7, %v1655
    %v1657 = vrot.slane %v1101, %v1656
    %v1658 = vlaneseq
    %v1659 = vshrl.u32 %v1658, 7
    %v1660 = vsub.s32 0, %v1659
    %v1661 = vrot.slane %v1115, %v1660
    %v1662 = vlaneseq
    %v1663 = vshrl.u32 %v1662, 7
    %v1664 = vsub.s32 1, %v1663
    %v1665 = vrot.slane %v1115, %v1664
    %v1666 = vlaneseq
    %v1667 = vshrl.u32 %v1666, 7
    %v1668 = vsub.s32 2, %v1667
    %v1669 = vrot.slane %v1115, %v1668
    %v1670 = vlaneseq
    %v1671 = vshrl.u32 %v1670, 7
    %v1672 = vsub.s32 3, %v1671
    %v1673 = vrot.slane %v1115, %v1672
    %v1674 = vlaneseq
    %v1675 = vshrl.u32 %v1674, 7
    %v1676 = vsub.s32 4, %v1675
    %v1677 = vrot.slane %v1115, %v1676
    %v1678 = vlaneseq
    %v1679 = vshrl.u32 %v1678, 7
    %v1680 = vsub.s32 5, %v1679
    %v1681 = vrot.slane %v1115, %v1680
    %v1682 = vlaneseq
    %v1683 = vshrl.u32 %v1682, 7
    %v1684 = vsub.s32 6, %v1683
    %v1685 = vrot.slane %v1115, %v1684
    %v1686 = vlaneseq
    %v1687 = vshrl.u32 %v1686, 7
    %v1688 = vsub.s32 7, %v1687
    %v1689 = vrot.slane %v1115, %v1688
    %v1690 = vlaneseq
    %v1691 = vshrl.u32 %v1690, 7
    %v1692 = vsub.s32 0, %v1691
    %v1693 = vrot.slane %v1129, %v1692
    %v1694 = vlaneseq
    %v1695 = vshrl.u32 %v1694, 7
    %v1696 = vsub.s32 1, %v1695
    %v1697 = vrot.slane %v1129, %v1696
    %v1698 = vlaneseq
    %v1699 = vshrl.u32 %v1698, 7
    %v1700 = vsub.s32 2, %v1699
    %v1701 = vrot.slane %v1129, %v1700
    %v1702 = vlaneseq
    %v1703 = vshrl.u32 %v1702, 7
    %v1704 = vsub.s32 3, %v1703
    %v1705 = vrot.slane %v1129, %v1704
    %v1706 = vlaneseq
    %v1707 = vshrl.u32 %v1706, 7
    %v1708 = vsub.s32 4, %v1707
    %v1709 = vrot.slane %v1129, %v1708
    %v1710 = vlaneseq
    %v1711 = vshrl.u32 %v1710, 7
    %v1712 = vsub.s32 5, %v1711
    %v1713 = vrot.slane %v1129, %v1712
    %v1714 = vlaneseq
    %v1715 = vshrl.u32 %v1714, 7
    %v1716 = vsub.s32 6, %v1715
    %v1717 = vrot.slane %v1129, %v1716
    %v1718 = vlaneseq
    %v1719 = vshrl.u32 %v1718, 7
    %v1720 = vsub.s32 7, %v1719
    %v1721 = vrot.slane %v1129, %v1720
    %v1722 = vlaneseq
    %v1723 = vshrl.u32 %v1722, 7
    %v1724 = vsub.s32 0, %v1723
    %v1725 = vrot.slane %v1143, %v1724
    %v1726 = vlaneseq
    %v1727 = vshrl.u32 %v1726, 7
    %v1728 = vsub.s32 1, %v1727
    %v1729 = vrot.slane %v1143, %v1728
    %v1730 = vlaneseq
    %v1731 = vshrl.u32 %v1730, 7
    %v1732 = vsub.s32 2, %v1731
    %v1733 = vrot.slane %v1143, %v1732
    %v1734 = vlaneseq
    %v1735 = vshrl.u32 %v1734, 7
    %v1736 = vsub.s32 3, %v1735
    %v1737 = vrot.slane %v1143, %v1736
    %v1738 = vlaneseq
    %v1739 = vshrl.u32 %v1738, 7
    %v1740 = vsub.s32 4, %v1739
    %v1741 = vrot.slane %v1143, %v1740
    %v1742 = vlaneseq
    %v1743 = vshrl.u32 %v1742, 7
    %v1744 = vsub.s32 5, %v1743
    %v1745 = vrot.slane %v1143, %v1744
    %v1746 = vlaneseq
    %v1747 = vshrl.u32 %v1746, 7
    %v1748 = vsub.s32 6, %v1747
    %v1749 = vrot.slane %v1143, %v1748
    %v1750 = vlaneseq
    %v1751 = vshrl.u32 %v1750, 7
    %v1752 = vsub.s32 7, %v1751
    %v1753 = vrot.slane %v1143, %v1752
    %v1754 = vlaneseq
    %v1755 = vshrl.u32 %v1754, 7
    %v1756 = vsub.s32 0, %v1755
    %v1757 = vrot.slane %v1157, %v1756
    %v1758 = vlaneseq
    %v1759 = vshrl.u32 %v1758, 7
    %v1760 = vsub.s32 1, %v1759
    %v1761 = vrot.slane %v1157, %v1760
    %v1762 = vlaneseq
    %v1763 = vshrl.u32 %v1762, 7
    %v1764 = vsub.s32 2, %v1763
    %v1765 = vrot.slane %v1157, %v1764
    %v1766 = vlaneseq
    %v1767 = vshrl.u32 %v1766, 7
    %v1768 = vsub.s32 3, %v1767
    %v1769 = vrot.slane %v1157, %v1768
    %v1770 = vlaneseq
    %v1771 = vshrl.u32 %v1770, 7
    %v1772 = vsub.s32 4, %v1771
    %v1773 = vrot.slane %v1157, %v1772
    %v1774 = vlaneseq
    %v1775 = vshrl.u32 %v1774, 7
    %v1776 = vsub.s32 5, %v1775
    %v1777 = vrot.slane %v1157, %v1776
    %v1778 = vlaneseq
    %v1779 = vshrl.u32 %v1778, 7
    %v1780 = vsub.s32 6, %v1779
    %v1781 = vrot.slane %v1157, %v1780
    %v1782 = vlaneseq
    %v1783 = vshrl.u32 %v1782, 7
    %v1784 = vsub.s32 7, %v1783
    %v1785 = vrot.slane %v1157, %v1784
    %v1786 = vlaneseq
    %v1787 = vshrl.u32 %v1786, 7
    %v1788 = vsub.s32 0, %v1787
    %v1789 = vrot.slane %v1171, %v1788
    %v1790 = vlaneseq
    %v1791 = vshrl.u32 %v1790, 7
    %v1792 = vsub.s32 1, %v1791
    %v1793 = vrot.slane %v1171, %v1792
    %v1794 = vlaneseq
    %v1795 = vshrl.u32 %v1794, 7
    %v1796 = vsub.s32 2, %v1795
    %v1797 = vrot.slane %v1171, %v1796
    %v1798 = vlaneseq
    %v1799 = vshrl.u32 %v1798, 7
    %v1800 = vsub.s32 3, %v1799
    %v1801 = vrot.slane %v1171, %v1800
    %v1802 = vlaneseq
    %v1803 = vshrl.u32 %v1802, 7
    %v1804 = vsub.s32 4, %v1803
    %v1805 = vrot.slane %v1171, %v1804
    %v1806 = vlaneseq
    %v1807 = vshrl.u32 %v1806, 7
    %v1808 = vsub.s32 5, %v1807
    %v1809 = vrot.slane %v1171, %v1808
    %v1810 = vlaneseq
    %v1811 = vshrl.u32 %v1810, 7
    %v1812 = vsub.s32 6, %v1811
    %v1813 = vrot.slane %v1171, %v1812
    %v1814 = vlaneseq
    %v1815 = vshrl.u32 %v1814, 7
    %v1816 = vsub.s32 7, %v1815
    %v1817 = vrot.slane %v1171, %v1816
    %v1818 = vlaneseq
    %v1819 = vshrl.u32 %v1818, 7
    %v1820 = vsub.s32 0, %v1819
    %v1821 = vrot.slane %v1185, %v1820
    %v1822 = vlaneseq
    %v1823 = vshrl.u32 %v1822, 7
    %v1824 = vsub.s32 1, %v1823
    %v1825 = vrot.slane %v1185, %v1824
    %v1826 = vlaneseq
    %v1827 = vshrl.u32 %v1826, 7
    %v1828 = vsub.s32 2, %v1827
    %v1829 = vrot.slane %v1185, %v1828
    %v1830 = vlaneseq
    %v1831 = vshrl.u32 %v1830, 7
    %v1832 = vsub.s32 3, %v1831
    %v1833 = vrot.slane %v1185, %v1832
    %v1834 = vlaneseq
    %v1835 = vshrl.u32 %v1834, 7
    %v1836 = vsub.s32 4, %v1835
    %v1837 = vrot.slane %v1185, %v1836
    %v1838 = vlaneseq
    %v1839 = vshrl.u32 %v1838, 7
    %v1840 = vsub.s32 5, %v1839
    %v1841 = vrot.slane %v1185, %v1840
    %v1842 = vlaneseq
    %v1843 = vshrl.u32 %v1842, 7
    %v1844 = vsub.s32 6, %v1843
    %v1845 = vrot.slane %v1185, %v1844
    %v1846 = vlaneseq
    %v1847 = vshrl.u32 %v1846, 7
    %v1848 = vsub.s32 7, %v1847
    %v1849 = vrot.slane %v1185, %v1848
    %v1850 = vlaneseq
    %v1851 = vshrl.u32 %v1850, 7
    %v1852 = vsub.s32 0, %v1851
    %v1853 = vrot.slane %v1199, %v1852
    %v1854 = vlaneseq
    %v1855 = vshrl.u32 %v1854, 7
    %v1856 = vsub.s32 1, %v1855
    %v1857 = vrot.slane %v1199, %v1856
    %v1858 = vlaneseq
    %v1859 = vshrl.u32 %v1858, 7
    %v1860 = vsub.s32 2, %v1859
    %v1861 = vrot.slane %v1199, %v1860
    %v1862 = vlaneseq
    %v1863 = vshrl.u32 %v1862, 7
    %v1864 = vsub.s32 3, %v1863
    %v1865 = vrot.slane %v1199, %v1864
    %v1866 = vlaneseq
    %v1867 = vshrl.u32 %v1866, 7
    %v1868 = vsub.s32 4, %v1867
    %v1869 = vrot.slane %v1199, %v1868
    %v1870 = vlaneseq
    %v1871 = vshrl.u32 %v1870, 7
    %v1872 = vsub.s32 5, %v1871
    %v1873 = vrot.slane %v1199, %v1872
    %v1874 = vlaneseq
    %v1875 = vshrl.u32 %v1874, 7
    %v1876 = vsub.s32 6, %v1875
    %v1877 = vrot.slane %v1199, %v1876
    %v1878 = vlaneseq
    %v1879 = vshrl.u32 %v1878, 7
    %v1880 = vsub.s32 7, %v1879
    %v1881 = vrot.slane %v1199, %v1880
    %v1882 = vlaneseq
    %v1883 = vshrl.u32 %v1882, 7
    %v1884 = vsub.s32 0, %v1883
    %v1885 = vrot.slane %v1213, %v1884
    %v1886 = vlaneseq
    %v1887 = vshrl.u32 %v1886, 7
    %v1888 = vsub.s32 1, %v1887
    %v1889 = vrot.slane %v1213, %v1888
    %v1890 = vlaneseq
    %v1891 = vshrl.u32 %v1890, 7
    %v1892 = vsub.s32 2, %v1891
    %v1893 = vrot.slane %v1213, %v1892
    %v1894 = vlaneseq
    %v1895 = vshrl.u32 %v1894, 7
    %v1896 = vsub.s32 3, %v1895
    %v1897 = vrot.slane %v1213, %v1896
    %v1898 = vlaneseq
    %v1899 = vshrl.u32 %v1898, 7
    %v1900 = vsub.s32 4, %v1899
    %v1901 = vrot.slane %v1213, %v1900
    %v1902 = vlaneseq
    %v1903 = vshrl.u32 %v1902, 7
    %v1904 = vsub.s32 5, %v1903
    %v1905 = vrot.slane %v1213, %v1904
    %v1906 = vlaneseq
    %v1907 = vshrl.u32 %v1906, 7
    %v1908 = vsub.s32 6, %v1907
    %v1909 = vrot.slane %v1213, %v1908
    %v1910 = vlaneseq
    %v1911 = vshrl.u32 %v1910, 7
    %v1912 = vsub.s32 7, %v1911
    %v1913 = vrot.slane %v1213, %v1912
    %v1914 = vlaneseq
    %v1915 = vshrl.u32 %v1914, 7
    %v1916 = vsub.s32 0, %v1915
    %v1917 = vrot.slane %v1227, %v1916
    %v1918 = vlaneseq
    %v1919 = vshrl.u32 %v1918, 7
    %v1920 = vsub.s32 1, %v1919
    %v1921 = vrot.slane %v1227, %v1920
    %v1922 = vlaneseq
    %v1923 = vshrl.u32 %v1922, 7
    %v1924 = vsub.s32 2, %v1923
    %v1925 = vrot.slane %v1227, %v1924
    %v1926 = vlaneseq
    %v1927 = vshrl.u32 %v1926, 7
    %v1928 = vsub.s32 3, %v1927
    %v1929 = vrot.slane %v1227, %v1928
    %v1930 = vlaneseq
    %v1931 = vshrl.u32 %v1930, 7
    %v1932 = vsub.s32 4, %v1931
    %v1933 = vrot.slane %v1227, %v1932
    %v1934 = vlaneseq
    %v1935 = vshrl.u32 %v1934, 7
    %v1936 = vsub.s32 5, %v1935
    %v1937 = vrot.slane %v1227, %v1936
    %v1938 = vlaneseq
    %v1939 = vshrl.u32 %v1938, 7
    %v1940 = vsub.s32 6, %v1939
    %v1941 = vrot.slane %v1227, %v1940
    %v1942 = vlaneseq
    %v1943 = vshrl.u32 %v1942, 7
    %v1944 = vsub.s32 7, %v1943
    %v1945 = vrot.slane %v1227, %v1944
    %v1946 = vlaneseq
    %v1947 = vshrl.u32 %v1946, 7
    %v1948 = vsub.s32 0, %v1947
    %v1949 = vrot.slane %v1241, %v1948
    %v1950 = vlaneseq
    %v1951 = vshrl.u32 %v1950, 7
    %v1952 = vsub.s32 1, %v1951
    %v1953 = vrot.slane %v1241, %v1952
    %v1954 = vlaneseq
    %v1955 = vshrl.u32 %v1954, 7
    %v1956 = vsub.s32 2, %v1955
    %v1957 = vrot.slane %v1241, %v1956
    %v1958 = vlaneseq
    %v1959 = vshrl.u32 %v1958, 7
    %v1960 = vsub.s32 3, %v1959
    %v1961 = vrot.slane %v1241, %v1960
    %v1962 = vlaneseq
    %v1963 = vshrl.u32 %v1962, 7
    %v1964 = vsub.s32 4, %v1963
    %v1965 = vrot.slane %v1241, %v1964
    %v1966 = vlaneseq
    %v1967 = vshrl.u32 %v1966, 7
    %v1968 = vsub.s32 5, %v1967
    %v1969 = vrot.slane %v1241, %v1968
    %v1970 = vlaneseq
    %v1971 = vshrl.u32 %v1970, 7
    %v1972 = vsub.s32 6, %v1971
    %v1973 = vrot.slane %v1241, %v1972
    %v1974 = vlaneseq
    %v1975 = vshrl.u32 %v1974, 7
    %v1976 = vsub.s32 7, %v1975
    %v1977 = vrot.slane %v1241, %v1976
    %v1978 = vlaneseq
    %v1979 = vshrl.u32 %v1978, 7
    %v1980 = vsub.s32 0, %v1979
    %v1981 = vrot.slane %v1255, %v1980
    %v1982 = vlaneseq
    %v1983 = vshrl.u32 %v1982, 7
    %v1984 = vsub.s32 1, %v1983
    %v1985 = vrot.slane %v1255, %v1984
    %v1986 = vlaneseq
    %v1987 = vshrl.u32 %v1986, 7
    %v1988 = vsub.s32 2, %v1987
    %v1989 = vrot.slane %v1255, %v1988
    %v1990 = vlaneseq
    %v1991 = vshrl.u32 %v1990, 7
    %v1992 = vsub.s32 3, %v1991
    %v1993 = vrot.slane %v1255, %v1992
    %v1994 = vlaneseq
    %v1995 = vshrl.u32 %v1994, 7
    %v1996 = vsub.s32 4, %v1995
    %v1997 = vrot.slane %v1255, %v1996
    %v1998 = vlaneseq
    %v1999 = vshrl.u32 %v1998, 7
    %v2000 = vsub.s32 5, %v1999
    %v2001 = vrot.slane %v1255, %v2000
    %v2002 = vlaneseq
    %v2003 = vshrl.u32 %v2002, 7
    %v2004 = vsub.s32 6, %v2003
    %v2005 = vrot.slane %v1255, %v2004
    %v2006 = vlaneseq
    %v2007 = vshrl.u32 %v2006, 7
    %v2008 = vsub.s32 7, %v2007
    %v2009 = vrot.slane %v1255, %v2008
    %v2010 = vlaneseq
    %v2011 = vshrl.u32 %v2010, 7
    %v2012 = vsub.s32 0, %v2011
    %v2013 = vrot.slane %v1269, %v2012
    %v2014 = vlaneseq
    %v2015 = vshrl.u32 %v2014, 7
    %v2016 = vsub.s32 1, %v2015
    %v2017 = vrot.slane %v1269, %v2016
    %v2018 = vlaneseq
    %v2019 = vshrl.u32 %v2018, 7
    %v2020 = vsub.s32 2, %v2019
    %v2021 = vrot.slane %v1269, %v2020
    %v2022 = vlaneseq
    %v2023 = vshrl.u32 %v2022, 7
    %v2024 = vsub.s32 3, %v2023
    %v2025 = vrot.slane %v1269, %v2024
    %v2026 = vlaneseq
    %v2027 = vshrl.u32 %v2026, 7
    %v2028 = vsub.s32 4, %v2027
    %v2029 = vrot.slane %v1269, %v2028
    %v2030 = vlaneseq
    %v2031 = vshrl.u32 %v2030, 7
    %v2032 = vsub.s32 5, %v2031
    %v2033 = vrot.slane %v1269, %v2032
    %v2034 = vlaneseq
    %v2035 = vshrl.u32 %v2034, 7
    %v2036 = vsub.s32 6, %v2035
    %v2037 = vrot.slane %v1269, %v2036
    %v2038 = vlaneseq
    %v2039 = vshrl.u32 %v2038, 7
    %v2040 = vsub.s32 7, %v2039
    %v2041 = vrot.slane %v1269, %v2040
    %v2042 = vlaneseq
    %v2043 = vshrl.u32 %v2042, 7
    %v2044 = vsub.s32 0, %v2043
    %v2045 = vrot.slane %v1283, %v2044
    %v2046 = vlaneseq
    %v2047 = vshrl.u32 %v2046, 7
    %v2048 = vsub.s32 1, %v2047
    %v2049 = vrot.slane %v1283, %v2048
    %v2050 = vlaneseq
    %v2051 = vshrl.u32 %v2050, 7
    %v2052 = vsub.s32 2, %v2051
    %v2053 = vrot.slane %v1283, %v2052
    %v2054 = vlaneseq
    %v2055 = vshrl.u32 %v2054, 7
    %v2056 = vsub.s32 3, %v2055
    %v2057 = vrot.slane %v1283, %v2056
    %v2058 = vlaneseq
    %v2059 = vshrl.u32 %v2058, 7
    %v2060 = vsub.s32 4, %v2059
    %v2061 = vrot.slane %v1283, %v2060
    %v2062 = vlaneseq
    %v2063 = vshrl.u32 %v2062, 7
    %v2064 = vsub.s32 5, %v2063
    %v2065 = vrot.slane %v1283, %v2064
    %v2066 = vlaneseq
    %v2067 = vshrl.u32 %v2066, 7
    %v2068 = vsub.s32 6, %v2067
    %v2069 = vrot.slane %v1283, %v2068
    %v2070 = vlaneseq
    %v2071 = vshrl.u32 %v2070, 7
    %v2072 = vsub.s32 7, %v2071
    %v2073 = vrot.slane %v1283, %v2072
    %v2074 = vlaneseq
    %v2075 = vshrl.u32 %v2074, 7
    %v2076 = vsub.s32 0, %v2075
    %v2077 = vrot.slane %v1297, %v2076
    %v2078 = vlaneseq
    %v2079 = vshrl.u32 %v2078, 7
    %v2080 = vsub.s32 1, %v2079
    %v2081 = vrot.slane %v1297, %v2080
    %v2082 = vlaneseq
    %v2083 = vshrl.u32 %v2082, 7
    %v2084 = vsub.s32 2, %v2083
    %v2085 = vrot.slane %v1297, %v2084
    %v2086 = vlaneseq
    %v2087 = vshrl.u32 %v2086, 7
    %v2088 = vsub.s32 3, %v2087
    %v2089 = vrot.slane %v1297, %v2088
    %v2090 = vlaneseq
    %v2091 = vshrl.u32 %v2090, 7
    %v2092 = vsub.s32 4, %v2091
    %v2093 = vrot.slane %v1297, %v2092
    %v2094 = vlaneseq
    %v2095 = vshrl.u32 %v2094, 7
    %v2096 = vsub.s32 5, %v2095
    %v2097 = vrot.slane %v1297, %v2096
    %v2098 = vlaneseq
    %v2099 = vshrl.u32 %v2098, 7
    %v2100 = vsub.s32 6, %v2099
    %v2101 = vrot.slane %v1297, %v2100
    %v2102 = vlaneseq
    %v2103 = vshrl.u32 %v2102, 7
    %v2104 = vsub.s32 7, %v2103
    %v2105 = vrot.slane %v1297, %v2104
    %v2106 = vlaneseq
    %v2107 = vshrl.u32 %v2106, 7
    %v2108 = vsub.s32 0, %v2107
    %v2109 = vrot.slane %v1311, %v2108
    %v2110 = vlaneseq
    %v2111 = vshrl.u32 %v2110, 7
    %v2112 = vsub.s32 1, %v2111
    %v2113 = vrot.slane %v1311, %v2112
    %v2114 = vlaneseq
    %v2115 = vshrl.u32 %v2114, 7
    %v2116 = vsub.s32 2, %v2115
    %v2117 = vrot.slane %v1311, %v2116
    %v2118 = vlaneseq
    %v2119 = vshrl.u32 %v2118, 7
    %v2120 = vsub.s32 3, %v2119
    %v2121 = vrot.slane %v1311, %v2120
    %v2122 = vlaneseq
    %v2123 = vshrl.u32 %v2122, 7
    %v2124 = vsub.s32 4, %v2123
    %v2125 = vrot.slane %v1311, %v2124
    %v2126 = vlaneseq
    %v2127 = vshrl.u32 %v2126, 7
    %v2128 = vsub.s32 5, %v2127
    %v2129 = vrot.slane %v1311, %v2128
    %v2130 = vlaneseq
    %v2131 = vshrl.u32 %v2130, 7
    %v2132 = vsub.s32 6, %v2131
    %v2133 = vrot.slane %v1311, %v2132
    %v2134 = vlaneseq
    %v2135 = vshrl.u32 %v2134, 7
    %v2136 = vsub.s32 7, %v2135
    %v2137 = vrot.slane %v1311, %v2136
    %v2138 = vlaneseq
    %v2139 = vshrl.u32 %v2138, 7
    %v2140 = vsub.s32 0, %v2139
    %v2141 = vrot.slane %v1325, %v2140
    %v2142 = vlaneseq
    %v2143 = vshrl.u32 %v2142, 7
    %v2144 = vsub.s32 1, %v2143
    %v2145 = vrot.slane %v1325, %v2144
    %v2146 = vlaneseq
    %v2147 = vshrl.u32 %v2146, 7
    %v2148 = vsub.s32 2, %v2147
    %v2149 = vrot.slane %v1325, %v2148
    %v2150 = vlaneseq
    %v2151 = vshrl.u32 %v2150, 7
    %v2152 = vsub.s32 3, %v2151
    %v2153 = vrot.slane %v1325, %v2152
    %v2154 = vlaneseq
    %v2155 = vshrl.u32 %v2154, 7
    %v2156 = vsub.s32 4, %v2155
    %v2157 = vrot.slane %v1325, %v2156
    %v2158 = vlaneseq
    %v2159 = vshrl.u32 %v2158, 7
    %v2160 = vsub.s32 5, %v2159
    %v2161 = vrot.slane %v1325, %v2160
    %v2162 = vlaneseq
    %v2163 = vshrl.u32 %v2162, 7
    %v2164 = vsub.s32 6, %v2163
    %v2165 = vrot.slane %v1325, %v2164
    %v2166 = vlaneseq
    %v2167 = vshrl.u32 %v2166, 7
    %v2168 = vsub.s32 7, %v2167
    %v2169 = vrot.slane %v1325, %v2168
    %v2170 = vlaneseq
    %v2171 = vshrl.u32 %v2170, 7
    %v2172 = vsub.s32 0, %v2171
    %v2173 = vrot.slane %v1339, %v2172
    %v2174 = vlaneseq
    %v2175 = vshrl.u32 %v2174, 7
    %v2176 = vsub.s32 1, %v2175
    %v2177 = vrot.slane %v1339, %v2176
    %v2178 = vlaneseq
    %v2179 = vshrl.u32 %v2178, 7
    %v2180 = vsub.s32 2, %v2179
    %v2181 = vrot.slane %v1339, %v2180
    %v2182 = vlaneseq
    %v2183 = vshrl.u32 %v2182, 7
    %v2184 = vsub.s32 3, %v2183
    %v2185 = vrot.slane %v1339, %v2184
    %v2186 = vlaneseq
    %v2187 = vshrl.u32 %v2186, 7
    %v2188 = vsub.s32 4, %v2187
    %v2189 = vrot.slane %v1339, %v2188
    %v2190 = vlaneseq
    %v2191 = vshrl.u32 %v2190, 7
    %v2192 = vsub.s32 5, %v2191
    %v2193 = vrot.slane %v1339, %v2192
    %v2194 = vlaneseq
    %v2195 = vshrl.u32 %v2194, 7
    %v2196 = vsub.s32 6, %v2195
    %v2197 = vrot.slane %v1339, %v2196
    %v2198 = vlaneseq
    %v2199 = vshrl.u32 %v2198, 7
    %v2200 = vsub.s32 7, %v2199
    %v2201 = vrot.slane %v1339, %v2200
    %v2202 = vlaneseq
    %v2203 = vshrl.u32 %v2202, 7
    %v2204 = vsub.s32 0, %v2203
    %v2205 = vrot.slane %v1353, %v2204
    %v2206 = vlaneseq
    %v2207 = vshrl.u32 %v2206, 7
    %v2208 = vsub.s32 1, %v2207
    %v2209 = vrot.slane %v1353, %v2208
    %v2210 = vlaneseq
    %v2211 = vshrl.u32 %v2210, 7
    %v2212 = vsub.s32 2, %v2211
    %v2213 = vrot.slane %v1353, %v2212
    %v2214 = vlaneseq
    %v2215 = vshrl.u32 %v2214, 7
    %v2216 = vsub.s32 3, %v2215
    %v2217 = vrot.slane %v1353, %v2216
    %v2218 = vlaneseq
    %v2219 = vshrl.u32 %v2218, 7
    %v2220 = vsub.s32 4, %v2219
    %v2221 = vrot.slane %v1353, %v2220
    %v2222 = vlaneseq
    %v2223 = vshrl.u32 %v2222, 7
    %v2224 = vsub.s32 5, %v2223
    %v2225 = vrot.slane %v1353, %v2224
    %v2226 = vlaneseq
    %v2227 = vshrl.u32 %v2226, 7
    %v2228 = vsub.s32 6, %v2227
    %v2229 = vrot.slane %v1353, %v2228
    %v2230 = vlaneseq
    %v2231 = vshrl.u32 %v2230, 7
    %v2232 = vsub.s32 7, %v2231
    %v2233 = vrot.slane %v1353, %v2232
    %v2234 = vlaneseq
    %v2235 = vshrl.u32 %v2234, 7
    %v2236 = vsub.s32 0, %v2235
    %v2237 = vrot.slane %v1367, %v2236
    %v2238 = vlaneseq
    %v2239 = vshrl.u32 %v2238, 7
    %v2240 = vsub.s32 1, %v2239
    %v2241 = vrot.slane %v1367, %v2240
    %v2242 = vlaneseq
    %v2243 = vshrl.u32 %v2242, 7
    %v2244 = vsub.s32 2, %v2243
    %v2245 = vrot.slane %v1367, %v2244
    %v2246 = vlaneseq
    %v2247 = vshrl.u32 %v2246, 7
    %v2248 = vsub.s32 3, %v2247
    %v2249 = vrot.slane %v1367, %v2248
    %v2250 = vlaneseq
    %v2251 = vshrl.u32 %v2250, 7
    %v2252 = vsub.s32 4, %v2251
    %v2253 = vrot.slane %v1367, %v2252
    %v2254 = vlaneseq
    %v2255 = vshrl.u32 %v2254, 7
    %v2256 = vsub.s32 5, %v2255
    %v2257 = vrot.slane %v1367, %v2256
    %v2258 = vlaneseq
    %v2259 = vshrl.u32 %v2258, 7
    %v2260 = vsub.s32 6, %v2259
    %v2261 = vrot.slane %v1367, %v2260
    %v2262 = vlaneseq
    %v2263 = vshrl.u32 %v2262, 7
    %v2264 = vsub.s32 7, %v2263
    %v2265 = vrot.slane %v1367, %v2264
    %v2266 = vlaneseq
    %v2267 = vshrl.u32 %v2266, 7
    %v2268 = vsub.s32 0, %v2267
    %v2269 = vrot.slane %v1381, %v2268
    %v2270 = vlaneseq
    %v2271 = vshrl.u32 %v2270, 7
    %v2272 = vsub.s32 1, %v2271
    %v2273 = vrot.slane %v1381, %v2272
    %v2274 = vlaneseq
    %v2275 = vshrl.u32 %v2274, 7
    %v2276 = vsub.s32 2, %v2275
    %v2277 = vrot.slane %v1381, %v2276
    %v2278 = vlaneseq
    %v2279 = vshrl.u32 %v2278, 7
    %v2280 = vsub.s32 3, %v2279
    %v2281 = vrot.slane %v1381, %v2280
    %v2282 = vlaneseq
    %v2283 = vshrl.u32 %v2282, 7
    %v2284 = vsub.s32 4, %v2283
    %v2285 = vrot.slane %v1381, %v2284
    %v2286 = vlaneseq
    %v2287 = vshrl.u32 %v2286, 7
    %v2288 = vsub.s32 5, %v2287
    %v2289 = vrot.slane %v1381, %v2288
    %v2290 = vlaneseq
    %v2291 = vshrl.u32 %v2290, 7
    %v2292 = vsub.s32 6, %v2291
    %v2293 = vrot.slane %v1381, %v2292
    %v2294 = vlaneseq
    %v2295 = vshrl.u32 %v2294, 7
    %v2296 = vsub.s32 7, %v2295
    %v2297 = vrot.slane %v1381, %v2296
    %v2298 = vlaneseq
    %v2299 = vshrl.u32 %v2298, 7
    %v2300 = vsub.s32 0, %v2299
    %v2301 = vrot.slane %v1395, %v2300
    %v2302 = vlaneseq
    %v2303 = vshrl.u32 %v2302, 7
    %v2304 = vsub.s32 1, %v2303
    %v2305 = vrot.slane %v1395, %v2304
    %v2306 = vlaneseq
    %v2307 = vshrl.u32 %v2306, 7
    %v2308 = vsub.s32 2, %v2307
    %v2309 = vrot.slane %v1395, %v2308
    %v2310 = vlaneseq
    %v2311 = vshrl.u32 %v2310, 7
    %v2312 = vsub.s32 3, %v2311
    %v2313 = vrot.slane %v1395, %v2312
    %v2314 = vlaneseq
    %v2315 = vshrl.u32 %v2314, 7
    %v2316 = vsub.s32 4, %v2315
    %v2317 = vrot.slane %v1395, %v2316
    %v2318 = vlaneseq
    %v2319 = vshrl.u32 %v2318, 7
    %v2320 = vsub.s32 5, %v2319
    %v2321 = vrot.slane %v1395, %v2320
    %v2322 = vlaneseq
    %v2323 = vshrl.u32 %v2322, 7
    %v2324 = vsub.s32 6, %v2323
    %v2325 = vrot.slane %v1395, %v2324
    %v2326 = vlaneseq
    %v2327 = vshrl.u32 %v2326, 7
    %v2328 = vsub.s32 7, %v2327
    %v2329 = vrot.slane %v1395, %v2328
    %v2330 = vlaneseq
    %v2331 = vshrl.u32 %v2330, 7
    %v2332 = vsub.s32 0, %v2331
    %v2333 = vrot.slane %v1409, %v2332
    %v2334 = vlaneseq
    %v2335 = vshrl.u32 %v2334, 7
    %v2336 = vsub.s32 1, %v2335
    %v2337 = vrot.slane %v1409, %v2336
    %v2338 = vlaneseq
    %v2339 = vshrl.u32 %v2338, 7
    %v2340 = vsub.s32 2, %v2339
    %v2341 = vrot.slane %v1409, %v2340
    %v2342 = vlaneseq
    %v2343 = vshrl.u32 %v2342, 7
    %v2344 = vsub.s32 3, %v2343
    %v2345 = vrot.slane %v1409, %v2344
    %v2346 = vlaneseq
    %v2347 = vshrl.u32 %v2346, 7
    %v2348 = vsub.s32 4, %v2347
    %v2349 = vrot.slane %v1409, %v2348
    %v2350 = vlaneseq
    %v2351 = vshrl.u32 %v2350, 7
    %v2352 = vsub.s32 5, %v2351
    %v2353 = vrot.slane %v1409, %v2352
    %v2354 = vlaneseq
    %v2355 = vshrl.u32 %v2354, 7
    %v2356 = vsub.s32 6, %v2355
    %v2357 = vrot.slane %v1409, %v2356
    %v2358 = vlaneseq
    %v2359 = vshrl.u32 %v2358, 7
    %v2360 = vsub.s32 7, %v2359
    %v2361 = vrot.slane %v1409, %v2360
    %v2362 = vlaneseq
    %v2363 = vshrl.u32 %v2362, 7
    %v2364 = vsub.s32 0, %v2363
    %v2365 = vrot.slane %v1423, %v2364
    %v2366 = vlaneseq
    %v2367 = vshrl.u32 %v2366, 7
    %v2368 = vsub.s32 1, %v2367
    %v2369 = vrot.slane %v1423, %v2368
    %v2370 = vlaneseq
    %v2371 = vshrl.u32 %v2370, 7
    %v2372 = vsub.s32 2, %v2371
    %v2373 = vrot.slane %v1423, %v2372
    %v2374 = vlaneseq
    %v2375 = vshrl.u32 %v2374, 7
    %v2376 = vsub.s32 3, %v2375
    %v2377 = vrot.slane %v1423, %v2376
    %v2378 = vlaneseq
    %v2379 = vshrl.u32 %v2378, 7
    %v2380 = vsub.s32 4, %v2379
    %v2381 = vrot.slane %v1423, %v2380
    %v2382 = vlaneseq
    %v2383 = vshrl.u32 %v2382, 7
    %v2384 = vsub.s32 5, %v2383
    %v2385 = vrot.slane %v1423, %v2384
    %v2386 = vlaneseq
    %v2387 = vshrl.u32 %v2386, 7
    %v2388 = vsub.s32 6, %v2387
    %v2389 = vrot.slane %v1423, %v2388
    %v2390 = vlaneseq
    %v2391 = vshrl.u32 %v2390, 7
    %v2392 = vsub.s32 7, %v2391
    %v2393 = vrot.slane %v1423, %v2392
    %v2394 = vlaneseq
    %v2395 = vshrl.u32 %v2394, 7
    %v2396 = vsub.s32 0, %v2395
    %v2397 = vrot.slane %v1437, %v2396
    %v2398 = vlaneseq
    %v2399 = vshrl.u32 %v2398, 7
    %v2400 = vsub.s32 1, %v2399
    %v2401 = vrot.slane %v1437, %v2400
    %v2402 = vlaneseq
    %v2403 = vshrl.u32 %v2402, 7
    %v2404 = vsub.s32 2, %v2403
    %v2405 = vrot.slane %v1437, %v2404
    %v2406 = vlaneseq
    %v2407 = vshrl.u32 %v2406, 7
    %v2408 = vsub.s32 3, %v2407
    %v2409 = vrot.slane %v1437, %v2408
    %v2410 = vlaneseq
    %v2411 = vshrl.u32 %v2410, 7
    %v2412 = vsub.s32 4, %v2411
    %v2413 = vrot.slane %v1437, %v2412
    %v2414 = vlaneseq
    %v2415 = vshrl.u32 %v2414, 7
    %v2416 = vsub.s32 5, %v2415
    %v2417 = vrot.slane %v1437, %v2416
    %v2418 = vlaneseq
    %v2419 = vshrl.u32 %v2418, 7
    %v2420 = vsub.s32 6, %v2419
    %v2421 = vrot.slane %v1437, %v2420
    %v2422 = vlaneseq
    %v2423 = vshrl.u32 %v2422, 7
    %v2424 = vsub.s32 7, %v2423
    %v2425 = vrot.slane %v1437, %v2424
    %v2426 = vlaneseq
    %v2427 = vshrl.u32 %v2426, 7
    %v2428 = vsub.s32 0, %v2427
    %v2429 = vrot.slane %v1451, %v2428
    %v2430 = vlaneseq
    %v2431 = vshrl.u32 %v2430, 7
    %v2432 = vsub.s32 1, %v2431
    %v2433 = vrot.slane %v1451, %v2432
    %v2434 = vlaneseq
    %v2435 = vshrl.u32 %v2434, 7
    %v2436 = vsub.s32 2, %v2435
    %v2437 = vrot.slane %v1451, %v2436
    %v2438 = vlaneseq
    %v2439 = vshrl.u32 %v2438, 7
    %v2440 = vsub.s32 3, %v2439
    %v2441 = vrot.slane %v1451, %v2440
    %v2442 = vlaneseq
    %v2443 = vshrl.u32 %v2442, 7
    %v2444 = vsub.s32 4, %v2443
    %v2445 = vrot.slane %v1451, %v2444
    %v2446 = vlaneseq
    %v2447 = vshrl.u32 %v2446, 7
    %v2448 = vsub.s32 5, %v2447
    %v2449 = vrot.slane %v1451, %v2448
    %v2450 = vlaneseq
    %v2451 = vshrl.u32 %v2450, 7
    %v2452 = vsub.s32 6, %v2451
    %v2453 = vrot.slane %v1451, %v2452
    %v2454 = vlaneseq
    %v2455 = vshrl.u32 %v2454, 7
    %v2456 = vsub.s32 7, %v2455
    %v2457 = vrot.slane %v1451, %v2456
    %v2458 = vlaneseq
    %v2459 = vshrl.u32 %v2458, 7
    %v2460 = vsub.s32 0, %v2459
    %v2461 = vrot.slane %v1465, %v2460
    %v2462 = vlaneseq
    %v2463 = vshrl.u32 %v2462, 7
    %v2464 = vsub.s32 1, %v2463
    %v2465 = vrot.slane %v1465, %v2464
    %v2466 = vlaneseq
    %v2467 = vshrl.u32 %v2466, 7
    %v2468 = vsub.s32 2, %v2467
    %v2469 = vrot.slane %v1465, %v2468
    %v2470 = vlaneseq
    %v2471 = vshrl.u32 %v2470, 7
    %v2472 = vsub.s32 3, %v2471
    %v2473 = vrot.slane %v1465, %v2472
    %v2474 = vlaneseq
    %v2475 = vshrl.u32 %v2474, 7
    %v2476 = vsub.s32 4, %v2475
    %v2477 = vrot.slane %v1465, %v2476
    %v2478 = vlaneseq
    %v2479 = vshrl.u32 %v2478, 7
    %v2480 = vsub.s32 5, %v2479
    %v2481 = vrot.slane %v1465, %v2480
    %v2482 = vlaneseq
    %v2483 = vshrl.u32 %v2482, 7
    %v2484 = vsub.s32 6, %v2483
    %v2485 = vrot.slane %v1465, %v2484
    %v2486 = vlaneseq
    %v2487 = vshrl.u32 %v2486, 7
    %v2488 = vsub.s32 7, %v2487
    %v2489 = vrot.slane %v1465, %v2488
    %v2490 = vcombine.low %v1469, %v1473
    %v2491 = vcombine.low %v1477, %v1481
    %v2492 = vcombine.low %v1485, %v1489
    %v2493 = vcombine.low %v1493, %v1497
    %v2495 = vunpack.c.l.s4 1966171168
    %v2496 = vunpack.c.0.s8 %v2495
    %v2497 = vlaneseq
    %v2498 = vshrl.u32 %v2497, 7
    %v2499 = vsub.s32 %v2496, %v2498
    %v2500 = vrot.slane %v2490, %v2499
    %v2502 = vunpack.c.l.s4 1966171168
    %v2503 = vunpack.c.0.s8 %v2502
    %v2504 = vlaneseq
    %v2505 = vshrl.u32 %v2504, 7
    %v2506 = vsub.s32 %v2503, %v2505
    %v2507 = vrot.slane %v2491, %v2506
    %v2509 = vunpack.c.l.s4 1966171168
    %v2510 = vunpack.c.0.s8 %v2509
    %v2511 = vlaneseq
    %v2512 = vshrl.u32 %v2511, 7
    %v2513 = vsub.s32 %v2510, %v2512
    %v2514 = vrot.slane %v2492, %v2513
    %v2516 = vunpack.c.l.s4 1966171168
    %v2517 = vunpack.c.0.s8 %v2516
    %v2518 = vlaneseq
    %v2519 = vshrl.u32 %v2518, 7
    %v2520 = vsub.s32 %v2517, %v2519
    %v2521 = vrot.slane %v2493, %v2520
    %v2522 = vcombine.low %v2500, %v2507
    %v2523 = vcombine.low %v2514, %v2521
    %v2525 = vunpack.c.l.s4 1966171168
    %v2526 = vunpack.c.0.s8 %v2525
    %v2527 = vlaneseq
    %v2528 = vshrl.u32 %v2527, 7
    %v2529 = vsub.s32 %v2526, %v2528
    %v2530 = vrot.slane %v2522, %v2529
    %v2532 = vunpack.c.l.s4 1966171168
    %v2533 = vunpack.c.0.s8 %v2532
    %v2534 = vlaneseq
    %v2535 = vshrl.u32 %v2534, 7
    %v2536 = vsub.s32 %v2533, %v2535
    %v2537 = vrot.slane %v2523, %v2536
    %v2538 = vcombine.low %v2530, %v2537
    %v2539 = vcombine.low %v1501, %v1505
    %v2540 = vcombine.low %v1509, %v1513
    %v2541 = vcombine.low %v1517, %v1521
    %v2542 = vcombine.low %v1525, %v1529
    %v2544 = vunpack.c.l.s4 1966171168
    %v2545 = vunpack.c.0.s8 %v2544
    %v2546 = vlaneseq
    %v2547 = vshrl.u32 %v2546, 7
    %v2548 = vsub.s32 %v2545, %v2547
    %v2549 = vrot.slane %v2539, %v2548
    %v2551 = vunpack.c.l.s4 1966171168
    %v2552 = vunpack.c.0.s8 %v2551
    %v2553 = vlaneseq
    %v2554 = vshrl.u32 %v2553, 7
    %v2555 = vsub.s32 %v2552, %v2554
    %v2556 = vrot.slane %v2540, %v2555
    %v2558 = vunpack.c.l.s4 1966171168
    %v2559 = vunpack.c.0.s8 %v2558
    %v2560 = vlaneseq
    %v2561 = vshrl.u32 %v2560, 7
    %v2562 = vsub.s32 %v2559, %v2561
    %v2563 = vrot.slane %v2541, %v2562
    %v2565 = vunpack.c.l.s4 1966171168
    %v2566 = vunpack.c.0.s8 %v2565
    %v2567 = vlaneseq
    %v2568 = vshrl.u32 %v2567, 7
    %v2569 = vsub.s32 %v2566, %v2568
    %v2570 = vrot.slane %v2542, %v2569
    %v2571 = vcombine.low %v2549, %v2556
    %v2572 = vcombine.low %v2563, %v2570
    %v2574 = vunpack.c.l.s4 1966171168
    %v2575 = vunpack.c.0.s8 %v2574
    %v2576 = vlaneseq
    %v2577 = vshrl.u32 %v2576, 7
    %v2578 = vsub.s32 %v2575, %v2577
    %v2579 = vrot.slane %v2571, %v2578
    %v2581 = vunpack.c.l.s4 1966171168
    %v2582 = vunpack.c.0.s8 %v2581
    %v2583 = vlaneseq
    %v2584 = vshrl.u32 %v2583, 7
    %v2585 = vsub.s32 %v2582, %v2584
    %v2586 = vrot.slane %v2572, %v2585
    %v2587 = vcombine.low %v2579, %v2586
    %v2588 = vcombine.low %v1533, %v1537
    %v2589 = vcombine.low %v1541, %v1545
    %v2590 = vcombine.low %v1549, %v1553
    %v2591 = vcombine.low %v1557, %v1561
    %v2593 = vunpack.c.l.s4 1966171168
    %v2594 = vunpack.c.0.s8 %v2593
    %v2595 = vlaneseq
    %v2596 = vshrl.u32 %v2595, 7
    %v2597 = vsub.s32 %v2594, %v2596
    %v2598 = vrot.slane %v2588, %v2597
    %v2600 = vunpack.c.l.s4 1966171168
    %v2601 = vunpack.c.0.s8 %v2600
    %v2602 = vlaneseq
    %v2603 = vshrl.u32 %v2602, 7
    %v2604 = vsub.s32 %v2601, %v2603
    %v2605 = vrot.slane %v2589, %v2604
    %v2607 = vunpack.c.l.s4 1966171168
    %v2608 = vunpack.c.0.s8 %v2607
    %v2609 = vlaneseq
    %v2610 = vshrl.u32 %v2609, 7
    %v2611 = vsub.s32 %v2608, %v2610
    %v2612 = vrot.slane %v2590, %v2611
    %v2614 = vunpack.c.l.s4 1966171168
    %v2615 = vunpack.c.0.s8 %v2614
    %v2616 = vlaneseq
    %v2617 = vshrl.u32 %v2616, 7
    %v2618 = vsub.s32 %v2615, %v2617
    %v2619 = vrot.slane %v2591, %v2618
    %v2620 = vcombine.low %v2598, %v2605
    %v2621 = vcombine.low %v2612, %v2619
    %v2623 = vunpack.c.l.s4 1966171168
    %v2624 = vunpack.c.0.s8 %v2623
    %v2625 = vlaneseq
    %v2626 = vshrl.u32 %v2625, 7
    %v2627 = vsub.s32 %v2624, %v2626
    %v2628 = vrot.slane %v2620, %v2627
    %v2630 = vunpack.c.l.s4 1966171168
    %v2631 = vunpack.c.0.s8 %v2630
    %v2632 = vlaneseq
    %v2633 = vshrl.u32 %v2632, 7
    %v2634 = vsub.s32 %v2631, %v2633
    %v2635 = vrot.slane %v2621, %v2634
    %v2636 = vcombine.low %v2628, %v2635
    %v2637 = vcombine.low %v1565, %v1569
    %v2638 = vcombine.low %v1573, %v1577
    %v2639 = vcombine.low %v1581, %v1585
    %v2640 = vcombine.low %v1589, %v1593
    %v2642 = vunpack.c.l.s4 1966171168
    %v2643 = vunpack.c.0.s8 %v2642
    %v2644 = vlaneseq
    %v2645 = vshrl.u32 %v2644, 7
    %v2646 = vsub.s32 %v2643, %v2645
    %v2647 = vrot.slane %v2637, %v2646
    %v2649 = vunpack.c.l.s4 1966171168
    %v2650 = vunpack.c.0.s8 %v2649
    %v2651 = vlaneseq
    %v2652 = vshrl.u32 %v2651, 7
    %v2653 = vsub.s32 %v2650, %v2652
    %v2654 = vrot.slane %v2638, %v2653
    %v2656 = vunpack.c.l.s4 1966171168
    %v2657 = vunpack.c.0.s8 %v2656
    %v2658 = vlaneseq
    %v2659 = vshrl.u32 %v2658, 7
    %v2660 = vsub.s32 %v2657, %v2659
    %v2661 = vrot.slane %v2639, %v2660
    %v2663 = vunpack.c.l.s4 1966171168
    %v2664 = vunpack.c.0.s8 %v2663
    %v2665 = vlaneseq
    %v2666 = vshrl.u32 %v2665, 7
    %v2667 = vsub.s32 %v2664, %v2666
    %v2668 = vrot.slane %v2640, %v2667
    %v2669 = vcombine.low %v2647, %v2654
    %v2670 = vcombine.low %v2661, %v2668
    %v2672 = vunpack.c.l.s4 1966171168
    %v2673 = vunpack.c.0.s8 %v2672
    %v2674 = vlaneseq
    %v2675 = vshrl.u32 %v2674, 7
    %v2676 = vsub.s32 %v2673, %v2675
    %v2677 = vrot.slane %v2669, %v2676
    %v2679 = vunpack.c.l.s4 1966171168
    %v2680 = vunpack.c.0.s8 %v2679
    %v2681 = vlaneseq
    %v2682 = vshrl.u32 %v2681, 7
    %v2683 = vsub.s32 %v2680, %v2682
    %v2684 = vrot.slane %v2670, %v2683
    %v2685 = vcombine.low %v2677, %v2684
    %v2686 = vcombine.low %v1597, %v1601
    %v2687 = vcombine.low %v1605, %v1609
    %v2688 = vcombine.low %v1613, %v1617
    %v2689 = vcombine.low %v1621, %v1625
    %v2691 = vunpack.c.l.s4 1966171168
    %v2692 = vunpack.c.0.s8 %v2691
    %v2693 = vlaneseq
    %v2694 = vshrl.u32 %v2693, 7
    %v2695 = vsub.s32 %v2692, %v2694
    %v2696 = vrot.slane %v2686, %v2695
    %v2698 = vunpack.c.l.s4 1966171168
    %v2699 = vunpack.c.0.s8 %v2698
    %v2700 = vlaneseq
    %v2701 = vshrl.u32 %v2700, 7
    %v2702 = vsub.s32 %v2699, %v2701
    %v2703 = vrot.slane %v2687, %v2702
    %v2705 = vunpack.c.l.s4 1966171168
    %v2706 = vunpack.c.0.s8 %v2705
    %v2707 = vlaneseq
    %v2708 = vshrl.u32 %v2707, 7
    %v2709 = vsub.s32 %v2706, %v2708
    %v2710 = vrot.slane %v2688, %v2709
    %v2712 = vunpack.c.l.s4 1966171168
    %v2713 = vunpack.c.0.s8 %v2712
    %v2714 = vlaneseq
    %v2715 = vshrl.u32 %v2714, 7
    %v2716 = vsub.s32 %v2713, %v2715
    %v2717 = vrot.slane %v2689, %v2716
    %v2718 = vcombine.low %v2696, %v2703
    %v2719 = vcombine.low %v2710, %v2717
    %v2721 = vunpack.c.l.s4 1966171168
    %v2722 = vunpack.c.0.s8 %v2721
    %v2723 = vlaneseq
    %v2724 = vshrl.u32 %v2723, 7
    %v2725 = vsub.s32 %v2722, %v2724
    %v2726 = vrot.slane %v2718, %v2725
    %v2728 = vunpack.c.l.s4 1966171168
    %v2729 = vunpack.c.0.s8 %v2728
    %v2730 = vlaneseq
    %v2731 = vshrl.u32 %v2730, 7
    %v2732 = vsub.s32 %v2729, %v2731
    %v2733 = vrot.slane %v2719, %v2732
    %v2734 = vcombine.low %v2726, %v2733
    %v2735 = vcombine.low %v1629, %v1633
    %v2736 = vcombine.low %v1637, %v1641
    %v2737 = vcombine.low %v1645, %v1649
    %v2738 = vcombine.low %v1653, %v1657
    %v2740 = vunpack.c.l.s4 1966171168
    %v2741 = vunpack.c.0.s8 %v2740
    %v2742 = vlaneseq
    %v2743 = vshrl.u32 %v2742, 7
    %v2744 = vsub.s32 %v2741, %v2743
    %v2745 = vrot.slane %v2735, %v2744
    %v2747 = vunpack.c.l.s4 1966171168
    %v2748 = vunpack.c.0.s8 %v2747
    %v2749 = vlaneseq
    %v2750 = vshrl.u32 %v2749, 7
    %v2751 = vsub.s32 %v2748, %v2750
    %v2752 = vrot.slane %v2736, %v2751
    %v2754 = vunpack.c.l.s4 1966171168
    %v2755 = vunpack.c.0.s8 %v2754
    %v2756 = vlaneseq
    %v2757 = vshrl.u32 %v2756, 7
    %v2758 = vsub.s32 %v2755, %v2757
    %v2759 = vrot.slane %v2737, %v2758
    %v2761 = vunpack.c.l.s4 1966171168
    %v2762 = vunpack.c.0.s8 %v2761
    %v2763 = vlaneseq
    %v2764 = vshrl.u32 %v2763, 7
    %v2765 = vsub.s32 %v2762, %v2764
    %v2766 = vrot.slane %v2738, %v2765
    %v2767 = vcombine.low %v2745, %v2752
    %v2768 = vcombine.low %v2759, %v2766
    %v2770 = vunpack.c.l.s4 1966171168
    %v2771 = vunpack.c.0.s8 %v2770
    %v2772 = vlaneseq
    %v2773 = vshrl.u32 %v2772, 7
    %v2774 = vsub.s32 %v2771, %v2773
    %v2775 = vrot.slane %v2767, %v2774
    %v2777 = vunpack.c.l.s4 1966171168
    %v2778 = vunpack.c.0.s8 %v2777
    %v2779 = vlaneseq
    %v2780 = vshrl.u32 %v2779, 7
    %v2781 = vsub.s32 %v2778, %v2780
    %v2782 = vrot.slane %v2768, %v2781
    %v2783 = vcombine.low %v2775, %v2782
    %v2784 = vcombine.low %v1661, %v1665
    %v2785 = vcombine.low %v1669, %v1673
    %v2786 = vcombine.low %v1677, %v1681
    %v2787 = vcombine.low %v1685, %v1689
    %v2789 = vunpack.c.l.s4 1966171168
    %v2790 = vunpack.c.0.s8 %v2789
    %v2791 = vlaneseq
    %v2792 = vshrl.u32 %v2791, 7
    %v2793 = vsub.s32 %v2790, %v2792
    %v2794 = vrot.slane %v2784, %v2793
    %v2796 = vunpack.c.l.s4 1966171168
    %v2797 = vunpack.c.0.s8 %v2796
    %v2798 = vlaneseq
    %v2799 = vshrl.u32 %v2798, 7
    %v2800 = vsub.s32 %v2797, %v2799
    %v2801 = vrot.slane %v2785, %v2800
    %v2803 = vunpack.c.l.s4 1966171168
    %v2804 = vunpack.c.0.s8 %v2803
    %v2805 = vlaneseq
    %v2806 = vshrl.u32 %v2805, 7
    %v2807 = vsub.s32 %v2804, %v2806
    %v2808 = vrot.slane %v2786, %v2807
    %v2810 = vunpack.c.l.s4 1966171168
    %v2811 = vunpack.c.0.s8 %v2810
    %v2812 = vlaneseq
    %v2813 = vshrl.u32 %v2812, 7
    %v2814 = vsub.s32 %v2811, %v2813
    %v2815 = vrot.slane %v2787, %v2814
    %v2816 = vcombine.low %v2794, %v2801
    %v2817 = vcombine.low %v2808, %v2815
    %v2819 = vunpack.c.l.s4 1966171168
    %v2820 = vunpack.c.0.s8 %v2819
    %v2821 = vlaneseq
    %v2822 = vshrl.u32 %v2821, 7
    %v2823 = vsub.s32 %v2820, %v2822
    %v2824 = vrot.slane %v2816, %v2823
    %v2826 = vunpack.c.l.s4 1966171168
    %v2827 = vunpack.c.0.s8 %v2826
    %v2828 = vlaneseq
    %v2829 = vshrl.u32 %v2828, 7
    %v2830 = vsub.s32 %v2827, %v2829
    %v2831 = vrot.slane %v2817, %v2830
    %v2832 = vcombine.low %v2824, %v2831
    %v2833 = vcombine.low %v1693, %v1697
    %v2834 = vcombine.low %v1701, %v1705
    %v2835 = vcombine.low %v1709, %v1713
    %v2836 = vcombine.low %v1717, %v1721
    %v2838 = vunpack.c.l.s4 1966171168
    %v2839 = vunpack.c.0.s8 %v2838
    %v2840 = vlaneseq
    %v2841 = vshrl.u32 %v2840, 7
    %v2842 = vsub.s32 %v2839, %v2841
    %v2843 = vrot.slane %v2833, %v2842
    %v2845 = vunpack.c.l.s4 1966171168
    %v2846 = vunpack.c.0.s8 %v2845
    %v2847 = vlaneseq
    %v2848 = vshrl.u32 %v2847, 7
    %v2849 = vsub.s32 %v2846, %v2848
    %v2850 = vrot.slane %v2834, %v2849
    %v2852 = vunpack.c.l.s4 1966171168
    %v2853 = vunpack.c.0.s8 %v2852
    %v2854 = vlaneseq
    %v2855 = vshrl.u32 %v2854, 7
    %v2856 = vsub.s32 %v2853, %v2855
    %v2857 = vrot.slane %v2835, %v2856
    %v2859 = vunpack.c.l.s4 1966171168
    %v2860 = vunpack.c.0.s8 %v2859
    %v2861 = vlaneseq
    %v2862 = vshrl.u32 %v2861, 7
    %v2863 = vsub.s32 %v2860, %v2862
    %v2864 = vrot.slane %v2836, %v2863
    %v2865 = vcombine.low %v2843, %v2850
    %v2866 = vcombine.low %v2857, %v2864
    %v2868 = vunpack.c.l.s4 1966171168
    %v2869 = vunpack.c.0.s8 %v2868
    %v2870 = vlaneseq
    %v2871 = vshrl.u32 %v2870, 7
    %v2872 = vsub.s32 %v2869, %v2871
    %v2873 = vrot.slane %v2865, %v2872
    %v2875 = vunpack.c.l.s4 1966171168
    %v2876 = vunpack.c.0.s8 %v2875
    %v2877 = vlaneseq
    %v2878 = vshrl.u32 %v2877, 7
    %v2879 = vsub.s32 %v2876, %v2878
    %v2880 = vrot.slane %v2866, %v2879
    %v2881 = vcombine.low %v2873, %v2880
    %v2882 = vcombine.low %v1725, %v1729
    %v2883 = vcombine.low %v1733, %v1737
    %v2884 = vcombine.low %v1741, %v1745
    %v2885 = vcombine.low %v1749, %v1753
    %v2887 = vunpack.c.l.s4 1966171168
    %v2888 = vunpack.c.0.s8 %v2887
    %v2889 = vlaneseq
    %v2890 = vshrl.u32 %v2889, 7
    %v2891 = vsub.s32 %v2888, %v2890
    %v2892 = vrot.slane %v2882, %v2891
    %v2894 = vunpack.c.l.s4 1966171168
    %v2895 = vunpack.c.0.s8 %v2894
    %v2896 = vlaneseq
    %v2897 = vshrl.u32 %v2896, 7
    %v2898 = vsub.s32 %v2895, %v2897
    %v2899 = vrot.slane %v2883, %v2898
    %v2901 = vunpack.c.l.s4 1966171168
    %v2902 = vunpack.c.0.s8 %v2901
    %v2903 = vlaneseq
    %v2904 = vshrl.u32 %v2903, 7
    %v2905 = vsub.s32 %v2902, %v2904
    %v2906 = vrot.slane %v2884, %v2905
    %v2908 = vunpack.c.l.s4 1966171168
    %v2909 = vunpack.c.0.s8 %v2908
    %v2910 = vlaneseq
    %v2911 = vshrl.u32 %v2910, 7
    %v2912 = vsub.s32 %v2909, %v2911
    %v2913 = vrot.slane %v2885, %v2912
    %v2914 = vcombine.low %v2892, %v2899
    %v2915 = vcombine.low %v2906, %v2913
    %v2917 = vunpack.c.l.s4 1966171168
    %v2918 = vunpack.c.0.s8 %v2917
    %v2919 = vlaneseq
    %v2920 = vshrl.u32 %v2919, 7
    %v2921 = vsub.s32 %v2918, %v2920
    %v2922 = vrot.slane %v2914, %v2921
    %v2924 = vunpack.c.l.s4 1966171168
    %v2925 = vunpack.c.0.s8 %v2924
    %v2926 = vlaneseq
    %v2927 = vshrl.u32 %v2926, 7
    %v2928 = vsub.s32 %v2925, %v2927
    %v2929 = vrot.slane %v2915, %v2928
    %v2930 = vcombine.low %v2922, %v2929
    %v2931 = vcombine.low %v1757, %v1761
    %v2932 = vcombine.low %v1765, %v1769
    %v2933 = vcombine.low %v1773, %v1777
    %v2934 = vcombine.low %v1781, %v1785
    %v2936 = vunpack.c.l.s4 1966171168
    %v2937 = vunpack.c.0.s8 %v2936
    %v2938 = vlaneseq
    %v2939 = vshrl.u32 %v2938, 7
    %v2940 = vsub.s32 %v2937, %v2939
    %v2941 = vrot.slane %v2931, %v2940
    %v2943 = vunpack.c.l.s4 1966171168
    %v2944 = vunpack.c.0.s8 %v2943
    %v2945 = vlaneseq
    %v2946 = vshrl.u32 %v2945, 7
    %v2947 = vsub.s32 %v2944, %v2946
    %v2948 = vrot.slane %v2932, %v2947
    %v2950 = vunpack.c.l.s4 1966171168
    %v2951 = vunpack.c.0.s8 %v2950
    %v2952 = vlaneseq
    %v2953 = vshrl.u32 %v2952, 7
    %v2954 = vsub.s32 %v2951, %v2953
    %v2955 = vrot.slane %v2933, %v2954
    %v2957 = vunpack.c.l.s4 1966171168
    %v2958 = vunpack.c.0.s8 %v2957
    %v2959 = vlaneseq
    %v2960 = vshrl.u32 %v2959, 7
    %v2961 = vsub.s32 %v2958, %v2960
    %v2962 = vrot.slane %v2934, %v2961
    %v2963 = vcombine.low %v2941, %v2948
    %v2964 = vcombine.low %v2955, %v2962
    %v2966 = vunpack.c.l.s4 1966171168
    %v2967 = vunpack.c.0.s8 %v2966
    %v2968 = vlaneseq
    %v2969 = vshrl.u32 %v2968, 7
    %v2970 = vsub.s32 %v2967, %v2969
    %v2971 = vrot.slane %v2963, %v2970
    %v2973 = vunpack.c.l.s4 1966171168
    %v2974 = vunpack.c.0.s8 %v2973
    %v2975 = vlaneseq
    %v2976 = vshrl.u32 %v2975, 7
    %v2977 = vsub.s32 %v2974, %v2976
    %v2978 = vrot.slane %v2964, %v2977
    %v2979 = vcombine.low %v2971, %v2978
    %v2980 = vcombine.low %v1789, %v1793
    %v2981 = vcombine.low %v1797, %v1801
    %v2982 = vcombine.low %v1805, %v1809
    %v2983 = vcombine.low %v1813, %v1817
    %v2985 = vunpack.c.l.s4 1966171168
    %v2986 = vunpack.c.0.s8 %v2985
    %v2987 = vlaneseq
    %v2988 = vshrl.u32 %v2987, 7
    %v2989 = vsub.s32 %v2986, %v2988
    %v2990 = vrot.slane %v2980, %v2989
    %v2992 = vunpack.c.l.s4 1966171168
    %v2993 = vunpack.c.0.s8 %v2992
    %v2994 = vlaneseq
    %v2995 = vshrl.u32 %v2994, 7
    %v2996 = vsub.s32 %v2993, %v2995
    %v2997 = vrot.slane %v2981, %v2996
    %v2999 = vunpack.c.l.s4 1966171168
    %v3000 = vunpack.c.0.s8 %v2999
    %v3001 = vlaneseq
    %v3002 = vshrl.u32 %v3001, 7
    %v3003 = vsub.s32 %v3000, %v3002
    %v3004 = vrot.slane %v2982, %v3003
    %v3006 = vunpack.c.l.s4 1966171168
    %v3007 = vunpack.c.0.s8 %v3006
    %v3008 = vlaneseq
    %v3009 = vshrl.u32 %v3008, 7
    %v3010 = vsub.s32 %v3007, %v3009
    %v3011 = vrot.slane %v2983, %v3010
    %v3012 = vcombine.low %v2990, %v2997
    %v3013 = vcombine.low %v3004, %v3011
    %v3015 = vunpack.c.l.s4 1966171168
    %v3016 = vunpack.c.0.s8 %v3015
    %v3017 = vlaneseq
    %v3018 = vshrl.u32 %v3017, 7
    %v3019 = vsub.s32 %v3016, %v3018
    %v3020 = vrot.slane %v3012, %v3019
    %v3022 = vunpack.c.l.s4 1966171168
    %v3023 = vunpack.c.0.s8 %v3022
    %v3024 = vlaneseq
    %v3025 = vshrl.u32 %v3024, 7
    %v3026 = vsub.s32 %v3023, %v3025
    %v3027 = vrot.slane %v3013, %v3026
    %v3028 = vcombine.low %v3020, %v3027
    %v3029 = vcombine.low %v1821, %v1825
    %v3030 = vcombine.low %v1829, %v1833
    %v3031 = vcombine.low %v1837, %v1841
    %v3032 = vcombine.low %v1845, %v1849
    %v3034 = vunpack.c.l.s4 1966171168
    %v3035 = vunpack.c.0.s8 %v3034
    %v3036 = vlaneseq
    %v3037 = vshrl.u32 %v3036, 7
    %v3038 = vsub.s32 %v3035, %v3037
    %v3039 = vrot.slane %v3029, %v3038
    %v3041 = vunpack.c.l.s4 1966171168
    %v3042 = vunpack.c.0.s8 %v3041
    %v3043 = vlaneseq
    %v3044 = vshrl.u32 %v3043, 7
    %v3045 = vsub.s32 %v3042, %v3044
    %v3046 = vrot.slane %v3030, %v3045
    %v3048 = vunpack.c.l.s4 1966171168
    %v3049 = vunpack.c.0.s8 %v3048
    %v3050 = vlaneseq
    %v3051 = vshrl.u32 %v3050, 7
    %v3052 = vsub.s32 %v3049, %v3051
    %v3053 = vrot.slane %v3031, %v3052
    %v3055 = vunpack.c.l.s4 1966171168
    %v3056 = vunpack.c.0.s8 %v3055
    %v3057 = vlaneseq
    %v3058 = vshrl.u32 %v3057, 7
    %v3059 = vsub.s32 %v3056, %v3058
    %v3060 = vrot.slane %v3032, %v3059
    %v3061 = vcombine.low %v3039, %v3046
    %v3062 = vcombine.low %v3053, %v3060
    %v3064 = vunpack.c.l.s4 1966171168
    %v3065 = vunpack.c.0.s8 %v3064
    %v3066 = vlaneseq
    %v3067 = vshrl.u32 %v3066, 7
    %v3068 = vsub.s32 %v3065, %v3067
    %v3069 = vrot.slane %v3061, %v3068
    %v3071 = vunpack.c.l.s4 1966171168
    %v3072 = vunpack.c.0.s8 %v3071
    %v3073 = vlaneseq
    %v3074 = vshrl.u32 %v3073, 7
    %v3075 = vsub.s32 %v3072, %v3074
    %v3076 = vrot.slane %v3062, %v3075
    %v3077 = vcombine.low %v3069, %v3076
    %v3078 = vcombine.low %v1853, %v1857
    %v3079 = vcombine.low %v1861, %v1865
    %v3080 = vcombine.low %v1869, %v1873
    %v3081 = vcombine.low %v1877, %v1881
    %v3083 = vunpack.c.l.s4 1966171168
    %v3084 = vunpack.c.0.s8 %v3083
    %v3085 = vlaneseq
    %v3086 = vshrl.u32 %v3085, 7
    %v3087 = vsub.s32 %v3084, %v3086
    %v3088 = vrot.slane %v3078, %v3087
    %v3090 = vunpack.c.l.s4 1966171168
    %v3091 = vunpack.c.0.s8 %v3090
    %v3092 = vlaneseq
    %v3093 = vshrl.u32 %v3092, 7
    %v3094 = vsub.s32 %v3091, %v3093
    %v3095 = vrot.slane %v3079, %v3094
    %v3097 = vunpack.c.l.s4 1966171168
    %v3098 = vunpack.c.0.s8 %v3097
    %v3099 = vlaneseq
    %v3100 = vshrl.u32 %v3099, 7
    %v3101 = vsub.s32 %v3098, %v3100
    %v3102 = vrot.slane %v3080, %v3101
    %v3104 = vunpack.c.l.s4 1966171168
    %v3105 = vunpack.c.0.s8 %v3104
    %v3106 = vlaneseq
    %v3107 = vshrl.u32 %v3106, 7
    %v3108 = vsub.s32 %v3105, %v3107
    %v3109 = vrot.slane %v3081, %v3108
    %v3110 = vcombine.low %v3088, %v3095
    %v3111 = vcombine.low %v3102, %v3109
    %v3113 = vunpack.c.l.s4 1966171168
    %v3114 = vunpack.c.0.s8 %v3113
    %v3115 = vlaneseq
    %v3116 = vshrl.u32 %v3115, 7
    %v3117 = vsub.s32 %v3114, %v3116
    %v3118 = vrot.slane %v3110, %v3117
    %v3120 = vunpack.c.l.s4 1966171168
    %v3121 = vunpack.c.0.s8 %v3120
    %v3122 = vlaneseq
    %v3123 = vshrl.u32 %v3122, 7
    %v3124 = vsub.s32 %v3121, %v3123
    %v3125 = vrot.slane %v3111, %v3124
    %v3126 = vcombine.low %v3118, %v3125
    %v3127 = vcombine.low %v1885, %v1889
    %v3128 = vcombine.low %v1893, %v1897
    %v3129 = vcombine.low %v1901, %v1905
    %v3130 = vcombine.low %v1909, %v1913
    %v3132 = vunpack.c.l.s4 1966171168
    %v3133 = vunpack.c.0.s8 %v3132
    %v3134 = vlaneseq
    %v3135 = vshrl.u32 %v3134, 7
    %v3136 = vsub.s32 %v3133, %v3135
    %v3137 = vrot.slane %v3127, %v3136
    %v3139 = vunpack.c.l.s4 1966171168
    %v3140 = vunpack.c.0.s8 %v3139
    %v3141 = vlaneseq
    %v3142 = vshrl.u32 %v3141, 7
    %v3143 = vsub.s32 %v3140, %v3142
    %v3144 = vrot.slane %v3128, %v3143
    %v3146 = vunpack.c.l.s4 1966171168
    %v3147 = vunpack.c.0.s8 %v3146
    %v3148 = vlaneseq
    %v3149 = vshrl.u32 %v3148, 7
    %v3150 = vsub.s32 %v3147, %v3149
    %v3151 = vrot.slane %v3129, %v3150
    %v3153 = vunpack.c.l.s4 1966171168
    %v3154 = vunpack.c.0.s8 %v3153
    %v3155 = vlaneseq
    %v3156 = vshrl.u32 %v3155, 7
    %v3157 = vsub.s32 %v3154, %v3156
    %v3158 = vrot.slane %v3130, %v3157
    %v3159 = vcombine.low %v3137, %v3144
    %v3160 = vcombine.low %v3151, %v3158
    %v3162 = vunpack.c.l.s4 1966171168
    %v3163 = vunpack.c.0.s8 %v3162
    %v3164 = vlaneseq
    %v3165 = vshrl.u32 %v3164, 7
    %v3166 = vsub.s32 %v3163, %v3165
    %v3167 = vrot.slane %v3159, %v3166
    %v3169 = vunpack.c.l.s4 1966171168
    %v3170 = vunpack.c.0.s8 %v3169
    %v3171 = vlaneseq
    %v3172 = vshrl.u32 %v3171, 7
    %v3173 = vsub.s32 %v3170, %v3172
    %v3174 = vrot.slane %v3160, %v3173
    %v3175 = vcombine.low %v3167, %v3174
    %v3176 = vcombine.low %v1917, %v1921
    %v3177 = vcombine.low %v1925, %v1929
    %v3178 = vcombine.low %v1933, %v1937
    %v3179 = vcombine.low %v1941, %v1945
    %v3181 = vunpack.c.l.s4 1966171168
    %v3182 = vunpack.c.0.s8 %v3181
    %v3183 = vlaneseq
    %v3184 = vshrl.u32 %v3183, 7
    %v3185 = vsub.s32 %v3182, %v3184
    %v3186 = vrot.slane %v3176, %v3185
    %v3188 = vunpack.c.l.s4 1966171168
    %v3189 = vunpack.c.0.s8 %v3188
    %v3190 = vlaneseq
    %v3191 = vshrl.u32 %v3190, 7
    %v3192 = vsub.s32 %v3189, %v3191
    %v3193 = vrot.slane %v3177, %v3192
    %v3195 = vunpack.c.l.s4 1966171168
    %v3196 = vunpack.c.0.s8 %v3195
    %v3197 = vlaneseq
    %v3198 = vshrl.u32 %v3197, 7
    %v3199 = vsub.s32 %v3196, %v3198
    %v3200 = vrot.slane %v3178, %v3199
    %v3202 = vunpack.c.l.s4 1966171168
    %v3203 = vunpack.c.0.s8 %v3202
    %v3204 = vlaneseq
    %v3205 = vshrl.u32 %v3204, 7
    %v3206 = vsub.s32 %v3203, %v3205
    %v3207 = vrot.slane %v3179, %v3206
    %v3208 = vcombine.low %v3186, %v3193
    %v3209 = vcombine.low %v3200, %v3207
    %v3211 = vunpack.c.l.s4 1966171168
    %v3212 = vunpack.c.0.s8 %v3211
    %v3213 = vlaneseq
    %v3214 = vshrl.u32 %v3213, 7
    %v3215 = vsub.s32 %v3212, %v3214
    %v3216 = vrot.slane %v3208, %v3215
    %v3218 = vunpack.c.l.s4 1966171168
    %v3219 = vunpack.c.0.s8 %v3218
    %v3220 = vlaneseq
    %v3221 = vshrl.u32 %v3220, 7
    %v3222 = vsub.s32 %v3219, %v3221
    %v3223 = vrot.slane %v3209, %v3222
    %v3224 = vcombine.low %v3216, %v3223
    %v3225 = vcombine.low %v1949, %v1953
    %v3226 = vcombine.low %v1957, %v1961
    %v3227 = vcombine.low %v1965, %v1969
    %v3228 = vcombine.low %v1973, %v1977
    %v3230 = vunpack.c.l.s4 1966171168
    %v3231 = vunpack.c.0.s8 %v3230
    %v3232 = vlaneseq
    %v3233 = vshrl.u32 %v3232, 7
    %v3234 = vsub.s32 %v3231, %v3233
    %v3235 = vrot.slane %v3225, %v3234
    %v3237 = vunpack.c.l.s4 1966171168
    %v3238 = vunpack.c.0.s8 %v3237
    %v3239 = vlaneseq
    %v3240 = vshrl.u32 %v3239, 7
    %v3241 = vsub.s32 %v3238, %v3240
    %v3242 = vrot.slane %v3226, %v3241
    %v3244 = vunpack.c.l.s4 1966171168
    %v3245 = vunpack.c.0.s8 %v3244
    %v3246 = vlaneseq
    %v3247 = vshrl.u32 %v3246, 7
    %v3248 = vsub.s32 %v3245, %v3247
    %v3249 = vrot.slane %v3227, %v3248
    %v3251 = vunpack.c.l.s4 1966171168
    %v3252 = vunpack.c.0.s8 %v3251
    %v3253 = vlaneseq
    %v3254 = vshrl.u32 %v3253, 7
    %v3255 = vsub.s32 %v3252, %v3254
    %v3256 = vrot.slane %v3228, %v3255
    %v3257 = vcombine.low %v3235, %v3242
    %v3258 = vcombine.low %v3249, %v3256
    %v3260 = vunpack.c.l.s4 1966171168
    %v3261 = vunpack.c.0.s8 %v3260
    %v3262 = vlaneseq
    %v3263 = vshrl.u32 %v3262, 7
    %v3264 = vsub.s32 %v3261, %v3263
    %v3265 = vrot.slane %v3257, %v3264
    %v3267 = vunpack.c.l.s4 1966171168
    %v3268 = vunpack.c.0.s8 %v3267
    %v3269 = vlaneseq
    %v3270 = vshrl.u32 %v3269, 7
    %v3271 = vsub.s32 %v3268, %v3270
    %v3272 = vrot.slane %v3258, %v3271
    %v3273 = vcombine.low %v3265, %v3272
    %v3274 = vcombine.low %v1981, %v1985
    %v3275 = vcombine.low %v1989, %v1993
    %v3276 = vcombine.low %v1997, %v2001
    %v3277 = vcombine.low %v2005, %v2009
    %v3279 = vunpack.c.l.s4 1966171168
    %v3280 = vunpack.c.0.s8 %v3279
    %v3281 = vlaneseq
    %v3282 = vshrl.u32 %v3281, 7
    %v3283 = vsub.s32 %v3280, %v3282
    %v3284 = vrot.slane %v3274, %v3283
    %v3286 = vunpack.c.l.s4 1966171168
    %v3287 = vunpack.c.0.s8 %v3286
    %v3288 = vlaneseq
    %v3289 = vshrl.u32 %v3288, 7
    %v3290 = vsub.s32 %v3287, %v3289
    %v3291 = vrot.slane %v3275, %v3290
    %v3293 = vunpack.c.l.s4 1966171168
    %v3294 = vunpack.c.0.s8 %v3293
    %v3295 = vlaneseq
    %v3296 = vshrl.u32 %v3295, 7
    %v3297 = vsub.s32 %v3294, %v3296
    %v3298 = vrot.slane %v3276, %v3297
    %v3300 = vunpack.c.l.s4 1966171168
    %v3301 = vunpack.c.0.s8 %v3300
    %v3302 = vlaneseq
    %v3303 = vshrl.u32 %v3302, 7
    %v3304 = vsub.s32 %v3301, %v3303
    %v3305 = vrot.slane %v3277, %v3304
    %v3306 = vcombine.low %v3284, %v3291
    %v3307 = vcombine.low %v3298, %v3305
    %v3309 = vunpack.c.l.s4 1966171168
    %v3310 = vunpack.c.0.s8 %v3309
    %v3311 = vlaneseq
    %v3312 = vshrl.u32 %v3311, 7
    %v3313 = vsub.s32 %v3310, %v3312
    %v3314 = vrot.slane %v3306, %v3313
    %v3316 = vunpack.c.l.s4 1966171168
    %v3317 = vunpack.c.0.s8 %v3316
    %v3318 = vlaneseq
    %v3319 = vshrl.u32 %v3318, 7
    %v3320 = vsub.s32 %v3317, %v3319
    %v3321 = vrot.slane %v3307, %v3320
    %v3322 = vcombine.low %v3314, %v3321
    %v3323 = vcombine.low %v2013, %v2017
    %v3324 = vcombine.low %v2021, %v2025
    %v3325 = vcombine.low %v2029, %v2033
    %v3326 = vcombine.low %v2037, %v2041
    %v3328 = vunpack.c.l.s4 1966171168
    %v3329 = vunpack.c.0.s8 %v3328
    %v3330 = vlaneseq
    %v3331 = vshrl.u32 %v3330, 7
    %v3332 = vsub.s32 %v3329, %v3331
    %v3333 = vrot.slane %v3323, %v3332
    %v3335 = vunpack.c.l.s4 1966171168
    %v3336 = vunpack.c.0.s8 %v3335
    %v3337 = vlaneseq
    %v3338 = vshrl.u32 %v3337, 7
    %v3339 = vsub.s32 %v3336, %v3338
    %v3340 = vrot.slane %v3324, %v3339
    %v3342 = vunpack.c.l.s4 1966171168
    %v3343 = vunpack.c.0.s8 %v3342
    %v3344 = vlaneseq
    %v3345 = vshrl.u32 %v3344, 7
    %v3346 = vsub.s32 %v3343, %v3345
    %v3347 = vrot.slane %v3325, %v3346
    %v3349 = vunpack.c.l.s4 1966171168
    %v3350 = vunpack.c.0.s8 %v3349
    %v3351 = vlaneseq
    %v3352 = vshrl.u32 %v3351, 7
    %v3353 = vsub.s32 %v3350, %v3352
    %v3354 = vrot.slane %v3326, %v3353
    %v3355 = vcombine.low %v3333, %v3340
    %v3356 = vcombine.low %v3347, %v3354
    %v3358 = vunpack.c.l.s4 1966171168
    %v3359 = vunpack.c.0.s8 %v3358
    %v3360 = vlaneseq
    %v3361 = vshrl.u32 %v3360, 7
    %v3362 = vsub.s32 %v3359, %v3361
    %v3363 = vrot.slane %v3355, %v3362
    %v3365 = vunpack.c.l.s4 1966171168
    %v3366 = vunpack.c.0.s8 %v3365
    %v3367 = vlaneseq
    %v3368 = vshrl.u32 %v3367, 7
    %v3369 = vsub.s32 %v3366, %v3368
    %v3370 = vrot.slane %v3356, %v3369
    %v3371 = vcombine.low %v3363, %v3370
    %v3372 = vcombine.low %v2045, %v2049
    %v3373 = vcombine.low %v2053, %v2057
    %v3374 = vcombine.low %v2061, %v2065
    %v3375 = vcombine.low %v2069, %v2073
    %v3377 = vunpack.c.l.s4 1966171168
    %v3378 = vunpack.c.0.s8 %v3377
    %v3379 = vlaneseq
    %v3380 = vshrl.u32 %v3379, 7
    %v3381 = vsub.s32 %v3378, %v3380
    %v3382 = vrot.slane %v3372, %v3381
    %v3384 = vunpack.c.l.s4 1966171168
    %v3385 = vunpack.c.0.s8 %v3384
    %v3386 = vlaneseq
    %v3387 = vshrl.u32 %v3386, 7
    %v3388 = vsub.s32 %v3385, %v3387
    %v3389 = vrot.slane %v3373, %v3388
    %v3391 = vunpack.c.l.s4 1966171168
    %v3392 = vunpack.c.0.s8 %v3391
    %v3393 = vlaneseq
    %v3394 = vshrl.u32 %v3393, 7
    %v3395 = vsub.s32 %v3392, %v3394
    %v3396 = vrot.slane %v3374, %v3395
    %v3398 = vunpack.c.l.s4 1966171168
    %v3399 = vunpack.c.0.s8 %v3398
    %v3400 = vlaneseq
    %v3401 = vshrl.u32 %v3400, 7
    %v3402 = vsub.s32 %v3399, %v3401
    %v3403 = vrot.slane %v3375, %v3402
    %v3404 = vcombine.low %v3382, %v3389
    %v3405 = vcombine.low %v3396, %v3403
    %v3407 = vunpack.c.l.s4 1966171168
    %v3408 = vunpack.c.0.s8 %v3407
    %v3409 = vlaneseq
    %v3410 = vshrl.u32 %v3409, 7
    %v3411 = vsub.s32 %v3408, %v3410
    %v3412 = vrot.slane %v3404, %v3411
    %v3414 = vunpack.c.l.s4 1966171168
    %v3415 = vunpack.c.0.s8 %v3414
    %v3416 = vlaneseq
    %v3417 = vshrl.u32 %v3416, 7
    %v3418 = vsub.s32 %v3415, %v3417
    %v3419 = vrot.slane %v3405, %v3418
    %v3420 = vcombine.low %v3412, %v3419
    %v3421 = vcombine.low %v2077, %v2081
    %v3422 = vcombine.low %v2085, %v2089
    %v3423 = vcombine.low %v2093, %v2097
    %v3424 = vcombine.low %v2101, %v2105
    %v3426 = vunpack.c.l.s4 1966171168
    %v3427 = vunpack.c.0.s8 %v3426
    %v3428 = vlaneseq
    %v3429 = vshrl.u32 %v3428, 7
    %v3430 = vsub.s32 %v3427, %v3429
    %v3431 = vrot.slane %v3421, %v3430
    %v3433 = vunpack.c.l.s4 1966171168
    %v3434 = vunpack.c.0.s8 %v3433
    %v3435 = vlaneseq
    %v3436 = vshrl.u32 %v3435, 7
    %v3437 = vsub.s32 %v3434, %v3436
    %v3438 = vrot.slane %v3422, %v3437
    %v3440 = vunpack.c.l.s4 1966171168
    %v3441 = vunpack.c.0.s8 %v3440
    %v3442 = vlaneseq
    %v3443 = vshrl.u32 %v3442, 7
    %v3444 = vsub.s32 %v3441, %v3443
    %v3445 = vrot.slane %v3423, %v3444
    %v3447 = vunpack.c.l.s4 1966171168
    %v3448 = vunpack.c.0.s8 %v3447
    %v3449 = vlaneseq
    %v3450 = vshrl.u32 %v3449, 7
    %v3451 = vsub.s32 %v3448, %v3450
    %v3452 = vrot.slane %v3424, %v3451
    %v3453 = vcombine.low %v3431, %v3438
    %v3454 = vcombine.low %v3445, %v3452
    %v3456 = vunpack.c.l.s4 1966171168
    %v3457 = vunpack.c.0.s8 %v3456
    %v3458 = vlaneseq
    %v3459 = vshrl.u32 %v3458, 7
    %v3460 = vsub.s32 %v3457, %v3459
    %v3461 = vrot.slane %v3453, %v3460
    %v3463 = vunpack.c.l.s4 1966171168
    %v3464 = vunpack.c.0.s8 %v3463
    %v3465 = vlaneseq
    %v3466 = vshrl.u32 %v3465, 7
    %v3467 = vsub.s32 %v3464, %v3466
    %v3468 = vrot.slane %v3454, %v3467
    %v3469 = vcombine.low %v3461, %v3468
    %v3470 = vcombine.low %v2109, %v2113
    %v3471 = vcombine.low %v2117, %v2121
    %v3472 = vcombine.low %v2125, %v2129
    %v3473 = vcombine.low %v2133, %v2137
    %v3475 = vunpack.c.l.s4 1966171168
    %v3476 = vunpack.c.0.s8 %v3475
    %v3477 = vlaneseq
    %v3478 = vshrl.u32 %v3477, 7
    %v3479 = vsub.s32 %v3476, %v3478
    %v3480 = vrot.slane %v3470, %v3479
    %v3482 = vunpack.c.l.s4 1966171168
    %v3483 = vunpack.c.0.s8 %v3482
    %v3484 = vlaneseq
    %v3485 = vshrl.u32 %v3484, 7
    %v3486 = vsub.s32 %v3483, %v3485
    %v3487 = vrot.slane %v3471, %v3486
    %v3489 = vunpack.c.l.s4 1966171168
    %v3490 = vunpack.c.0.s8 %v3489
    %v3491 = vlaneseq
    %v3492 = vshrl.u32 %v3491, 7
    %v3493 = vsub.s32 %v3490, %v3492
    %v3494 = vrot.slane %v3472, %v3493
    %v3496 = vunpack.c.l.s4 1966171168
    %v3497 = vunpack.c.0.s8 %v3496
    %v3498 = vlaneseq
    %v3499 = vshrl.u32 %v3498, 7
    %v3500 = vsub.s32 %v3497, %v3499
    %v3501 = vrot.slane %v3473, %v3500
    %v3502 = vcombine.low %v3480, %v3487
    %v3503 = vcombine.low %v3494, %v3501
    %v3505 = vunpack.c.l.s4 1966171168
    %v3506 = vunpack.c.0.s8 %v3505
    %v3507 = vlaneseq
    %v3508 = vshrl.u32 %v3507, 7
    %v3509 = vsub.s32 %v3506, %v3508
    %v3510 = vrot.slane %v3502, %v3509
    %v3512 = vunpack.c.l.s4 1966171168
    %v3513 = vunpack.c.0.s8 %v3512
    %v3514 = vlaneseq
    %v3515 = vshrl.u32 %v3514, 7
    %v3516 = vsub.s32 %v3513, %v3515
    %v3517 = vrot.slane %v3503, %v3516
    %v3518 = vcombine.low %v3510, %v3517
    %v3519 = vcombine.low %v2141, %v2145
    %v3520 = vcombine.low %v2149, %v2153
    %v3521 = vcombine.low %v2157, %v2161
    %v3522 = vcombine.low %v2165, %v2169
    %v3524 = vunpack.c.l.s4 1966171168
    %v3525 = vunpack.c.0.s8 %v3524
    %v3526 = vlaneseq
    %v3527 = vshrl.u32 %v3526, 7
    %v3528 = vsub.s32 %v3525, %v3527
    %v3529 = vrot.slane %v3519, %v3528
    %v3531 = vunpack.c.l.s4 1966171168
    %v3532 = vunpack.c.0.s8 %v3531
    %v3533 = vlaneseq
    %v3534 = vshrl.u32 %v3533, 7
    %v3535 = vsub.s32 %v3532, %v3534
    %v3536 = vrot.slane %v3520, %v3535
    %v3538 = vunpack.c.l.s4 1966171168
    %v3539 = vunpack.c.0.s8 %v3538
    %v3540 = vlaneseq
    %v3541 = vshrl.u32 %v3540, 7
    %v3542 = vsub.s32 %v3539, %v3541
    %v3543 = vrot.slane %v3521, %v3542
    %v3545 = vunpack.c.l.s4 1966171168
    %v3546 = vunpack.c.0.s8 %v3545
    %v3547 = vlaneseq
    %v3548 = vshrl.u32 %v3547, 7
    %v3549 = vsub.s32 %v3546, %v3548
    %v3550 = vrot.slane %v3522, %v3549
    %v3551 = vcombine.low %v3529, %v3536
    %v3552 = vcombine.low %v3543, %v3550
    %v3554 = vunpack.c.l.s4 1966171168
    %v3555 = vunpack.c.0.s8 %v3554
    %v3556 = vlaneseq
    %v3557 = vshrl.u32 %v3556, 7
    %v3558 = vsub.s32 %v3555, %v3557
    %v3559 = vrot.slane %v3551, %v3558
    %v3561 = vunpack.c.l.s4 1966171168
    %v3562 = vunpack.c.0.s8 %v3561
    %v3563 = vlaneseq
    %v3564 = vshrl.u32 %v3563, 7
    %v3565 = vsub.s32 %v3562, %v3564
    %v3566 = vrot.slane %v3552, %v3565
    %v3567 = vcombine.low %v3559, %v3566
    %v3568 = vcombine.low %v2173, %v2177
    %v3569 = vcombine.low %v2181, %v2185
    %v3570 = vcombine.low %v2189, %v2193
    %v3571 = vcombine.low %v2197, %v2201
    %v3573 = vunpack.c.l.s4 1966171168
    %v3574 = vunpack.c.0.s8 %v3573
    %v3575 = vlaneseq
    %v3576 = vshrl.u32 %v3575, 7
    %v3577 = vsub.s32 %v3574, %v3576
    %v3578 = vrot.slane %v3568, %v3577
    %v3580 = vunpack.c.l.s4 1966171168
    %v3581 = vunpack.c.0.s8 %v3580
    %v3582 = vlaneseq
    %v3583 = vshrl.u32 %v3582, 7
    %v3584 = vsub.s32 %v3581, %v3583
    %v3585 = vrot.slane %v3569, %v3584
    %v3587 = vunpack.c.l.s4 1966171168
    %v3588 = vunpack.c.0.s8 %v3587
    %v3589 = vlaneseq
    %v3590 = vshrl.u32 %v3589, 7
    %v3591 = vsub.s32 %v3588, %v3590
    %v3592 = vrot.slane %v3570, %v3591
    %v3594 = vunpack.c.l.s4 1966171168
    %v3595 = vunpack.c.0.s8 %v3594
    %v3596 = vlaneseq
    %v3597 = vshrl.u32 %v3596, 7
    %v3598 = vsub.s32 %v3595, %v3597
    %v3599 = vrot.slane %v3571, %v3598
    %v3600 = vcombine.low %v3578, %v3585
    %v3601 = vcombine.low %v3592, %v3599
    %v3603 = vunpack.c.l.s4 1966171168
    %v3604 = vunpack.c.0.s8 %v3603
    %v3605 = vlaneseq
    %v3606 = vshrl.u32 %v3605, 7
    %v3607 = vsub.s32 %v3604, %v3606
    %v3608 = vrot.slane %v3600, %v3607
    %v3610 = vunpack.c.l.s4 1966171168
    %v3611 = vunpack.c.0.s8 %v3610
    %v3612 = vlaneseq
    %v3613 = vshrl.u32 %v3612, 7
    %v3614 = vsub.s32 %v3611, %v3613
    %v3615 = vrot.slane %v3601, %v3614
    %v3616 = vcombine.low %v3608, %v3615
    %v3617 = vcombine.low %v2205, %v2209
    %v3618 = vcombine.low %v2213, %v2217
    %v3619 = vcombine.low %v2221, %v2225
    %v3620 = vcombine.low %v2229, %v2233
    %v3622 = vunpack.c.l.s4 1966171168
    %v3623 = vunpack.c.0.s8 %v3622
    %v3624 = vlaneseq
    %v3625 = vshrl.u32 %v3624, 7
    %v3626 = vsub.s32 %v3623, %v3625
    %v3627 = vrot.slane %v3617, %v3626
    %v3629 = vunpack.c.l.s4 1966171168
    %v3630 = vunpack.c.0.s8 %v3629
    %v3631 = vlaneseq
    %v3632 = vshrl.u32 %v3631, 7
    %v3633 = vsub.s32 %v3630, %v3632
    %v3634 = vrot.slane %v3618, %v3633
    %v3636 = vunpack.c.l.s4 1966171168
    %v3637 = vunpack.c.0.s8 %v3636
    %v3638 = vlaneseq
    %v3639 = vshrl.u32 %v3638, 7
    %v3640 = vsub.s32 %v3637, %v3639
    %v3641 = vrot.slane %v3619, %v3640
    %v3643 = vunpack.c.l.s4 1966171168
    %v3644 = vunpack.c.0.s8 %v3643
    %v3645 = vlaneseq
    %v3646 = vshrl.u32 %v3645, 7
    %v3647 = vsub.s32 %v3644, %v3646
    %v3648 = vrot.slane %v3620, %v3647
    %v3649 = vcombine.low %v3627, %v3634
    %v3650 = vcombine.low %v3641, %v3648
    %v3652 = vunpack.c.l.s4 1966171168
    %v3653 = vunpack.c.0.s8 %v3652
    %v3654 = vlaneseq
    %v3655 = vshrl.u32 %v3654, 7
    %v3656 = vsub.s32 %v3653, %v3655
    %v3657 = vrot.slane %v3649, %v3656
    %v3659 = vunpack.c.l.s4 1966171168
    %v3660 = vunpack.c.0.s8 %v3659
    %v3661 = vlaneseq
    %v3662 = vshrl.u32 %v3661, 7
    %v3663 = vsub.s32 %v3660, %v3662
    %v3664 = vrot.slane %v3650, %v3663
    %v3665 = vcombine.low %v3657, %v3664
    %v3666 = vcombine.low %v2237, %v2241
    %v3667 = vcombine.low %v2245, %v2249
    %v3668 = vcombine.low %v2253, %v2257
    %v3669 = vcombine.low %v2261, %v2265
    %v3671 = vunpack.c.l.s4 1966171168
    %v3672 = vunpack.c.0.s8 %v3671
    %v3673 = vlaneseq
    %v3674 = vshrl.u32 %v3673, 7
    %v3675 = vsub.s32 %v3672, %v3674
    %v3676 = vrot.slane %v3666, %v3675
    %v3678 = vunpack.c.l.s4 1966171168
    %v3679 = vunpack.c.0.s8 %v3678
    %v3680 = vlaneseq
    %v3681 = vshrl.u32 %v3680, 7
    %v3682 = vsub.s32 %v3679, %v3681
    %v3683 = vrot.slane %v3667, %v3682
    %v3685 = vunpack.c.l.s4 1966171168
    %v3686 = vunpack.c.0.s8 %v3685
    %v3687 = vlaneseq
    %v3688 = vshrl.u32 %v3687, 7
    %v3689 = vsub.s32 %v3686, %v3688
    %v3690 = vrot.slane %v3668, %v3689
    %v3692 = vunpack.c.l.s4 1966171168
    %v3693 = vunpack.c.0.s8 %v3692
    %v3694 = vlaneseq
    %v3695 = vshrl.u32 %v3694, 7
    %v3696 = vsub.s32 %v3693, %v3695
    %v3697 = vrot.slane %v3669, %v3696
    %v3698 = vcombine.low %v3676, %v3683
    %v3699 = vcombine.low %v3690, %v3697
    %v3701 = vunpack.c.l.s4 1966171168
    %v3702 = vunpack.c.0.s8 %v3701
    %v3703 = vlaneseq
    %v3704 = vshrl.u32 %v3703, 7
    %v3705 = vsub.s32 %v3702, %v3704
    %v3706 = vrot.slane %v3698, %v3705
    %v3708 = vunpack.c.l.s4 1966171168
    %v3709 = vunpack.c.0.s8 %v3708
    %v3710 = vlaneseq
    %v3711 = vshrl.u32 %v3710, 7
    %v3712 = vsub.s32 %v3709, %v3711
    %v3713 = vrot.slane %v3699, %v3712
    %v3714 = vcombine.low %v3706, %v3713
    %v3715 = vcombine.low %v2269, %v2273
    %v3716 = vcombine.low %v2277, %v2281
    %v3717 = vcombine.low %v2285, %v2289
    %v3718 = vcombine.low %v2293, %v2297
    %v3720 = vunpack.c.l.s4 1966171168
    %v3721 = vunpack.c.0.s8 %v3720
    %v3722 = vlaneseq
    %v3723 = vshrl.u32 %v3722, 7
    %v3724 = vsub.s32 %v3721, %v3723
    %v3725 = vrot.slane %v3715, %v3724
    %v3727 = vunpack.c.l.s4 1966171168
    %v3728 = vunpack.c.0.s8 %v3727
    %v3729 = vlaneseq
    %v3730 = vshrl.u32 %v3729, 7
    %v3731 = vsub.s32 %v3728, %v3730
    %v3732 = vrot.slane %v3716, %v3731
    %v3734 = vunpack.c.l.s4 1966171168
    %v3735 = vunpack.c.0.s8 %v3734
    %v3736 = vlaneseq
    %v3737 = vshrl.u32 %v3736, 7
    %v3738 = vsub.s32 %v3735, %v3737
    %v3739 = vrot.slane %v3717, %v3738
    %v3741 = vunpack.c.l.s4 1966171168
    %v3742 = vunpack.c.0.s8 %v3741
    %v3743 = vlaneseq
    %v3744 = vshrl.u32 %v3743, 7
    %v3745 = vsub.s32 %v3742, %v3744
    %v3746 = vrot.slane %v3718, %v3745
    %v3747 = vcombine.low %v3725, %v3732
    %v3748 = vcombine.low %v3739, %v3746
    %v3750 = vunpack.c.l.s4 1966171168
    %v3751 = vunpack.c.0.s8 %v3750
    %v3752 = vlaneseq
    %v3753 = vshrl.u32 %v3752, 7
    %v3754 = vsub.s32 %v3751, %v3753
    %v3755 = vrot.slane %v3747, %v3754
    %v3757 = vunpack.c.l.s4 1966171168
    %v3758 = vunpack.c.0.s8 %v3757
    %v3759 = vlaneseq
    %v3760 = vshrl.u32 %v3759, 7
    %v3761 = vsub.s32 %v3758, %v3760
    %v3762 = vrot.slane %v3748, %v3761
    %v3763 = vcombine.low %v3755, %v3762
    %v3764 = vcombine.low %v2301, %v2305
    %v3765 = vcombine.low %v2309, %v2313
    %v3766 = vcombine.low %v2317, %v2321
    %v3767 = vcombine.low %v2325, %v2329
    %v3769 = vunpack.c.l.s4 1966171168
    %v3770 = vunpack.c.0.s8 %v3769
    %v3771 = vlaneseq
    %v3772 = vshrl.u32 %v3771, 7
    %v3773 = vsub.s32 %v3770, %v3772
    %v3774 = vrot.slane %v3764, %v3773
    %v3776 = vunpack.c.l.s4 1966171168
    %v3777 = vunpack.c.0.s8 %v3776
    %v3778 = vlaneseq
    %v3779 = vshrl.u32 %v3778, 7
    %v3780 = vsub.s32 %v3777, %v3779
    %v3781 = vrot.slane %v3765, %v3780
    %v3783 = vunpack.c.l.s4 1966171168
    %v3784 = vunpack.c.0.s8 %v3783
    %v3785 = vlaneseq
    %v3786 = vshrl.u32 %v3785, 7
    %v3787 = vsub.s32 %v3784, %v3786
    %v3788 = vrot.slane %v3766, %v3787
    %v3790 = vunpack.c.l.s4 1966171168
    %v3791 = vunpack.c.0.s8 %v3790
    %v3792 = vlaneseq
    %v3793 = vshrl.u32 %v3792, 7
    %v3794 = vsub.s32 %v3791, %v3793
    %v3795 = vrot.slane %v3767, %v3794
    %v3796 = vcombine.low %v3774, %v3781
    %v3797 = vcombine.low %v3788, %v3795
    %v3799 = vunpack.c.l.s4 1966171168
    %v3800 = vunpack.c.0.s8 %v3799
    %v3801 = vlaneseq
    %v3802 = vshrl.u32 %v3801, 7
    %v3803 = vsub.s32 %v3800, %v3802
    %v3804 = vrot.slane %v3796, %v3803
    %v3806 = vunpack.c.l.s4 1966171168
    %v3807 = vunpack.c.0.s8 %v3806
    %v3808 = vlaneseq
    %v3809 = vshrl.u32 %v3808, 7
    %v3810 = vsub.s32 %v3807, %v3809
    %v3811 = vrot.slane %v3797, %v3810
    %v3812 = vcombine.low %v3804, %v3811
    %v3813 = vcombine.low %v2333, %v2337
    %v3814 = vcombine.low %v2341, %v2345
    %v3815 = vcombine.low %v2349, %v2353
    %v3816 = vcombine.low %v2357, %v2361
    %v3818 = vunpack.c.l.s4 1966171168
    %v3819 = vunpack.c.0.s8 %v3818
    %v3820 = vlaneseq
    %v3821 = vshrl.u32 %v3820, 7
    %v3822 = vsub.s32 %v3819, %v3821
    %v3823 = vrot.slane %v3813, %v3822
    %v3825 = vunpack.c.l.s4 1966171168
    %v3826 = vunpack.c.0.s8 %v3825
    %v3827 = vlaneseq
    %v3828 = vshrl.u32 %v3827, 7
    %v3829 = vsub.s32 %v3826, %v3828
    %v3830 = vrot.slane %v3814, %v3829
    %v3832 = vunpack.c.l.s4 1966171168
    %v3833 = vunpack.c.0.s8 %v3832
    %v3834 = vlaneseq
    %v3835 = vshrl.u32 %v3834, 7
    %v3836 = vsub.s32 %v3833, %v3835
    %v3837 = vrot.slane %v3815, %v3836
    %v3839 = vunpack.c.l.s4 1966171168
    %v3840 = vunpack.c.0.s8 %v3839
    %v3841 = vlaneseq
    %v3842 = vshrl.u32 %v3841, 7
    %v3843 = vsub.s32 %v3840, %v3842
    %v3844 = vrot.slane %v3816, %v3843
    %v3845 = vcombine.low %v3823, %v3830
    %v3846 = vcombine.low %v3837, %v3844
    %v3848 = vunpack.c.l.s4 1966171168
    %v3849 = vunpack.c.0.s8 %v3848
    %v3850 = vlaneseq
    %v3851 = vshrl.u32 %v3850, 7
    %v3852 = vsub.s32 %v3849, %v3851
    %v3853 = vrot.slane %v3845, %v3852
    %v3855 = vunpack.c.l.s4 1966171168
    %v3856 = vunpack.c.0.s8 %v3855
    %v3857 = vlaneseq
    %v3858 = vshrl.u32 %v3857, 7
    %v3859 = vsub.s32 %v3856, %v3858
    %v3860 = vrot.slane %v3846, %v3859
    %v3861 = vcombine.low %v3853, %v3860
    %v3862 = vcombine.low %v2365, %v2369
    %v3863 = vcombine.low %v2373, %v2377
    %v3864 = vcombine.low %v2381, %v2385
    %v3865 = vcombine.low %v2389, %v2393
    %v3867 = vunpack.c.l.s4 1966171168
    %v3868 = vunpack.c.0.s8 %v3867
    %v3869 = vlaneseq
    %v3870 = vshrl.u32 %v3869, 7
    %v3871 = vsub.s32 %v3868, %v3870
    %v3872 = vrot.slane %v3862, %v3871
    %v3874 = vunpack.c.l.s4 1966171168
    %v3875 = vunpack.c.0.s8 %v3874
    %v3876 = vlaneseq
    %v3877 = vshrl.u32 %v3876, 7
    %v3878 = vsub.s32 %v3875, %v3877
    %v3879 = vrot.slane %v3863, %v3878
    %v3881 = vunpack.c.l.s4 1966171168
    %v3882 = vunpack.c.0.s8 %v3881
    %v3883 = vlaneseq
    %v3884 = vshrl.u32 %v3883, 7
    %v3885 = vsub.s32 %v3882, %v3884
    %v3886 = vrot.slane %v3864, %v3885
    %v3888 = vunpack.c.l.s4 1966171168
    %v3889 = vunpack.c.0.s8 %v3888
    %v3890 = vlaneseq
    %v3891 = vshrl.u32 %v3890, 7
    %v3892 = vsub.s32 %v3889, %v3891
    %v3893 = vrot.slane %v3865, %v3892
    %v3894 = vcombine.low %v3872, %v3879
    %v3895 = vcombine.low %v3886, %v3893
    %v3897 = vunpack.c.l.s4 1966171168
    %v3898 = vunpack.c.0.s8 %v3897
    %v3899 = vlaneseq
    %v3900 = vshrl.u32 %v3899, 7
    %v3901 = vsub.s32 %v3898, %v3900
    %v3902 = vrot.slane %v3894, %v3901
    %v3904 = vunpack.c.l.s4 1966171168
    %v3905 = vunpack.c.0.s8 %v3904
    %v3906 = vlaneseq
    %v3907 = vshrl.u32 %v3906, 7
    %v3908 = vsub.s32 %v3905, %v3907
    %v3909 = vrot.slane %v3895, %v3908
    %v3910 = vcombine.low %v3902, %v3909
    %v3911 = vcombine.low %v2397, %v2401
    %v3912 = vcombine.low %v2405, %v2409
    %v3913 = vcombine.low %v2413, %v2417
    %v3914 = vcombine.low %v2421, %v2425
    %v3916 = vunpack.c.l.s4 1966171168
    %v3917 = vunpack.c.0.s8 %v3916
    %v3918 = vlaneseq
    %v3919 = vshrl.u32 %v3918, 7
    %v3920 = vsub.s32 %v3917, %v3919
    %v3921 = vrot.slane %v3911, %v3920
    %v3923 = vunpack.c.l.s4 1966171168
    %v3924 = vunpack.c.0.s8 %v3923
    %v3925 = vlaneseq
    %v3926 = vshrl.u32 %v3925, 7
    %v3927 = vsub.s32 %v3924, %v3926
    %v3928 = vrot.slane %v3912, %v3927
    %v3930 = vunpack.c.l.s4 1966171168
    %v3931 = vunpack.c.0.s8 %v3930
    %v3932 = vlaneseq
    %v3933 = vshrl.u32 %v3932, 7
    %v3934 = vsub.s32 %v3931, %v3933
    %v3935 = vrot.slane %v3913, %v3934
    %v3937 = vunpack.c.l.s4 1966171168
    %v3938 = vunpack.c.0.s8 %v3937
    %v3939 = vlaneseq
    %v3940 = vshrl.u32 %v3939, 7
    %v3941 = vsub.s32 %v3938, %v3940
    %v3942 = vrot.slane %v3914, %v3941
    %v3943 = vcombine.low %v3921, %v3928
    %v3944 = vcombine.low %v3935, %v3942
    %v3946 = vunpack.c.l.s4 1966171168
    %v3947 = vunpack.c.0.s8 %v3946
    %v3948 = vlaneseq
    %v3949 = vshrl.u32 %v3948, 7
    %v3950 = vsub.s32 %v3947, %v3949
    %v3951 = vrot.slane %v3943, %v3950
    %v3953 = vunpack.c.l.s4 1966171168
    %v3954 = vunpack.c.0.s8 %v3953
    %v3955 = vlaneseq
    %v3956 = vshrl.u32 %v3955, 7
    %v3957 = vsub.s32 %v3954, %v3956
    %v3958 = vrot.slane %v3944, %v3957
    %v3959 = vcombine.low %v3951, %v3958
    %v3960 = vcombine.low %v2429, %v2433
    %v3961 = vcombine.low %v2437, %v2441
    %v3962 = vcombine.low %v2445, %v2449
    %v3963 = vcombine.low %v2453, %v2457
    %v3965 = vunpack.c.l.s4 1966171168
    %v3966 = vunpack.c.0.s8 %v3965
    %v3967 = vlaneseq
    %v3968 = vshrl.u32 %v3967, 7
    %v3969 = vsub.s32 %v3966, %v3968
    %v3970 = vrot.slane %v3960, %v3969
    %v3972 = vunpack.c.l.s4 1966171168
    %v3973 = vunpack.c.0.s8 %v3972
    %v3974 = vlaneseq
    %v3975 = vshrl.u32 %v3974, 7
    %v3976 = vsub.s32 %v3973, %v3975
    %v3977 = vrot.slane %v3961, %v3976
    %v3979 = vunpack.c.l.s4 1966171168
    %v3980 = vunpack.c.0.s8 %v3979
    %v3981 = vlaneseq
    %v3982 = vshrl.u32 %v3981, 7
    %v3983 = vsub.s32 %v3980, %v3982
    %v3984 = vrot.slane %v3962, %v3983
    %v3986 = vunpack.c.l.s4 1966171168
    %v3987 = vunpack.c.0.s8 %v3986
    %v3988 = vlaneseq
    %v3989 = vshrl.u32 %v3988, 7
    %v3990 = vsub.s32 %v3987, %v3989
    %v3991 = vrot.slane %v3963, %v3990
    %v3992 = vcombine.low %v3970, %v3977
    %v3993 = vcombine.low %v3984, %v3991
    %v3995 = vunpack.c.l.s4 1966171168
    %v3996 = vunpack.c.0.s8 %v3995
    %v3997 = vlaneseq
    %v3998 = vshrl.u32 %v3997, 7
    %v3999 = vsub.s32 %v3996, %v3998
    %v4000 = vrot.slane %v3992, %v3999
    %v4002 = vunpack.c.l.s4 1966171168
    %v4003 = vunpack.c.0.s8 %v4002
    %v4004 = vlaneseq
    %v4005 = vshrl.u32 %v4004, 7
    %v4006 = vsub.s32 %v4003, %v4005
    %v4007 = vrot.slane %v3993, %v4006
    %v4008 = vcombine.low %v4000, %v4007
    %v4009 = vcombine.low %v2461, %v2465
    %v4010 = vcombine.low %v2469, %v2473
    %v4011 = vcombine.low %v2477, %v2481
    %v4012 = vcombine.low %v2485, %v2489
    %v4014 = vunpack.c.l.s4 1966171168
    %v4015 = vunpack.c.0.s8 %v4014
    %v4016 = vlaneseq
    %v4017 = vshrl.u32 %v4016, 7
    %v4018 = vsub.s32 %v4015, %v4017
    %v4019 = vrot.slane %v4009, %v4018
    %v4021 = vunpack.c.l.s4 1966171168
    %v4022 = vunpack.c.0.s8 %v4021
    %v4023 = vlaneseq
    %v4024 = vshrl.u32 %v4023, 7
    %v4025 = vsub.s32 %v4022, %v4024
    %v4026 = vrot.slane %v4010, %v4025
    %v4028 = vunpack.c.l.s4 1966171168
    %v4029 = vunpack.c.0.s8 %v4028
    %v4030 = vlaneseq
    %v4031 = vshrl.u32 %v4030, 7
    %v4032 = vsub.s32 %v4029, %v4031
    %v4033 = vrot.slane %v4011, %v4032
    %v4035 = vunpack.c.l.s4 1966171168
    %v4036 = vunpack.c.0.s8 %v4035
    %v4037 = vlaneseq
    %v4038 = vshrl.u32 %v4037, 7
    %v4039 = vsub.s32 %v4036, %v4038
    %v4040 = vrot.slane %v4012, %v4039
    %v4041 = vcombine.low %v4019, %v4026
    %v4042 = vcombine.low %v4033, %v4040
    %v4044 = vunpack.c.l.s4 1966171168
    %v4045 = vunpack.c.0.s8 %v4044
    %v4046 = vlaneseq
    %v4047 = vshrl.u32 %v4046, 7
    %v4048 = vsub.s32 %v4045, %v4047
    %v4049 = vrot.slane %v4041, %v4048
    %v4051 = vunpack.c.l.s4 1966171168
    %v4052 = vunpack.c.0.s8 %v4051
    %v4053 = vlaneseq
    %v4054 = vshrl.u32 %v4053, 7
    %v4055 = vsub.s32 %v4052, %v4054
    %v4056 = vrot.slane %v4042, %v4055
    %v4057 = vcombine.low %v4049, %v4056
    %4058 = vset.pattern.permute.xlu0 0
    %4059 = vperm.xlu0 %4058, %v2538
    %v4060 = vpop.permute.xlu0 %4059
    %4061 = vset.pattern.permute.xlu0 0
    %4062 = vperm.xlu0 %4061, %v2587
    %v4063 = vpop.permute.xlu0 %4062
    %4064 = vset.pattern.permute.xlu0 0
    %4065 = vperm.xlu0 %4064, %v2636
    %v4066 = vpop.permute.xlu0 %4065
    %4067 = vset.pattern.permute.xlu0 0
    %4068 = vperm.xlu0 %4067, %v2685
    %v4069 = vpop.permute.xlu0 %4068
    %4070 = vset.pattern.permute.xlu0 0
    %4071 = vperm.xlu0 %4070, %v2734
    %v4072 = vpop.permute.xlu0 %4071
    %4073 = vset.pattern.permute.xlu0 0
    %4074 = vperm.xlu0 %4073, %v2783
    %v4075 = vpop.permute.xlu0 %4074
    %4076 = vset.pattern.permute.xlu0 0
    %4077 = vperm.xlu0 %4076, %v2832
    %v4078 = vpop.permute.xlu0 %4077
    %4079 = vset.pattern.permute.xlu0 0
    %4080 = vperm.xlu0 %4079, %v2881
    %v4081 = vpop.permute.xlu0 %4080
    %4082 = vset.pattern.permute.xlu0 0
    %4083 = vperm.xlu0 %4082, %v2930
    %v4084 = vpop.permute.xlu0 %4083
    %4085 = vset.pattern.permute.xlu0 0
    %4086 = vperm.xlu0 %4085, %v2979
    %v4087 = vpop.permute.xlu0 %4086
    %4088 = vset.pattern.permute.xlu0 0
    %4089 = vperm.xlu0 %4088, %v3028
    %v4090 = vpop.permute.xlu0 %4089
    %4091 = vset.pattern.permute.xlu0 0
    %4092 = vperm.xlu0 %4091, %v3077
    %v4093 = vpop.permute.xlu0 %4092
    %4094 = vset.pattern.permute.xlu0 0
    %4095 = vperm.xlu0 %4094, %v3126
    %v4096 = vpop.permute.xlu0 %4095
    %4097 = vset.pattern.permute.xlu0 0
    %4098 = vperm.xlu0 %4097, %v3175
    %v4099 = vpop.permute.xlu0 %4098
    %4100 = vset.pattern.permute.xlu0 0
    %4101 = vperm.xlu0 %4100, %v3224
    %v4102 = vpop.permute.xlu0 %4101
    %4103 = vset.pattern.permute.xlu0 0
    %4104 = vperm.xlu0 %4103, %v3273
    %v4105 = vpop.permute.xlu0 %4104
    %4106 = vset.pattern.permute.xlu0 0
    %4107 = vperm.xlu0 %4106, %v3322
    %v4108 = vpop.permute.xlu0 %4107
    %4109 = vset.pattern.permute.xlu0 0
    %4110 = vperm.xlu0 %4109, %v3371
    %v4111 = vpop.permute.xlu0 %4110
    %4112 = vset.pattern.permute.xlu0 0
    %4113 = vperm.xlu0 %4112, %v3420
    %v4114 = vpop.permute.xlu0 %4113
    %4115 = vset.pattern.permute.xlu0 0
    %4116 = vperm.xlu0 %4115, %v3469
    %v4117 = vpop.permute.xlu0 %4116
    %4118 = vset.pattern.permute.xlu0 0
    %4119 = vperm.xlu0 %4118, %v3518
    %v4120 = vpop.permute.xlu0 %4119
    %4121 = vset.pattern.permute.xlu0 0
    %4122 = vperm.xlu0 %4121, %v3567
    %v4123 = vpop.permute.xlu0 %4122
    %4124 = vset.pattern.permute.xlu0 0
    %4125 = vperm.xlu0 %4124, %v3616
    %v4126 = vpop.permute.xlu0 %4125
    %4127 = vset.pattern.permute.xlu0 0
    %4128 = vperm.xlu0 %4127, %v3665
    %v4129 = vpop.permute.xlu0 %4128
    %4130 = vset.pattern.permute.xlu0 0
    %4131 = vperm.xlu0 %4130, %v3714
    %v4132 = vpop.permute.xlu0 %4131
    %4133 = vset.pattern.permute.xlu0 0
    %4134 = vperm.xlu0 %4133, %v3763
    %v4135 = vpop.permute.xlu0 %4134
    %4136 = vset.pattern.permute.xlu0 0
    %4137 = vperm.xlu0 %4136, %v3812
    %v4138 = vpop.permute.xlu0 %4137
    %4139 = vset.pattern.permute.xlu0 0
    %4140 = vperm.xlu0 %4139, %v3861
    %v4141 = vpop.permute.xlu0 %4140
    %4142 = vset.pattern.permute.xlu0 0
    %4143 = vperm.xlu0 %4142, %v3910
    %v4144 = vpop.permute.xlu0 %4143
    %4145 = vset.pattern.permute.xlu0 0
    %4146 = vperm.xlu0 %4145, %v3959
    %v4147 = vpop.permute.xlu0 %4146
    %4148 = vset.pattern.permute.xlu0 0
    %4149 = vperm.xlu0 %4148, %v4008
    %v4150 = vpop.permute.xlu0 %4149
    %4151 = vset.pattern.permute.xlu0 0
    %4152 = vperm.xlu0 %4151, %v4057
    %v4153 = vpop.permute.xlu0 %4152
    %v4154 = vlaneseq
    %v4155 = vshrl.u32 %v4154, 7
    %v4156 = vsub.s32 %v889, %v4155
    %v4157 = vrot.slane %v4060, %v4156
    %v4158 = vadd.s32 %v889, 4294967288
    %v4159 = vlaneseq
    %v4160 = vshrl.u32 %v4159, 7
    %v4161 = vsub.s32 %v4158, %v4160
    %v4162 = vrot.slane %v4063, %v4161
    %vm4163 = vcmask 130112
    %v4164 = vsel %vm4163, %v4162, %v4157
    %v4165 = vadd.s32 %v889, 4294967280
    %v4166 = vlaneseq
    %v4167 = vshrl.u32 %v4166, 7
    %v4168 = vsub.s32 %v4165, %v4167
    %v4169 = vrot.slane %v4066, %v4168
    %vm4170 = vcmask 195712
    %v4171 = vsel %vm4170, %v4169, %v4164
    %v4172 = vadd.s32 %v889, 4294967272
    %v4173 = vlaneseq
    %v4174 = vshrl.u32 %v4173, 7
    %v4175 = vsub.s32 %v4172, %v4174
    %v4176 = vrot.slane %v4069, %v4175
    %vm4177 = vcmask 261312
    %v4178 = vsel %vm4177, %v4176, %v4171
    %v4179 = vadd.s32 %v889, 4294967264
    %v4180 = vlaneseq
    %v4181 = vshrl.u32 %v4180, 7
    %v4182 = vsub.s32 %v4179, %v4181
    %v4183 = vrot.slane %v4072, %v4182
    %vm4184 = vcmask 326912
    %v4185 = vsel %vm4184, %v4183, %v4178
    %v4186 = vadd.s32 %v889, 4294967256
    %v4187 = vlaneseq
    %v4188 = vshrl.u32 %v4187, 7
    %v4189 = vsub.s32 %v4186, %v4188
    %v4190 = vrot.slane %v4075, %v4189
    %vm4191 = vcmask 392512
    %v4192 = vsel %vm4191, %v4190, %v4185
    %v4193 = vadd.s32 %v889, 4294967248
    %v4194 = vlaneseq
    %v4195 = vshrl.u32 %v4194, 7
    %v4196 = vsub.s32 %v4193, %v4195
    %v4197 = vrot.slane %v4078, %v4196
    %vm4198 = vcmask 458112
    %v4199 = vsel %vm4198, %v4197, %v4192
    %v4200 = vadd.s32 %v889, 4294967240
    %v4201 = vlaneseq
    %v4202 = vshrl.u32 %v4201, 7
    %v4203 = vsub.s32 %v4200, %v4202
    %v4204 = vrot.slane %v4081, %v4203
    %vm4205 = vcmask 523712
    %v4206 = vsel %vm4205, %v4204, %v4199
    %v4207 = vadd.s32 %v889, 4294967232
    %v4208 = vlaneseq
    %v4209 = vshrl.u32 %v4208, 7
    %v4210 = vsub.s32 %v4207, %v4209
    %v4211 = vrot.slane %v4084, %v4210
    %vm4212 = vcmask 589312
    %v4213 = vsel %vm4212, %v4211, %v4206
    %v4214 = vadd.s32 %v889, 4294967224
    %v4215 = vlaneseq
    %v4216 = vshrl.u32 %v4215, 7
    %v4217 = vsub.s32 %v4214, %v4216
    %v4218 = vrot.slane %v4087, %v4217
    %vm4219 = vcmask 654912
    %v4220 = vsel %vm4219, %v4218, %v4213
    %v4221 = vadd.s32 %v889, 4294967216
    %v4222 = vlaneseq
    %v4223 = vshrl.u32 %v4222, 7
    %v4224 = vsub.s32 %v4221, %v4223
    %v4225 = vrot.slane %v4090, %v4224
    %vm4226 = vcmask 720512
    %v4227 = vsel %vm4226, %v4225, %v4220
    %v4228 = vadd.s32 %v889, 4294967208
    %v4229 = vlaneseq
    %v4230 = vshrl.u32 %v4229, 7
    %v4231 = vsub.s32 %v4228, %v4230
    %v4232 = vrot.slane %v4093, %v4231
    %vm4233 = vcmask 786112
    %v4234 = vsel %vm4233, %v4232, %v4227
    %v4235 = vadd.s32 %v889, 4294967200
    %v4236 = vlaneseq
    %v4237 = vshrl.u32 %v4236, 7
    %v4238 = vsub.s32 %v4235, %v4237
    %v4239 = vrot.slane %v4096, %v4238
    %vm4240 = vcmask 851712
    %v4241 = vsel %vm4240, %v4239, %v4234
    %v4242 = vadd.s32 %v889, 4294967192
    %v4243 = vlaneseq
    %v4244 = vshrl.u32 %v4243, 7
    %v4245 = vsub.s32 %v4242, %v4244
    %v4246 = vrot.slane %v4099, %v4245
    %vm4247 = vcmask 917312
    %v4248 = vsel %vm4247, %v4246, %v4241
    %v4249 = vadd.s32 %v889, 4294967184
    %v4250 = vlaneseq
    %v4251 = vshrl.u32 %v4250, 7
    %v4252 = vsub.s32 %v4249, %v4251
    %v4253 = vrot.slane %v4102, %v4252
    %vm4254 = vcmask 982912
    %v4255 = vsel %vm4254, %v4253, %v4248
    %v4256 = vadd.s32 %v889, 4294967176
    %v4257 = vlaneseq
    %v4258 = vshrl.u32 %v4257, 7
    %v4259 = vsub.s32 %v4256, %v4258
    %v4260 = vrot.slane %v4105, %v4259
    %vm4261 = vcmask 1048512
    %v4262 = vsel %vm4261, %v4260, %v4255
    %v4263 = vlaneseq
    %v4264 = vshrl.u32 %v4263, 7
    %v4265 = vsub.s32 %v889, %v4264
    %v4266 = vrot.slane %v4108, %v4265
    %v4267 = vlaneseq
    %v4268 = vshrl.u32 %v4267, 7
    %v4269 = vsub.s32 %v4158, %v4268
    %v4270 = vrot.slane %v4111, %v4269
    %v4271 = vsel %vm4163, %v4270, %v4266
    %v4272 = vlaneseq
    %v4273 = vshrl.u32 %v4272, 7
    %v4274 = vsub.s32 %v4165, %v4273
    %v4275 = vrot.slane %v4114, %v4274
    %v4276 = vsel %vm4170, %v4275, %v4271
    %v4277 = vlaneseq
    %v4278 = vshrl.u32 %v4277, 7
    %v4279 = vsub.s32 %v4172, %v4278
    %v4280 = vrot.slane %v4117, %v4279
    %v4281 = vsel %vm4177, %v4280, %v4276
    %v4282 = vlaneseq
    %v4283 = vshrl.u32 %v4282, 7
    %v4284 = vsub.s32 %v4179, %v4283
    %v4285 = vrot.slane %v4120, %v4284
    %v4286 = vsel %vm4184, %v4285, %v4281
    %v4287 = vlaneseq
    %v4288 = vshrl.u32 %v4287, 7
    %v4289 = vsub.s32 %v4186, %v4288
    %v4290 = vrot.slane %v4123, %v4289
    %v4291 = vsel %vm4191, %v4290, %v4286
    %v4292 = vlaneseq
    %v4293 = vshrl.u32 %v4292, 7
    %v4294 = vsub.s32 %v4193, %v4293
    %v4295 = vrot.slane %v4126, %v4294
    %v4296 = vsel %vm4198, %v4295, %v4291
    %v4297 = vlaneseq
    %v4298 = vshrl.u32 %v4297, 7
    %v4299 = vsub.s32 %v4200, %v4298
    %v4300 = vrot.slane %v4129, %v4299
    %v4301 = vsel %vm4205, %v4300, %v4296
    %v4302 = vlaneseq
    %v4303 = vshrl.u32 %v4302, 7
    %v4304 = vsub.s32 %v4207, %v4303
    %v4305 = vrot.slane %v4132, %v4304
    %v4306 = vsel %vm4212, %v4305, %v4301
    %v4307 = vlaneseq
    %v4308 = vshrl.u32 %v4307, 7
    %v4309 = vsub.s32 %v4214, %v4308
    %v4310 = vrot.slane %v4135, %v4309
    %v4311 = vsel %vm4219, %v4310, %v4306
    %v4312 = vlaneseq
    %v4313 = vshrl.u32 %v4312, 7
    %v4314 = vsub.s32 %v4221, %v4313
    %v4315 = vrot.slane %v4138, %v4314
    %v4316 = vsel %vm4226, %v4315, %v4311
    %v4317 = vlaneseq
    %v4318 = vshrl.u32 %v4317, 7
    %v4319 = vsub.s32 %v4228, %v4318
    %v4320 = vrot.slane %v4141, %v4319
    %v4321 = vsel %vm4233, %v4320, %v4316
    %v4322 = vlaneseq
    %v4323 = vshrl.u32 %v4322, 7
    %v4324 = vsub.s32 %v4235, %v4323
    %v4325 = vrot.slane %v4144, %v4324
    %v4326 = vsel %vm4240, %v4325, %v4321
    %v4327 = vlaneseq
    %v4328 = vshrl.u32 %v4327, 7
    %v4329 = vsub.s32 %v4242, %v4328
    %v4330 = vrot.slane %v4147, %v4329
    %v4331 = vsel %vm4247, %v4330, %v4326
    %v4332 = vlaneseq
    %v4333 = vshrl.u32 %v4332, 7
    %v4334 = vsub.s32 %v4249, %v4333
    %v4335 = vrot.slane %v4150, %v4334
    %v4336 = vsel %vm4254, %v4335, %v4331
    %v4337 = vlaneseq
    %v4338 = vshrl.u32 %v4337, 7
    %v4339 = vsub.s32 %v4256, %v4338
    %v4340 = vrot.slane %v4153, %v4339
    %v4341 = vsel %vm4261, %v4340, %v4336
    %v4342 = vcombine.low %v4262, %v4341
    %v4344 = vunpack.c.l.s4 1966171168
    %v4345 = vunpack.c.0.s8 %v4344
    %v4346 = vlaneseq
    %v4347 = vshrl.u32 %v4346, 7
    %v4348 = vsub.s32 %v4345, %v4347
    %v4349 = vrot.slane %v4342, %v4348
    %v4351 = vunpack.c.l.s4 1966171168
    %v4352 = vunpack.c.0.s8 %v4351
    %v4353 = vlaneseq
    %v4354 = vshrl.u32 %v4353, 7
    %v4355 = vsub.s32 %v4352, %v4354
    %v4356 = vrot.slane %v4349, %v4355
    %v4357 = vlaneseq
    %vm4358 = vcmp.ge.s32.totalorder %v4357, 0
    %vm4359 = vcmp.lt.s32.totalorder %v4357, 256
    %vm4360 = vmand %vm4358, %vm4359
    %4361 = vst.msk [vmem:[#allocation8] sm:$0x3] %vm4360, %v4356
    // Predicated region
    $region22: #{tpu_custom_call.1} parent=1 // pred_check
      _
    $region23: #{tpu_custom_call.1} parent=1 // pred_check_branch
      %4363 = sbr.rel (0) target = $region25
    $region24: #{tpu_custom_call.1} parent=1 // pred_region
      %s4365 = ssub.s32 2048, 2048
      %4366 = vsyncadd [#allocation4], %s4365
      %s4367 = sshll.u32 [#allocation7], 4
      %s4368 = int_to_ptr.vmem [resolvable:$true] %s4367
      %4373 = dma.vmem_to_hbm [thread:$0]  %s4368, 2048, %s3, [#allocation4], 64, 64, 4
    $region25: #{tpu_custom_call.1} parent=1 // pred_fallthru
      _
    // Predicated region
    $region26: #{tpu_custom_call.1} parent=1 // pred_check
      _
    $region27: #{tpu_custom_call.1} parent=1 // pred_check_branch
      %4375 = sbr.rel (0) target = $region29
    $region28: #{tpu_custom_call.1} parent=1 // pred_region
      %s4377 = ssub.s32 32, 32
      %4378 = vsyncadd [#allocation9], %s4377
      %s4380 = sshll.u32 [#allocation8], 4
      %s4381 = int_to_ptr.vmem [resolvable:$true] %s4380
      %4383 = dma.vmem_to_hbm [thread:$0]  %s4381, 32, %s4, [#allocation9]
    $region29: #{tpu_custom_call.1} parent=1 // pred_fallthru
      _
    // Predicated region
    $region30: #{tpu_custom_call.1} parent=1 // pred_check
      _
    $region31: #{tpu_custom_call.1} parent=1 // pred_check_branch
      %4385 = sbr.rel (0) target = $region33
    $region32: #{tpu_custom_call.1} parent=1 // pred_region
      %s4387 = ssub.s32 2048, 2048
      %4388 = vsyncadd [#allocation9], %s4387
      %s4389 = sshll.u32 [#allocation10], 4
      %s4390 = int_to_ptr.vmem [resolvable:$true] %s4389
      %4395 = dma.vmem_to_hbm [thread:$0]  %s4390, 2048, %s5, [#allocation9], 64, 64, 4
    $region33: #{tpu_custom_call.1} parent=1 // pred_fallthru
      _
    // Predicated region
    $region34: #{tpu_custom_call.1} parent=1 // pred_check
      _
    $region35: #{tpu_custom_call.1} parent=1 // pred_check_branch
      %4397 = sbr.rel (0) target = $region37
    $region36: #{tpu_custom_call.1} parent=1 // pred_region
      %4398 = dma.done [#allocation4], 2048
    $region37: #{tpu_custom_call.1} parent=1 // pred_fallthru
      _
    // Predicated region
    $region38: #{tpu_custom_call.1} parent=1 // pred_check
      _
    $region39: #{tpu_custom_call.1} parent=1 // pred_check_branch
      %4400 = sbr.rel (0) target = $region41
    $region40: #{tpu_custom_call.1} parent=1 // pred_region
      %4401 = dma.done [#allocation9], 32
    $region41: #{tpu_custom_call.1} parent=1 // pred_fallthru
      _
    // Predicated region
    $region42: #{tpu_custom_call.1} parent=1 // pred_check
      _
    $region43: #{tpu_custom_call.1} parent=1 // pred_check_branch
      %4403 = sbr.rel (0) target = $region45
    $region44: #{tpu_custom_call.1} parent=1 // pred_region
      %4404 = dma.done [#allocation9], 2048
    $region45: #{tpu_custom_call.1} parent=1 // pred_fallthru
      _
    %4405 = vsyncpa [#allocation3], 1
    %4406 = vsyncpa [#allocation6], 1
    %4407 = vsyncpa [#allocation4], 1
    %4408 = vsyncpa [#allocation9], 1

</llo_original>
